<compile_context>
chip_gen: v5e
topology: v5e:2x2
jax: 0.10.0
libtpu: 0.0.40
codegen_flags: <defaults>
</compile_context>

<pallas_src>
import functools

import jax
import jax.numpy as jnp
from jax.experimental import pallas as pl
from jax.experimental.pallas import tpu as pltpu


def _gru_decoder_kernel(hn_ref, inp_ref, wih_ref, whh_ref, bih_ref, bhh_ref,
                        out_ref, seq_scr, gir_scr, giz_scr, gin_scr,
                        *, T, BP, H, L):
    """Fused multi-layer GRU decoder.

    hn_ref : (BP, H)        initial hidden (same for every layer), batch padded to BP
    inp_ref: (1, H)         learned constant decoder input token
    wih_ref: (L, 3, H, H)   input->hidden weights, gate order [r, z, n], stored transposed
    whh_ref: (L, 3, H, H)   hidden->hidden weights
    bih_ref: (L, 3, 1, H)   input biases
    bhh_ref: (L, 3, 1, H)   hidden biases
    out_ref: (T*BP, H)      last layer hidden sequence, row t*BP+b = h_t of (padded) batch b
    seq_scr / gi*_scr: (T*BP, H) VMEM scratch (inter-layer sequence / hoisted input gates)
    """
    f32 = jnp.float32
    h0 = hn_ref[...].astype(f32)                       # (BP, H) — same init for every layer

    for l in range(L):                                  # layers unrolled at trace time
        first = (l == 0)
        last = (l == L - 1)

        # Hidden->hidden weights / biases for this layer (hoisted out of the time loop).
        w_hr = whh_ref[l, 0]
        w_hz = whh_ref[l, 1]
        w_hn = whh_ref[l, 2]
        b_hr = jnp.broadcast_to(bhh_ref[l, 0], (BP, H))
        b_hz = jnp.broadcast_to(bhh_ref[l, 1], (BP, H))
        b_hn = jnp.broadcast_to(bhh_ref[l, 2], (BP, H))

        if first:
            # Decoder feeds the same token every step -> input projection is a constant.
            x0 = inp_ref[...]                           # (1, H)
            gi_r = jnp.broadcast_to(
                jnp.dot(x0, wih_ref[l, 0], preferred_element_type=f32) + bih_ref[l, 0], (BP, H))
            gi_z = jnp.broadcast_to(
                jnp.dot(x0, wih_ref[l, 1], preferred_element_type=f32) + bih_ref[l, 1], (BP, H))
            gi_n = jnp.broadcast_to(
                jnp.dot(x0, wih_ref[l, 2], preferred_element_type=f32) + bih_ref[l, 2], (BP, H))
        else:
            # Hoisted input projection for the whole sequence: one big MXU matmul per gate.
            x_seq = seq_scr[...]                        # (T*BP, H) previous layer's outputs
            gir_scr[...] = jnp.dot(x_seq, wih_ref[l, 0], preferred_element_type=f32) + bih_ref[l, 0]
            giz_scr[...] = jnp.dot(x_seq, wih_ref[l, 1], preferred_element_type=f32) + bih_ref[l, 1]
            gin_scr[...] = jnp.dot(x_seq, wih_ref[l, 2], preferred_element_type=f32) + bih_ref[l, 2]

        def step(t, h):
            row = pl.multiple_of(t * BP, BP)            # sublane-aligned row offset
            if first:
                gr, gz, gn = gi_r, gi_z, gi_n
            else:
                gr = gir_scr[pl.ds(row, BP), :]
                gz = giz_scr[pl.ds(row, BP), :]
                gn = gin_scr[pl.ds(row, BP), :]
            # Only the hidden->hidden projection stays on the serial recurrence path.
            gh_r = jnp.dot(h, w_hr, preferred_element_type=f32) + b_hr
            gh_z = jnp.dot(h, w_hz, preferred_element_type=f32) + b_hz
            gh_n = jnp.dot(h, w_hn, preferred_element_type=f32) + b_hn
            r = jax.nn.sigmoid(gr + gh_r)
            z = jax.nn.sigmoid(gz + gh_z)
            n = jnp.tanh(gn + r * gh_n)
            h_new = (1.0 - z) * n + z * h
            if last:
                out_ref[pl.ds(row, BP), :] = h_new.astype(out_ref.dtype)
            else:
                seq_scr[pl.ds(row, BP), :] = h_new
            return h_new

        jax.lax.fori_loop(0, T, step, h0, unroll=min(T, 8))


def gru_decoder_forward(h_n, max_len, params, num_layers, hidden_size):
    """Pallas implementation of GRUDecoder.forward.

    h_n:     (B, H) float32 initial hidden state
    max_len: int    number of decoding steps
    returns: (B, max_len, H) float32
    """
    B, H = h_n.shape
    assert H == hidden_size
    T, L = int(max_len), int(num_layers)
    BP = ((B + 7) // 8) * 8                             # pad batch to a full sublane tile

    hn_p = jnp.zeros((BP, H), jnp.float32).at[:B, :].set(h_n.astype(jnp.float32))

    kernel = functools.partial(_gru_decoder_kernel, T=T, BP=BP, H=H, L=L)
    out2d = pl.pallas_call(
        kernel,
        out_shape=jax.ShapeDtypeStruct((T * BP, H), jnp.float32),
        scratch_shapes=[
            pltpu.VMEM((T * BP, H), jnp.float32),       # inter-layer hidden sequence
            pltpu.VMEM((T * BP, H), jnp.float32),       # hoisted gi_r
            pltpu.VMEM((T * BP, H), jnp.float32),       # hoisted gi_z
            pltpu.VMEM((T * BP, H), jnp.float32),       # hoisted gi_n
        ],
        # Explicit VMEM budget (fits every generation incl. v7x's 64 MiB physical).
        # At production T/H: chunk T or store the sequence/weights in bf16.
        compiler_params=pltpu.CompilerParams(vmem_limit_bytes=32 * 1024 * 1024),
    )(hn_p,
      params["inp"].astype(jnp.float32),
      params["w_ih"].astype(jnp.float32),
      params["w_hh"].astype(jnp.float32),
      params["b_ih"].astype(jnp.float32),
      params["b_hh"].astype(jnp.float32))

    # Kernel output is time-major (t*BP+b, H); restore PyTorch's (B, T, H) batch_first layout.
    out = out2d.reshape(T, BP, H)[:, :B, :]
    return jnp.transpose(out, (1, 0, 2))


def gru_decoder_reference(h_n, max_len, params, num_layers, hidden_size):
    """Pure-JAX reference with identical semantics (for verification)."""
    B, H = h_n.shape
    x0 = params["inp"][0]                               # (H,)
    wih, whh = params["w_ih"], params["w_hh"]
    bih, bhh = params["b_ih"], params["b_hh"]
    layer_in = jnp.broadcast_to(x0[None, None, :], (B, max_len, H)).astype(jnp.float32)
    for l in range(num_layers):
        h = h_n.astype(jnp.float32)
        outs = []
        for t in range(max_len):
            x_t = layer_in[:, t, :]
            r = jax.nn.sigmoid(x_t @ wih[l, 0] + bih[l, 0, 0] + h @ whh[l, 0] + bhh[l, 0, 0])
            z = jax.nn.sigmoid(x_t @ wih[l, 1] + bih[l, 1, 0] + h @ whh[l, 1] + bhh[l, 1, 0])
            n = jnp.tanh(x_t @ wih[l, 2] + bih[l, 2, 0] + r * (h @ whh[l, 2] + bhh[l, 2, 0]))
            h = (1.0 - z) * n + z * h
            outs.append(h)
        layer_in = jnp.stack(outs, axis=1)
    # unidirectional: reshape(B, T, 1, H).sum(2) is the identity
    return layer_in


def init_params(key, hidden_size, num_layers):
    """Deterministic synthetic parameters (gate-separated, pre-transposed nn.GRU layout)."""
    H, L = hidden_size, num_layers
    ks = jax.random.split(key, 5)
    scale = 0.2
    return {
        "inp":  jax.random.normal(ks[0], (1, H), jnp.float32),            # learned input token
        "w_ih": scale * jax.random.normal(ks[1], (L, 3, H, H), jnp.float32),
        "w_hh": scale * jax.random.normal(ks[2], (L, 3, H, H), jnp.float32),
        "b_ih": scale * jax.random.normal(ks[3], (L, 3, 1, H), jnp.float32),
        "b_hh": scale * jax.random.normal(ks[4], (L, 3, 1, H), jnp.float32),
    }


if __name__ == "__main__":
    B, MAX_LEN = 2, 8
    HIDDEN_SIZE, NUM_LAYERS = 32, 2

    key = jax.random.PRNGKey(0)
    kh, kp = jax.random.split(key)
    h_n = jax.random.normal(kh, (B, HIDDEN_SIZE), jnp.float32)
    params = init_params(kp, HIDDEN_SIZE, NUM_LAYERS)

    out = gru_decoder_forward(h_n, MAX_LEN, params, NUM_LAYERS, HIDDEN_SIZE)
    out = jax.block_until_ready(out)

    ref = gru_decoder_reference(h_n, MAX_LEN, params, NUM_LAYERS, HIDDEN_SIZE)
    assert out.shape == (B, MAX_LEN, HIDDEN_SIZE)
    assert jnp.allclose(out, ref, atol=1e-4, rtol=1e-4), "mismatch vs JAX reference"

    print("KERNEL_OK")
</pallas_src>

<mosaic_0001>
module attributes {stable_mosaic.version = 11 : i64} {
  func.func @_gru_decoder_kernel(%arg0: memref<8x32xf32, #tpu.memory_space<vmem>>, %arg1: memref<1x32xf32, #tpu.memory_space<vmem>>, %arg2: memref<2x3x32x32xf32, #tpu.memory_space<vmem>>, %arg3: memref<2x3x32x32xf32, #tpu.memory_space<vmem>>, %arg4: memref<2x3x1x32xf32, #tpu.memory_space<vmem>>, %arg5: memref<2x3x1x32xf32, #tpu.memory_space<vmem>>, %arg6: memref<64x32xf32, #tpu.memory_space<vmem>>, %arg7: memref<64x32xf32, #tpu.memory_space<vmem>>, %arg8: memref<64x32xf32, #tpu.memory_space<vmem>>, %arg9: memref<64x32xf32, #tpu.memory_space<vmem>>, %arg10: memref<64x32xf32, #tpu.memory_space<vmem>>) attributes {dimension_semantics = [], scalar_prefetch = 0 : i64, scratch_operands = 4 : i64, tpu.core_type = #tpu.core_type<tc>} {
    %c0 = arith.constant 0 : index
    %c0_0 = arith.constant 0 : index
    %0 = vector.load %arg0[%c0, %c0_0] : memref<8x32xf32, #tpu.memory_space<vmem>>, vector<8x32xf32>
    %c0_1 = arith.constant 0 : index
    %c0_2 = arith.constant 0 : index
    %c0_3 = arith.constant 0 : index
    %c0_4 = arith.constant 0 : index
    %1 = vector.load %arg3[%c0_1, %c0_2, %c0_3, %c0_4] : memref<2x3x32x32xf32, #tpu.memory_space<vmem>>, vector<1x1x32x32xf32>
    %2 = vector.shape_cast %1 : vector<1x1x32x32xf32> to vector<32x32xf32>
    %c0_5 = arith.constant 0 : index
    %c1 = arith.constant 1 : index
    %c0_6 = arith.constant 0 : index
    %c0_7 = arith.constant 0 : index
    %3 = vector.load %arg3[%c0_5, %c1, %c0_6, %c0_7] : memref<2x3x32x32xf32, #tpu.memory_space<vmem>>, vector<1x1x32x32xf32>
    %4 = vector.shape_cast %3 : vector<1x1x32x32xf32> to vector<32x32xf32>
    %c0_8 = arith.constant 0 : index
    %c2 = arith.constant 2 : index
    %c0_9 = arith.constant 0 : index
    %c0_10 = arith.constant 0 : index
    %5 = vector.load %arg3[%c0_8, %c2, %c0_9, %c0_10] : memref<2x3x32x32xf32, #tpu.memory_space<vmem>>, vector<1x1x32x32xf32>
    %6 = vector.shape_cast %5 : vector<1x1x32x32xf32> to vector<32x32xf32>
    %c0_11 = arith.constant 0 : index
    %c0_12 = arith.constant 0 : index
    %c0_13 = arith.constant 0 : index
    %c0_14 = arith.constant 0 : index
    %7 = vector.load %arg5[%c0_11, %c0_12, %c0_13, %c0_14] : memref<2x3x1x32xf32, #tpu.memory_space<vmem>>, vector<1x1x1x32xf32>
    %8 = vector.shape_cast %7 : vector<1x1x1x32xf32> to vector<1x32xf32>
    %9 = vector.shape_cast %8 : vector<1x32xf32> to vector<1x32xf32>
    %10 = vector.broadcast %9 : vector<1x32xf32> to vector<8x32xf32>
    %c0_15 = arith.constant 0 : index
    %c1_16 = arith.constant 1 : index
    %c0_17 = arith.constant 0 : index
    %c0_18 = arith.constant 0 : index
    %11 = vector.load %arg5[%c0_15, %c1_16, %c0_17, %c0_18] : memref<2x3x1x32xf32, #tpu.memory_space<vmem>>, vector<1x1x1x32xf32>
    %12 = vector.shape_cast %11 : vector<1x1x1x32xf32> to vector<1x32xf32>
    %13 = vector.shape_cast %12 : vector<1x32xf32> to vector<1x32xf32>
    %14 = vector.broadcast %13 : vector<1x32xf32> to vector<8x32xf32>
    %c0_19 = arith.constant 0 : index
    %c2_20 = arith.constant 2 : index
    %c0_21 = arith.constant 0 : index
    %c0_22 = arith.constant 0 : index
    %15 = vector.load %arg5[%c0_19, %c2_20, %c0_21, %c0_22] : memref<2x3x1x32xf32, #tpu.memory_space<vmem>>, vector<1x1x1x32xf32>
    %16 = vector.shape_cast %15 : vector<1x1x1x32xf32> to vector<1x32xf32>
    %17 = vector.shape_cast %16 : vector<1x32xf32> to vector<1x32xf32>
    %18 = vector.broadcast %17 : vector<1x32xf32> to vector<8x32xf32>
    %c0_23 = arith.constant 0 : index
    %c0_24 = arith.constant 0 : index
    %19 = vector.load %arg1[%c0_23, %c0_24] : memref<1x32xf32, #tpu.memory_space<vmem>>, vector<1x32xf32>
    %c0_25 = arith.constant 0 : index
    %c0_26 = arith.constant 0 : index
    %c0_27 = arith.constant 0 : index
    %c0_28 = arith.constant 0 : index
    %20 = vector.load %arg2[%c0_25, %c0_26, %c0_27, %c0_28] : memref<2x3x32x32xf32, #tpu.memory_space<vmem>>, vector<1x1x32x32xf32>
    %21 = vector.shape_cast %20 : vector<1x1x32x32xf32> to vector<32x32xf32>
    %cst = arith.constant dense<0.000000e+00> : vector<1x32xf32>
    %22 = tpu.matmul %19, %21, %cst {dimension_numbers = #tpu.dot_dimension_numbers<[1], [0], [0], [1], [0, 0, 1, 1], [], []>} : vector<1x32xf32>, vector<32x32xf32>, vector<1x32xf32> -> vector<1x32xf32>
    %c0_29 = arith.constant 0 : index
    %c0_30 = arith.constant 0 : index
    %c0_31 = arith.constant 0 : index
    %c0_32 = arith.constant 0 : index
    %23 = vector.load %arg4[%c0_29, %c0_30, %c0_31, %c0_32] : memref<2x3x1x32xf32, #tpu.memory_space<vmem>>, vector<1x1x1x32xf32>
    %24 = vector.shape_cast %23 : vector<1x1x1x32xf32> to vector<1x32xf32>
    %25 = arith.addf %22, %24 : vector<1x32xf32>
    %26 = vector.shape_cast %25 : vector<1x32xf32> to vector<1x32xf32>
    %27 = vector.broadcast %26 : vector<1x32xf32> to vector<8x32xf32>
    %c0_33 = arith.constant 0 : index
    %c1_34 = arith.constant 1 : index
    %c0_35 = arith.constant 0 : index
    %c0_36 = arith.constant 0 : index
    %28 = vector.load %arg2[%c0_33, %c1_34, %c0_35, %c0_36] : memref<2x3x32x32xf32, #tpu.memory_space<vmem>>, vector<1x1x32x32xf32>
    %29 = vector.shape_cast %28 : vector<1x1x32x32xf32> to vector<32x32xf32>
    %cst_37 = arith.constant dense<0.000000e+00> : vector<1x32xf32>
    %30 = tpu.matmul %19, %29, %cst_37 {dimension_numbers = #tpu.dot_dimension_numbers<[1], [0], [0], [1], [0, 0, 1, 1], [], []>} : vector<1x32xf32>, vector<32x32xf32>, vector<1x32xf32> -> vector<1x32xf32>
    %c0_38 = arith.constant 0 : index
    %c1_39 = arith.constant 1 : index
    %c0_40 = arith.constant 0 : index
    %c0_41 = arith.constant 0 : index
    %31 = vector.load %arg4[%c0_38, %c1_39, %c0_40, %c0_41] : memref<2x3x1x32xf32, #tpu.memory_space<vmem>>, vector<1x1x1x32xf32>
    %32 = vector.shape_cast %31 : vector<1x1x1x32xf32> to vector<1x32xf32>
    %33 = arith.addf %30, %32 : vector<1x32xf32>
    %34 = vector.shape_cast %33 : vector<1x32xf32> to vector<1x32xf32>
    %35 = vector.broadcast %34 : vector<1x32xf32> to vector<8x32xf32>
    %c0_42 = arith.constant 0 : index
    %c2_43 = arith.constant 2 : index
    %c0_44 = arith.constant 0 : index
    %c0_45 = arith.constant 0 : index
    %36 = vector.load %arg2[%c0_42, %c2_43, %c0_44, %c0_45] : memref<2x3x32x32xf32, #tpu.memory_space<vmem>>, vector<1x1x32x32xf32>
    %37 = vector.shape_cast %36 : vector<1x1x32x32xf32> to vector<32x32xf32>
    %cst_46 = arith.constant dense<0.000000e+00> : vector<1x32xf32>
    %38 = tpu.matmul %19, %37, %cst_46 {dimension_numbers = #tpu.dot_dimension_numbers<[1], [0], [0], [1], [0, 0, 1, 1], [], []>} : vector<1x32xf32>, vector<32x32xf32>, vector<1x32xf32> -> vector<1x32xf32>
    %c0_47 = arith.constant 0 : index
    %c2_48 = arith.constant 2 : index
    %c0_49 = arith.constant 0 : index
    %c0_50 = arith.constant 0 : index
    %39 = vector.load %arg4[%c0_47, %c2_48, %c0_49, %c0_50] : memref<2x3x1x32xf32, #tpu.memory_space<vmem>>, vector<1x1x1x32xf32>
    %40 = vector.shape_cast %39 : vector<1x1x1x32xf32> to vector<1x32xf32>
    %41 = arith.addf %38, %40 : vector<1x32xf32>
    %42 = vector.shape_cast %41 : vector<1x32xf32> to vector<1x32xf32>
    %43 = vector.broadcast %42 : vector<1x32xf32> to vector<8x32xf32>
    %c0_i32 = arith.constant 0 : i32
    %c8_i32 = arith.constant 8 : i32
    %44 = arith.muli %c0_i32, %c8_i32 : i32
    %45 = tpu.assume_multiple %44, 8 : i32
    %cst_51 = arith.constant dense<0.000000e+00> : vector<8x32xf32>
    %46 = tpu.matmul %0, %2, %cst_51 {dimension_numbers = #tpu.dot_dimension_numbers<[1], [0], [0], [1], [0, 0, 1, 1], [], []>} : vector<8x32xf32>, vector<32x32xf32>, vector<8x32xf32> -> vector<8x32xf32>
    %47 = arith.addf %46, %10 : vector<8x32xf32>
    %cst_52 = arith.constant dense<0.000000e+00> : vector<8x32xf32>
    %48 = tpu.matmul %0, %4, %cst_52 {dimension_numbers = #tpu.dot_dimension_numbers<[1], [0], [0], [1], [0, 0, 1, 1], [], []>} : vector<8x32xf32>, vector<32x32xf32>, vector<8x32xf32> -> vector<8x32xf32>
    %49 = arith.addf %48, %14 : vector<8x32xf32>
    %cst_53 = arith.constant dense<0.000000e+00> : vector<8x32xf32>
    %50 = tpu.matmul %0, %6, %cst_53 {dimension_numbers = #tpu.dot_dimension_numbers<[1], [0], [0], [1], [0, 0, 1, 1], [], []>} : vector<8x32xf32>, vector<32x32xf32>, vector<8x32xf32> -> vector<8x32xf32>
    %51 = arith.addf %50, %18 : vector<8x32xf32>
    %52 = arith.addf %27, %47 : vector<8x32xf32>
    %53 = arith.negf %52 : vector<8x32xf32>
    %54 = math.exp %53 : vector<8x32xf32>
    %cst_54 = arith.constant 1.000000e+00 : f32
    %55 = vector.broadcast %cst_54 : f32 to vector<8x32xf32>
    %56 = arith.addf %55, %54 : vector<8x32xf32>
    %57 = arith.divf %55, %56 : vector<8x32xf32>
    %58 = arith.addf %35, %49 : vector<8x32xf32>
    %59 = arith.negf %58 : vector<8x32xf32>
    %60 = math.exp %59 : vector<8x32xf32>
    %cst_55 = arith.constant 1.000000e+00 : f32
    %61 = vector.broadcast %cst_55 : f32 to vector<8x32xf32>
    %62 = arith.addf %61, %60 : vector<8x32xf32>
    %63 = arith.divf %61, %62 : vector<8x32xf32>
    %64 = arith.mulf %57, %51 : vector<8x32xf32>
    %65 = arith.addf %43, %64 : vector<8x32xf32>
    %66 = math.tanh %65 : vector<8x32xf32>
    %cst_56 = arith.constant 1.000000e+00 : f32
    %67 = vector.broadcast %cst_56 : f32 to vector<8x32xf32>
    %68 = arith.subf %67, %63 : vector<8x32xf32>
    %69 = arith.mulf %68, %66 : vector<8x32xf32>
    %70 = arith.mulf %63, %0 : vector<8x32xf32>
    %71 = arith.addf %69, %70 : vector<8x32xf32>
    %72 = arith.index_cast %45 : i32 to index
    %c0_57 = arith.constant 0 : index
    %73 = vector.load %arg7[%72, %c0_57] : memref<64x32xf32, #tpu.memory_space<vmem>>, vector<8x32xf32>
    tpu.vector_store %arg7[%72, %c0_57], %71 {strides = array<i32>} : memref<64x32xf32, #tpu.memory_space<vmem>>, vector<8x32xf32>,
    %c1_i32 = arith.constant 1 : i32
    %c8_i32_58 = arith.constant 8 : i32
    %74 = arith.muli %c1_i32, %c8_i32_58 : i32
    %75 = tpu.assume_multiple %74, 8 : i32
    %cst_59 = arith.constant dense<0.000000e+00> : vector<8x32xf32>
    %76 = tpu.matmul %71, %2, %cst_59 {dimension_numbers = #tpu.dot_dimension_numbers<[1], [0], [0], [1], [0, 0, 1, 1], [], []>} : vector<8x32xf32>, vector<32x32xf32>, vector<8x32xf32> -> vector<8x32xf32>
    %77 = arith.addf %76, %10 : vector<8x32xf32>
    %cst_60 = arith.constant dense<0.000000e+00> : vector<8x32xf32>
    %78 = tpu.matmul %71, %4, %cst_60 {dimension_numbers = #tpu.dot_dimension_numbers<[1], [0], [0], [1], [0, 0, 1, 1], [], []>} : vector<8x32xf32>, vector<32x32xf32>, vector<8x32xf32> -> vector<8x32xf32>
    %79 = arith.addf %78, %14 : vector<8x32xf32>
    %cst_61 = arith.constant dense<0.000000e+00> : vector<8x32xf32>
    %80 = tpu.matmul %71, %6, %cst_61 {dimension_numbers = #tpu.dot_dimension_numbers<[1], [0], [0], [1], [0, 0, 1, 1], [], []>} : vector<8x32xf32>, vector<32x32xf32>, vector<8x32xf32> -> vector<8x32xf32>
    %81 = arith.addf %80, %18 : vector<8x32xf32>
    %82 = arith.addf %27, %77 : vector<8x32xf32>
    %83 = arith.negf %82 : vector<8x32xf32>
    %84 = math.exp %83 : vector<8x32xf32>
    %cst_62 = arith.constant 1.000000e+00 : f32
    %85 = vector.broadcast %cst_62 : f32 to vector<8x32xf32>
    %86 = arith.addf %85, %84 : vector<8x32xf32>
    %87 = arith.divf %85, %86 : vector<8x32xf32>
    %88 = arith.addf %35, %79 : vector<8x32xf32>
    %89 = arith.negf %88 : vector<8x32xf32>
    %90 = math.exp %89 : vector<8x32xf32>
    %cst_63 = arith.constant 1.000000e+00 : f32
    %91 = vector.broadcast %cst_63 : f32 to vector<8x32xf32>
    %92 = arith.addf %91, %90 : vector<8x32xf32>
    %93 = arith.divf %91, %92 : vector<8x32xf32>
    %94 = arith.mulf %87, %81 : vector<8x32xf32>
    %95 = arith.addf %43, %94 : vector<8x32xf32>
    %96 = math.tanh %95 : vector<8x32xf32>
    %cst_64 = arith.constant 1.000000e+00 : f32
    %97 = vector.broadcast %cst_64 : f32 to vector<8x32xf32>
    %98 = arith.subf %97, %93 : vector<8x32xf32>
    %99 = arith.mulf %98, %96 : vector<8x32xf32>
    %100 = arith.mulf %93, %71 : vector<8x32xf32>
    %101 = arith.addf %99, %100 : vector<8x32xf32>
    %102 = arith.index_cast %75 : i32 to index
    %c0_65 = arith.constant 0 : index
    %103 = vector.load %arg7[%102, %c0_65] : memref<64x32xf32, #tpu.memory_space<vmem>>, vector<8x32xf32>
    tpu.vector_store %arg7[%102, %c0_65], %101 {strides = array<i32>} : memref<64x32xf32, #tpu.memory_space<vmem>>, vector<8x32xf32>,
    %c2_i32 = arith.constant 2 : i32
    %c8_i32_66 = arith.constant 8 : i32
    %104 = arith.muli %c2_i32, %c8_i32_66 : i32
    %105 = tpu.assume_multiple %104, 8 : i32
    %cst_67 = arith.constant dense<0.000000e+00> : vector<8x32xf32>
    %106 = tpu.matmul %101, %2, %cst_67 {dimension_numbers = #tpu.dot_dimension_numbers<[1], [0], [0], [1], [0, 0, 1, 1], [], []>} : vector<8x32xf32>, vector<32x32xf32>, vector<8x32xf32> -> vector<8x32xf32>
    %107 = arith.addf %106, %10 : vector<8x32xf32>
    %cst_68 = arith.constant dense<0.000000e+00> : vector<8x32xf32>
    %108 = tpu.matmul %101, %4, %cst_68 {dimension_numbers = #tpu.dot_dimension_numbers<[1], [0], [0], [1], [0, 0, 1, 1], [], []>} : vector<8x32xf32>, vector<32x32xf32>, vector<8x32xf32> -> vector<8x32xf32>
    %109 = arith.addf %108, %14 : vector<8x32xf32>
    %cst_69 = arith.constant dense<0.000000e+00> : vector<8x32xf32>
    %110 = tpu.matmul %101, %6, %cst_69 {dimension_numbers = #tpu.dot_dimension_numbers<[1], [0], [0], [1], [0, 0, 1, 1], [], []>} : vector<8x32xf32>, vector<32x32xf32>, vector<8x32xf32> -> vector<8x32xf32>
    %111 = arith.addf %110, %18 : vector<8x32xf32>
    %112 = arith.addf %27, %107 : vector<8x32xf32>
    %113 = arith.negf %112 : vector<8x32xf32>
    %114 = math.exp %113 : vector<8x32xf32>
    %cst_70 = arith.constant 1.000000e+00 : f32
    %115 = vector.broadcast %cst_70 : f32 to vector<8x32xf32>
    %116 = arith.addf %115, %114 : vector<8x32xf32>
    %117 = arith.divf %115, %116 : vector<8x32xf32>
    %118 = arith.addf %35, %109 : vector<8x32xf32>
    %119 = arith.negf %118 : vector<8x32xf32>
    %120 = math.exp %119 : vector<8x32xf32>
    %cst_71 = arith.constant 1.000000e+00 : f32
    %121 = vector.broadcast %cst_71 : f32 to vector<8x32xf32>
    %122 = arith.addf %121, %120 : vector<8x32xf32>
    %123 = arith.divf %121, %122 : vector<8x32xf32>
    %124 = arith.mulf %117, %111 : vector<8x32xf32>
    %125 = arith.addf %43, %124 : vector<8x32xf32>
    %126 = math.tanh %125 : vector<8x32xf32>
    %cst_72 = arith.constant 1.000000e+00 : f32
    %127 = vector.broadcast %cst_72 : f32 to vector<8x32xf32>
    %128 = arith.subf %127, %123 : vector<8x32xf32>
    %129 = arith.mulf %128, %126 : vector<8x32xf32>
    %130 = arith.mulf %123, %101 : vector<8x32xf32>
    %131 = arith.addf %129, %130 : vector<8x32xf32>
    %132 = arith.index_cast %105 : i32 to index
    %c0_73 = arith.constant 0 : index
    %133 = vector.load %arg7[%132, %c0_73] : memref<64x32xf32, #tpu.memory_space<vmem>>, vector<8x32xf32>
    tpu.vector_store %arg7[%132, %c0_73], %131 {strides = array<i32>} : memref<64x32xf32, #tpu.memory_space<vmem>>, vector<8x32xf32>,
    %c3_i32 = arith.constant 3 : i32
    %c8_i32_74 = arith.constant 8 : i32
    %134 = arith.muli %c3_i32, %c8_i32_74 : i32
    %135 = tpu.assume_multiple %134, 8 : i32
    %cst_75 = arith.constant dense<0.000000e+00> : vector<8x32xf32>
    %136 = tpu.matmul %131, %2, %cst_75 {dimension_numbers = #tpu.dot_dimension_numbers<[1], [0], [0], [1], [0, 0, 1, 1], [], []>} : vector<8x32xf32>, vector<32x32xf32>, vector<8x32xf32> -> vector<8x32xf32>
    %137 = arith.addf %136, %10 : vector<8x32xf32>
    %cst_76 = arith.constant dense<0.000000e+00> : vector<8x32xf32>
    %138 = tpu.matmul %131, %4, %cst_76 {dimension_numbers = #tpu.dot_dimension_numbers<[1], [0], [0], [1], [0, 0, 1, 1], [], []>} : vector<8x32xf32>, vector<32x32xf32>, vector<8x32xf32> -> vector<8x32xf32>
    %139 = arith.addf %138, %14 : vector<8x32xf32>
    %cst_77 = arith.constant dense<0.000000e+00> : vector<8x32xf32>
    %140 = tpu.matmul %131, %6, %cst_77 {dimension_numbers = #tpu.dot_dimension_numbers<[1], [0], [0], [1], [0, 0, 1, 1], [], []>} : vector<8x32xf32>, vector<32x32xf32>, vector<8x32xf32> -> vector<8x32xf32>
    %141 = arith.addf %140, %18 : vector<8x32xf32>
    %142 = arith.addf %27, %137 : vector<8x32xf32>
    %143 = arith.negf %142 : vector<8x32xf32>
    %144 = math.exp %143 : vector<8x32xf32>
    %cst_78 = arith.constant 1.000000e+00 : f32
    %145 = vector.broadcast %cst_78 : f32 to vector<8x32xf32>
    %146 = arith.addf %145, %144 : vector<8x32xf32>
    %147 = arith.divf %145, %146 : vector<8x32xf32>
    %148 = arith.addf %35, %139 : vector<8x32xf32>
    %149 = arith.negf %148 : vector<8x32xf32>
    %150 = math.exp %149 : vector<8x32xf32>
    %cst_79 = arith.constant 1.000000e+00 : f32
    %151 = vector.broadcast %cst_79 : f32 to vector<8x32xf32>
    %152 = arith.addf %151, %150 : vector<8x32xf32>
    %153 = arith.divf %151, %152 : vector<8x32xf32>
    %154 = arith.mulf %147, %141 : vector<8x32xf32>
    %155 = arith.addf %43, %154 : vector<8x32xf32>
    %156 = math.tanh %155 : vector<8x32xf32>
    %cst_80 = arith.constant 1.000000e+00 : f32
    %157 = vector.broadcast %cst_80 : f32 to vector<8x32xf32>
    %158 = arith.subf %157, %153 : vector<8x32xf32>
    %159 = arith.mulf %158, %156 : vector<8x32xf32>
    %160 = arith.mulf %153, %131 : vector<8x32xf32>
    %161 = arith.addf %159, %160 : vector<8x32xf32>
    %162 = arith.index_cast %135 : i32 to index
    %c0_81 = arith.constant 0 : index
    %163 = vector.load %arg7[%162, %c0_81] : memref<64x32xf32, #tpu.memory_space<vmem>>, vector<8x32xf32>
    tpu.vector_store %arg7[%162, %c0_81], %161 {strides = array<i32>} : memref<64x32xf32, #tpu.memory_space<vmem>>, vector<8x32xf32>,
    %c4_i32 = arith.constant 4 : i32
    %c8_i32_82 = arith.constant 8 : i32
    %164 = arith.muli %c4_i32, %c8_i32_82 : i32
    %165 = tpu.assume_multiple %164, 8 : i32
    %cst_83 = arith.constant dense<0.000000e+00> : vector<8x32xf32>
    %166 = tpu.matmul %161, %2, %cst_83 {dimension_numbers = #tpu.dot_dimension_numbers<[1], [0], [0], [1], [0, 0, 1, 1], [], []>} : vector<8x32xf32>, vector<32x32xf32>, vector<8x32xf32> -> vector<8x32xf32>
    %167 = arith.addf %166, %10 : vector<8x32xf32>
    %cst_84 = arith.constant dense<0.000000e+00> : vector<8x32xf32>
    %168 = tpu.matmul %161, %4, %cst_84 {dimension_numbers = #tpu.dot_dimension_numbers<[1], [0], [0], [1], [0, 0, 1, 1], [], []>} : vector<8x32xf32>, vector<32x32xf32>, vector<8x32xf32> -> vector<8x32xf32>
    %169 = arith.addf %168, %14 : vector<8x32xf32>
    %cst_85 = arith.constant dense<0.000000e+00> : vector<8x32xf32>
    %170 = tpu.matmul %161, %6, %cst_85 {dimension_numbers = #tpu.dot_dimension_numbers<[1], [0], [0], [1], [0, 0, 1, 1], [], []>} : vector<8x32xf32>, vector<32x32xf32>, vector<8x32xf32> -> vector<8x32xf32>
    %171 = arith.addf %170, %18 : vector<8x32xf32>
    %172 = arith.addf %27, %167 : vector<8x32xf32>
    %173 = arith.negf %172 : vector<8x32xf32>
    %174 = math.exp %173 : vector<8x32xf32>
    %cst_86 = arith.constant 1.000000e+00 : f32
    %175 = vector.broadcast %cst_86 : f32 to vector<8x32xf32>
    %176 = arith.addf %175, %174 : vector<8x32xf32>
    %177 = arith.divf %175, %176 : vector<8x32xf32>
    %178 = arith.addf %35, %169 : vector<8x32xf32>
    %179 = arith.negf %178 : vector<8x32xf32>
    %180 = math.exp %179 : vector<8x32xf32>
    %cst_87 = arith.constant 1.000000e+00 : f32
    %181 = vector.broadcast %cst_87 : f32 to vector<8x32xf32>
    %182 = arith.addf %181, %180 : vector<8x32xf32>
    %183 = arith.divf %181, %182 : vector<8x32xf32>
    %184 = arith.mulf %177, %171 : vector<8x32xf32>
    %185 = arith.addf %43, %184 : vector<8x32xf32>
    %186 = math.tanh %185 : vector<8x32xf32>
    %cst_88 = arith.constant 1.000000e+00 : f32
    %187 = vector.broadcast %cst_88 : f32 to vector<8x32xf32>
    %188 = arith.subf %187, %183 : vector<8x32xf32>
    %189 = arith.mulf %188, %186 : vector<8x32xf32>
    %190 = arith.mulf %183, %161 : vector<8x32xf32>
    %191 = arith.addf %189, %190 : vector<8x32xf32>
    %192 = arith.index_cast %165 : i32 to index
    %c0_89 = arith.constant 0 : index
    %193 = vector.load %arg7[%192, %c0_89] : memref<64x32xf32, #tpu.memory_space<vmem>>, vector<8x32xf32>
    tpu.vector_store %arg7[%192, %c0_89], %191 {strides = array<i32>} : memref<64x32xf32, #tpu.memory_space<vmem>>, vector<8x32xf32>,
    %c5_i32 = arith.constant 5 : i32
    %c8_i32_90 = arith.constant 8 : i32
    %194 = arith.muli %c5_i32, %c8_i32_90 : i32
    %195 = tpu.assume_multiple %194, 8 : i32
    %cst_91 = arith.constant dense<0.000000e+00> : vector<8x32xf32>
    %196 = tpu.matmul %191, %2, %cst_91 {dimension_numbers = #tpu.dot_dimension_numbers<[1], [0], [0], [1], [0, 0, 1, 1], [], []>} : vector<8x32xf32>, vector<32x32xf32>, vector<8x32xf32> -> vector<8x32xf32>
    %197 = arith.addf %196, %10 : vector<8x32xf32>
    %cst_92 = arith.constant dense<0.000000e+00> : vector<8x32xf32>
    %198 = tpu.matmul %191, %4, %cst_92 {dimension_numbers = #tpu.dot_dimension_numbers<[1], [0], [0], [1], [0, 0, 1, 1], [], []>} : vector<8x32xf32>, vector<32x32xf32>, vector<8x32xf32> -> vector<8x32xf32>
    %199 = arith.addf %198, %14 : vector<8x32xf32>
    %cst_93 = arith.constant dense<0.000000e+00> : vector<8x32xf32>
    %200 = tpu.matmul %191, %6, %cst_93 {dimension_numbers = #tpu.dot_dimension_numbers<[1], [0], [0], [1], [0, 0, 1, 1], [], []>} : vector<8x32xf32>, vector<32x32xf32>, vector<8x32xf32> -> vector<8x32xf32>
    %201 = arith.addf %200, %18 : vector<8x32xf32>
    %202 = arith.addf %27, %197 : vector<8x32xf32>
    %203 = arith.negf %202 : vector<8x32xf32>
    %204 = math.exp %203 : vector<8x32xf32>
    %cst_94 = arith.constant 1.000000e+00 : f32
    %205 = vector.broadcast %cst_94 : f32 to vector<8x32xf32>
    %206 = arith.addf %205, %204 : vector<8x32xf32>
    %207 = arith.divf %205, %206 : vector<8x32xf32>
    %208 = arith.addf %35, %199 : vector<8x32xf32>
    %209 = arith.negf %208 : vector<8x32xf32>
    %210 = math.exp %209 : vector<8x32xf32>
    %cst_95 = arith.constant 1.000000e+00 : f32
    %211 = vector.broadcast %cst_95 : f32 to vector<8x32xf32>
    %212 = arith.addf %211, %210 : vector<8x32xf32>
    %213 = arith.divf %211, %212 : vector<8x32xf32>
    %214 = arith.mulf %207, %201 : vector<8x32xf32>
    %215 = arith.addf %43, %214 : vector<8x32xf32>
    %216 = math.tanh %215 : vector<8x32xf32>
    %cst_96 = arith.constant 1.000000e+00 : f32
    %217 = vector.broadcast %cst_96 : f32 to vector<8x32xf32>
    %218 = arith.subf %217, %213 : vector<8x32xf32>
    %219 = arith.mulf %218, %216 : vector<8x32xf32>
    %220 = arith.mulf %213, %191 : vector<8x32xf32>
    %221 = arith.addf %219, %220 : vector<8x32xf32>
    %222 = arith.index_cast %195 : i32 to index
    %c0_97 = arith.constant 0 : index
    %223 = vector.load %arg7[%222, %c0_97] : memref<64x32xf32, #tpu.memory_space<vmem>>, vector<8x32xf32>
    tpu.vector_store %arg7[%222, %c0_97], %221 {strides = array<i32>} : memref<64x32xf32, #tpu.memory_space<vmem>>, vector<8x32xf32>,
    %c6_i32 = arith.constant 6 : i32
    %c8_i32_98 = arith.constant 8 : i32
    %224 = arith.muli %c6_i32, %c8_i32_98 : i32
    %225 = tpu.assume_multiple %224, 8 : i32
    %cst_99 = arith.constant dense<0.000000e+00> : vector<8x32xf32>
    %226 = tpu.matmul %221, %2, %cst_99 {dimension_numbers = #tpu.dot_dimension_numbers<[1], [0], [0], [1], [0, 0, 1, 1], [], []>} : vector<8x32xf32>, vector<32x32xf32>, vector<8x32xf32> -> vector<8x32xf32>
    %227 = arith.addf %226, %10 : vector<8x32xf32>
    %cst_100 = arith.constant dense<0.000000e+00> : vector<8x32xf32>
    %228 = tpu.matmul %221, %4, %cst_100 {dimension_numbers = #tpu.dot_dimension_numbers<[1], [0], [0], [1], [0, 0, 1, 1], [], []>} : vector<8x32xf32>, vector<32x32xf32>, vector<8x32xf32> -> vector<8x32xf32>
    %229 = arith.addf %228, %14 : vector<8x32xf32>
    %cst_101 = arith.constant dense<0.000000e+00> : vector<8x32xf32>
    %230 = tpu.matmul %221, %6, %cst_101 {dimension_numbers = #tpu.dot_dimension_numbers<[1], [0], [0], [1], [0, 0, 1, 1], [], []>} : vector<8x32xf32>, vector<32x32xf32>, vector<8x32xf32> -> vector<8x32xf32>
    %231 = arith.addf %230, %18 : vector<8x32xf32>
    %232 = arith.addf %27, %227 : vector<8x32xf32>
    %233 = arith.negf %232 : vector<8x32xf32>
    %234 = math.exp %233 : vector<8x32xf32>
    %cst_102 = arith.constant 1.000000e+00 : f32
    %235 = vector.broadcast %cst_102 : f32 to vector<8x32xf32>
    %236 = arith.addf %235, %234 : vector<8x32xf32>
    %237 = arith.divf %235, %236 : vector<8x32xf32>
    %238 = arith.addf %35, %229 : vector<8x32xf32>
    %239 = arith.negf %238 : vector<8x32xf32>
    %240 = math.exp %239 : vector<8x32xf32>
    %cst_103 = arith.constant 1.000000e+00 : f32
    %241 = vector.broadcast %cst_103 : f32 to vector<8x32xf32>
    %242 = arith.addf %241, %240 : vector<8x32xf32>
    %243 = arith.divf %241, %242 : vector<8x32xf32>
    %244 = arith.mulf %237, %231 : vector<8x32xf32>
    %245 = arith.addf %43, %244 : vector<8x32xf32>
    %246 = math.tanh %245 : vector<8x32xf32>
    %cst_104 = arith.constant 1.000000e+00 : f32
    %247 = vector.broadcast %cst_104 : f32 to vector<8x32xf32>
    %248 = arith.subf %247, %243 : vector<8x32xf32>
    %249 = arith.mulf %248, %246 : vector<8x32xf32>
    %250 = arith.mulf %243, %221 : vector<8x32xf32>
    %251 = arith.addf %249, %250 : vector<8x32xf32>
    %252 = arith.index_cast %225 : i32 to index
    %c0_105 = arith.constant 0 : index
    %253 = vector.load %arg7[%252, %c0_105] : memref<64x32xf32, #tpu.memory_space<vmem>>, vector<8x32xf32>
    tpu.vector_store %arg7[%252, %c0_105], %251 {strides = array<i32>} : memref<64x32xf32, #tpu.memory_space<vmem>>, vector<8x32xf32>,
    %c7_i32 = arith.constant 7 : i32
    %c8_i32_106 = arith.constant 8 : i32
    %254 = arith.muli %c7_i32, %c8_i32_106 : i32
    %255 = tpu.assume_multiple %254, 8 : i32
    %cst_107 = arith.constant dense<0.000000e+00> : vector<8x32xf32>
    %256 = tpu.matmul %251, %2, %cst_107 {dimension_numbers = #tpu.dot_dimension_numbers<[1], [0], [0], [1], [0, 0, 1, 1], [], []>} : vector<8x32xf32>, vector<32x32xf32>, vector<8x32xf32> -> vector<8x32xf32>
    %257 = arith.addf %256, %10 : vector<8x32xf32>
    %cst_108 = arith.constant dense<0.000000e+00> : vector<8x32xf32>
    %258 = tpu.matmul %251, %4, %cst_108 {dimension_numbers = #tpu.dot_dimension_numbers<[1], [0], [0], [1], [0, 0, 1, 1], [], []>} : vector<8x32xf32>, vector<32x32xf32>, vector<8x32xf32> -> vector<8x32xf32>
    %259 = arith.addf %258, %14 : vector<8x32xf32>
    %cst_109 = arith.constant dense<0.000000e+00> : vector<8x32xf32>
    %260 = tpu.matmul %251, %6, %cst_109 {dimension_numbers = #tpu.dot_dimension_numbers<[1], [0], [0], [1], [0, 0, 1, 1], [], []>} : vector<8x32xf32>, vector<32x32xf32>, vector<8x32xf32> -> vector<8x32xf32>
    %261 = arith.addf %260, %18 : vector<8x32xf32>
    %262 = arith.addf %27, %257 : vector<8x32xf32>
    %263 = arith.negf %262 : vector<8x32xf32>
    %264 = math.exp %263 : vector<8x32xf32>
    %cst_110 = arith.constant 1.000000e+00 : f32
    %265 = vector.broadcast %cst_110 : f32 to vector<8x32xf32>
    %266 = arith.addf %265, %264 : vector<8x32xf32>
    %267 = arith.divf %265, %266 : vector<8x32xf32>
    %268 = arith.addf %35, %259 : vector<8x32xf32>
    %269 = arith.negf %268 : vector<8x32xf32>
    %270 = math.exp %269 : vector<8x32xf32>
    %cst_111 = arith.constant 1.000000e+00 : f32
    %271 = vector.broadcast %cst_111 : f32 to vector<8x32xf32>
    %272 = arith.addf %271, %270 : vector<8x32xf32>
    %273 = arith.divf %271, %272 : vector<8x32xf32>
    %274 = arith.mulf %267, %261 : vector<8x32xf32>
    %275 = arith.addf %43, %274 : vector<8x32xf32>
    %276 = math.tanh %275 : vector<8x32xf32>
    %cst_112 = arith.constant 1.000000e+00 : f32
    %277 = vector.broadcast %cst_112 : f32 to vector<8x32xf32>
    %278 = arith.subf %277, %273 : vector<8x32xf32>
    %279 = arith.mulf %278, %276 : vector<8x32xf32>
    %280 = arith.mulf %273, %251 : vector<8x32xf32>
    %281 = arith.addf %279, %280 : vector<8x32xf32>
    %282 = arith.index_cast %255 : i32 to index
    %c0_113 = arith.constant 0 : index
    %283 = vector.load %arg7[%282, %c0_113] : memref<64x32xf32, #tpu.memory_space<vmem>>, vector<8x32xf32>
    tpu.vector_store %arg7[%282, %c0_113], %281 {strides = array<i32>} : memref<64x32xf32, #tpu.memory_space<vmem>>, vector<8x32xf32>,
    %c8_i32_114 = arith.constant 8 : i32
    %c1_115 = arith.constant 1 : index
    %c0_116 = arith.constant 0 : index
    %c0_117 = arith.constant 0 : index
    %c0_118 = arith.constant 0 : index
    %284 = vector.load %arg3[%c1_115, %c0_116, %c0_117, %c0_118] : memref<2x3x32x32xf32, #tpu.memory_space<vmem>>, vector<1x1x32x32xf32>
    %285 = vector.shape_cast %284 : vector<1x1x32x32xf32> to vector<32x32xf32>
    %c1_119 = arith.constant 1 : index
    %c1_120 = arith.constant 1 : index
    %c0_121 = arith.constant 0 : index
    %c0_122 = arith.constant 0 : index
    %286 = vector.load %arg3[%c1_119, %c1_120, %c0_121, %c0_122] : memref<2x3x32x32xf32, #tpu.memory_space<vmem>>, vector<1x1x32x32xf32>
    %287 = vector.shape_cast %286 : vector<1x1x32x32xf32> to vector<32x32xf32>
    %c1_123 = arith.constant 1 : index
    %c2_124 = arith.constant 2 : index
    %c0_125 = arith.constant 0 : index
    %c0_126 = arith.constant 0 : index
    %288 = vector.load %arg3[%c1_123, %c2_124, %c0_125, %c0_126] : memref<2x3x32x32xf32, #tpu.memory_space<vmem>>, vector<1x1x32x32xf32>
    %289 = vector.shape_cast %288 : vector<1x1x32x32xf32> to vector<32x32xf32>
    %c1_127 = arith.constant 1 : index
    %c0_128 = arith.constant 0 : index
    %c0_129 = arith.constant 0 : index
    %c0_130 = arith.constant 0 : index
    %290 = vector.load %arg5[%c1_127, %c0_128, %c0_129, %c0_130] : memref<2x3x1x32xf32, #tpu.memory_space<vmem>>, vector<1x1x1x32xf32>
    %291 = vector.shape_cast %290 : vector<1x1x1x32xf32> to vector<1x32xf32>
    %292 = vector.shape_cast %291 : vector<1x32xf32> to vector<1x32xf32>
    %293 = vector.broadcast %292 : vector<1x32xf32> to vector<8x32xf32>
    %c1_131 = arith.constant 1 : index
    %c1_132 = arith.constant 1 : index
    %c0_133 = arith.constant 0 : index
    %c0_134 = arith.constant 0 : index
    %294 = vector.load %arg5[%c1_131, %c1_132, %c0_133, %c0_134] : memref<2x3x1x32xf32, #tpu.memory_space<vmem>>, vector<1x1x1x32xf32>
    %295 = vector.shape_cast %294 : vector<1x1x1x32xf32> to vector<1x32xf32>
    %296 = vector.shape_cast %295 : vector<1x32xf32> to vector<1x32xf32>
    %297 = vector.broadcast %296 : vector<1x32xf32> to vector<8x32xf32>
    %c1_135 = arith.constant 1 : index
    %c2_136 = arith.constant 2 : index
    %c0_137 = arith.constant 0 : index
    %c0_138 = arith.constant 0 : index
    %298 = vector.load %arg5[%c1_135, %c2_136, %c0_137, %c0_138] : memref<2x3x1x32xf32, #tpu.memory_space<vmem>>, vector<1x1x1x32xf32>
    %299 = vector.shape_cast %298 : vector<1x1x1x32xf32> to vector<1x32xf32>
    %300 = vector.shape_cast %299 : vector<1x32xf32> to vector<1x32xf32>
    %301 = vector.broadcast %300 : vector<1x32xf32> to vector<8x32xf32>
    %c0_139 = arith.constant 0 : index
    %c0_140 = arith.constant 0 : index
    %302 = vector.load %arg7[%c0_139, %c0_140] : memref<64x32xf32, #tpu.memory_space<vmem>>, vector<64x32xf32>
    %c1_141 = arith.constant 1 : index
    %c0_142 = arith.constant 0 : index
    %c0_143 = arith.constant 0 : index
    %c0_144 = arith.constant 0 : index
    %303 = vector.load %arg2[%c1_141, %c0_142, %c0_143, %c0_144] : memref<2x3x32x32xf32, #tpu.memory_space<vmem>>, vector<1x1x32x32xf32>
    %304 = vector.shape_cast %303 : vector<1x1x32x32xf32> to vector<32x32xf32>
    %cst_145 = arith.constant dense<0.000000e+00> : vector<64x32xf32>
    %305 = tpu.matmul %302, %304, %cst_145 {dimension_numbers = #tpu.dot_dimension_numbers<[1], [0], [0], [1], [0, 0, 1, 1], [], []>} : vector<64x32xf32>, vector<32x32xf32>, vector<64x32xf32> -> vector<64x32xf32>
    %c1_146 = arith.constant 1 : index
    %c0_147 = arith.constant 0 : index
    %c0_148 = arith.constant 0 : index
    %c0_149 = arith.constant 0 : index
    %306 = vector.load %arg4[%c1_146, %c0_147, %c0_148, %c0_149] : memref<2x3x1x32xf32, #tpu.memory_space<vmem>>, vector<1x1x1x32xf32>
    %307 = vector.shape_cast %306 : vector<1x1x1x32xf32> to vector<1x32xf32>
    %308 = vector.broadcast %307 : vector<1x32xf32> to vector<64x32xf32>
    %309 = arith.addf %305, %308 : vector<64x32xf32>
    %c0_150 = arith.constant 0 : index
    %c0_151 = arith.constant 0 : index
    %310 = vector.load %arg8[%c0_150, %c0_151] : memref<64x32xf32, #tpu.memory_space<vmem>>, vector<64x32xf32>
    tpu.vector_store %arg8[%c0_150, %c0_151], %309 {strides = array<i32>} : memref<64x32xf32, #tpu.memory_space<vmem>>, vector<64x32xf32>,
    %c1_152 = arith.constant 1 : index
    %c1_153 = arith.constant 1 : index
    %c0_154 = arith.constant 0 : index
    %c0_155 = arith.constant 0 : index
    %311 = vector.load %arg2[%c1_152, %c1_153, %c0_154, %c0_155] : memref<2x3x32x32xf32, #tpu.memory_space<vmem>>, vector<1x1x32x32xf32>
    %312 = vector.shape_cast %311 : vector<1x1x32x32xf32> to vector<32x32xf32>
    %cst_156 = arith.constant dense<0.000000e+00> : vector<64x32xf32>
    %313 = tpu.matmul %302, %312, %cst_156 {dimension_numbers = #tpu.dot_dimension_numbers<[1], [0], [0], [1], [0, 0, 1, 1], [], []>} : vector<64x32xf32>, vector<32x32xf32>, vector<64x32xf32> -> vector<64x32xf32>
    %c1_157 = arith.constant 1 : index
    %c1_158 = arith.constant 1 : index
    %c0_159 = arith.constant 0 : index
    %c0_160 = arith.constant 0 : index
    %314 = vector.load %arg4[%c1_157, %c1_158, %c0_159, %c0_160] : memref<2x3x1x32xf32, #tpu.memory_space<vmem>>, vector<1x1x1x32xf32>
    %315 = vector.shape_cast %314 : vector<1x1x1x32xf32> to vector<1x32xf32>
    %316 = vector.broadcast %315 : vector<1x32xf32> to vector<64x32xf32>
    %317 = arith.addf %313, %316 : vector<64x32xf32>
    %c0_161 = arith.constant 0 : index
    %c0_162 = arith.constant 0 : index
    %318 = vector.load %arg9[%c0_161, %c0_162] : memref<64x32xf32, #tpu.memory_space<vmem>>, vector<64x32xf32>
    tpu.vector_store %arg9[%c0_161, %c0_162], %317 {strides = array<i32>} : memref<64x32xf32, #tpu.memory_space<vmem>>, vector<64x32xf32>,
    %c1_163 = arith.constant 1 : index
    %c2_164 = arith.constant 2 : index
    %c0_165 = arith.constant 0 : index
    %c0_166 = arith.constant 0 : index
    %319 = vector.load %arg2[%c1_163, %c2_164, %c0_165, %c0_166] : memref<2x3x32x32xf32, #tpu.memory_space<vmem>>, vector<1x1x32x32xf32>
    %320 = vector.shape_cast %319 : vector<1x1x32x32xf32> to vector<32x32xf32>
    %cst_167 = arith.constant dense<0.000000e+00> : vector<64x32xf32>
    %321 = tpu.matmul %302, %320, %cst_167 {dimension_numbers = #tpu.dot_dimension_numbers<[1], [0], [0], [1], [0, 0, 1, 1], [], []>} : vector<64x32xf32>, vector<32x32xf32>, vector<64x32xf32> -> vector<64x32xf32>
    %c1_168 = arith.constant 1 : index
    %c2_169 = arith.constant 2 : index
    %c0_170 = arith.constant 0 : index
    %c0_171 = arith.constant 0 : index
    %322 = vector.load %arg4[%c1_168, %c2_169, %c0_170, %c0_171] : memref<2x3x1x32xf32, #tpu.memory_space<vmem>>, vector<1x1x1x32xf32>
    %323 = vector.shape_cast %322 : vector<1x1x1x32xf32> to vector<1x32xf32>
    %324 = vector.broadcast %323 : vector<1x32xf32> to vector<64x32xf32>
    %325 = arith.addf %321, %324 : vector<64x32xf32>
    %c0_172 = arith.constant 0 : index
    %c0_173 = arith.constant 0 : index
    %326 = vector.load %arg10[%c0_172, %c0_173] : memref<64x32xf32, #tpu.memory_space<vmem>>, vector<64x32xf32>
    tpu.vector_store %arg10[%c0_172, %c0_173], %325 {strides = array<i32>} : memref<64x32xf32, #tpu.memory_space<vmem>>, vector<64x32xf32>,
    %c0_i32_174 = arith.constant 0 : i32
    %c8_i32_175 = arith.constant 8 : i32
    %327 = arith.muli %c0_i32_174, %c8_i32_175 : i32
    %328 = tpu.assume_multiple %327, 8 : i32
    %329 = arith.index_cast %328 : i32 to index
    %c0_176 = arith.constant 0 : index
    %330 = vector.load %arg8[%329, %c0_176] : memref<64x32xf32, #tpu.memory_space<vmem>>, vector<8x32xf32>
    %331 = arith.index_cast %328 : i32 to index
    %c0_177 = arith.constant 0 : index
    %332 = vector.load %arg9[%331, %c0_177] : memref<64x32xf32, #tpu.memory_space<vmem>>, vector<8x32xf32>
    %333 = arith.index_cast %328 : i32 to index
    %c0_178 = arith.constant 0 : index
    %334 = vector.load %arg10[%333, %c0_178] : memref<64x32xf32, #tpu.memory_space<vmem>>, vector<8x32xf32>
    %cst_179 = arith.constant dense<0.000000e+00> : vector<8x32xf32>
    %335 = tpu.matmul %0, %285, %cst_179 {dimension_numbers = #tpu.dot_dimension_numbers<[1], [0], [0], [1], [0, 0, 1, 1], [], []>} : vector<8x32xf32>, vector<32x32xf32>, vector<8x32xf32> -> vector<8x32xf32>
    %336 = arith.addf %335, %293 : vector<8x32xf32>
    %cst_180 = arith.constant dense<0.000000e+00> : vector<8x32xf32>
    %337 = tpu.matmul %0, %287, %cst_180 {dimension_numbers = #tpu.dot_dimension_numbers<[1], [0], [0], [1], [0, 0, 1, 1], [], []>} : vector<8x32xf32>, vector<32x32xf32>, vector<8x32xf32> -> vector<8x32xf32>
    %338 = arith.addf %337, %297 : vector<8x32xf32>
    %cst_181 = arith.constant dense<0.000000e+00> : vector<8x32xf32>
    %339 = tpu.matmul %0, %289, %cst_181 {dimension_numbers = #tpu.dot_dimension_numbers<[1], [0], [0], [1], [0, 0, 1, 1], [], []>} : vector<8x32xf32>, vector<32x32xf32>, vector<8x32xf32> -> vector<8x32xf32>
    %340 = arith.addf %339, %301 : vector<8x32xf32>
    %341 = arith.addf %330, %336 : vector<8x32xf32>
    %342 = arith.negf %341 : vector<8x32xf32>
    %343 = math.exp %342 : vector<8x32xf32>
    %cst_182 = arith.constant 1.000000e+00 : f32
    %344 = vector.broadcast %cst_182 : f32 to vector<8x32xf32>
    %345 = arith.addf %344, %343 : vector<8x32xf32>
    %346 = arith.divf %344, %345 : vector<8x32xf32>
    %347 = arith.addf %332, %338 : vector<8x32xf32>
    %348 = arith.negf %347 : vector<8x32xf32>
    %349 = math.exp %348 : vector<8x32xf32>
    %cst_183 = arith.constant 1.000000e+00 : f32
    %350 = vector.broadcast %cst_183 : f32 to vector<8x32xf32>
    %351 = arith.addf %350, %349 : vector<8x32xf32>
    %352 = arith.divf %350, %351 : vector<8x32xf32>
    %353 = arith.mulf %346, %340 : vector<8x32xf32>
    %354 = arith.addf %334, %353 : vector<8x32xf32>
    %355 = math.tanh %354 : vector<8x32xf32>
    %cst_184 = arith.constant 1.000000e+00 : f32
    %356 = vector.broadcast %cst_184 : f32 to vector<8x32xf32>
    %357 = arith.subf %356, %352 : vector<8x32xf32>
    %358 = arith.mulf %357, %355 : vector<8x32xf32>
    %359 = arith.mulf %352, %0 : vector<8x32xf32>
    %360 = arith.addf %358, %359 : vector<8x32xf32>
    %361 = arith.index_cast %328 : i32 to index
    %c0_185 = arith.constant 0 : index
    %362 = vector.load %arg6[%361, %c0_185] : memref<64x32xf32, #tpu.memory_space<vmem>>, vector<8x32xf32>
    tpu.vector_store %arg6[%361, %c0_185], %360 {strides = array<i32>} : memref<64x32xf32, #tpu.memory_space<vmem>>, vector<8x32xf32>,
    %c1_i32_186 = arith.constant 1 : i32
    %c8_i32_187 = arith.constant 8 : i32
    %363 = arith.muli %c1_i32_186, %c8_i32_187 : i32
    %364 = tpu.assume_multiple %363, 8 : i32
    %365 = arith.index_cast %364 : i32 to index
    %c0_188 = arith.constant 0 : index
    %366 = vector.load %arg8[%365, %c0_188] : memref<64x32xf32, #tpu.memory_space<vmem>>, vector<8x32xf32>
    %367 = arith.index_cast %364 : i32 to index
    %c0_189 = arith.constant 0 : index
    %368 = vector.load %arg9[%367, %c0_189] : memref<64x32xf32, #tpu.memory_space<vmem>>, vector<8x32xf32>
    %369 = arith.index_cast %364 : i32 to index
    %c0_190 = arith.constant 0 : index
    %370 = vector.load %arg10[%369, %c0_190] : memref<64x32xf32, #tpu.memory_space<vmem>>, vector<8x32xf32>
    %cst_191 = arith.constant dense<0.000000e+00> : vector<8x32xf32>
    %371 = tpu.matmul %360, %285, %cst_191 {dimension_numbers = #tpu.dot_dimension_numbers<[1], [0], [0], [1], [0, 0, 1, 1], [], []>} : vector<8x32xf32>, vector<32x32xf32>, vector<8x32xf32> -> vector<8x32xf32>
    %372 = arith.addf %371, %293 : vector<8x32xf32>
    %cst_192 = arith.constant dense<0.000000e+00> : vector<8x32xf32>
    %373 = tpu.matmul %360, %287, %cst_192 {dimension_numbers = #tpu.dot_dimension_numbers<[1], [0], [0], [1], [0, 0, 1, 1], [], []>} : vector<8x32xf32>, vector<32x32xf32>, vector<8x32xf32> -> vector<8x32xf32>
    %374 = arith.addf %373, %297 : vector<8x32xf32>
    %cst_193 = arith.constant dense<0.000000e+00> : vector<8x32xf32>
    %375 = tpu.matmul %360, %289, %cst_193 {dimension_numbers = #tpu.dot_dimension_numbers<[1], [0], [0], [1], [0, 0, 1, 1], [], []>} : vector<8x32xf32>, vector<32x32xf32>, vector<8x32xf32> -> vector<8x32xf32>
    %376 = arith.addf %375, %301 : vector<8x32xf32>
    %377 = arith.addf %366, %372 : vector<8x32xf32>
    %378 = arith.negf %377 : vector<8x32xf32>
    %379 = math.exp %378 : vector<8x32xf32>
    %cst_194 = arith.constant 1.000000e+00 : f32
    %380 = vector.broadcast %cst_194 : f32 to vector<8x32xf32>
    %381 = arith.addf %380, %379 : vector<8x32xf32>
    %382 = arith.divf %380, %381 : vector<8x32xf32>
    %383 = arith.addf %368, %374 : vector<8x32xf32>
    %384 = arith.negf %383 : vector<8x32xf32>
    %385 = math.exp %384 : vector<8x32xf32>
    %cst_195 = arith.constant 1.000000e+00 : f32
    %386 = vector.broadcast %cst_195 : f32 to vector<8x32xf32>
    %387 = arith.addf %386, %385 : vector<8x32xf32>
    %388 = arith.divf %386, %387 : vector<8x32xf32>
    %389 = arith.mulf %382, %376 : vector<8x32xf32>
    %390 = arith.addf %370, %389 : vector<8x32xf32>
    %391 = math.tanh %390 : vector<8x32xf32>
    %cst_196 = arith.constant 1.000000e+00 : f32
    %392 = vector.broadcast %cst_196 : f32 to vector<8x32xf32>
    %393 = arith.subf %392, %388 : vector<8x32xf32>
    %394 = arith.mulf %393, %391 : vector<8x32xf32>
    %395 = arith.mulf %388, %360 : vector<8x32xf32>
    %396 = arith.addf %394, %395 : vector<8x32xf32>
    %397 = arith.index_cast %364 : i32 to index
    %c0_197 = arith.constant 0 : index
    %398 = vector.load %arg6[%397, %c0_197] : memref<64x32xf32, #tpu.memory_space<vmem>>, vector<8x32xf32>
    tpu.vector_store %arg6[%397, %c0_197], %396 {strides = array<i32>} : memref<64x32xf32, #tpu.memory_space<vmem>>, vector<8x32xf32>,
    %c2_i32_198 = arith.constant 2 : i32
    %c8_i32_199 = arith.constant 8 : i32
    %399 = arith.muli %c2_i32_198, %c8_i32_199 : i32
    %400 = tpu.assume_multiple %399, 8 : i32
    %401 = arith.index_cast %400 : i32 to index
    %c0_200 = arith.constant 0 : index
    %402 = vector.load %arg8[%401, %c0_200] : memref<64x32xf32, #tpu.memory_space<vmem>>, vector<8x32xf32>
    %403 = arith.index_cast %400 : i32 to index
    %c0_201 = arith.constant 0 : index
    %404 = vector.load %arg9[%403, %c0_201] : memref<64x32xf32, #tpu.memory_space<vmem>>, vector<8x32xf32>
    %405 = arith.index_cast %400 : i32 to index
    %c0_202 = arith.constant 0 : index
    %406 = vector.load %arg10[%405, %c0_202] : memref<64x32xf32, #tpu.memory_space<vmem>>, vector<8x32xf32>
    %cst_203 = arith.constant dense<0.000000e+00> : vector<8x32xf32>
    %407 = tpu.matmul %396, %285, %cst_203 {dimension_numbers = #tpu.dot_dimension_numbers<[1], [0], [0], [1], [0, 0, 1, 1], [], []>} : vector<8x32xf32>, vector<32x32xf32>, vector<8x32xf32> -> vector<8x32xf32>
    %408 = arith.addf %407, %293 : vector<8x32xf32>
    %cst_204 = arith.constant dense<0.000000e+00> : vector<8x32xf32>
    %409 = tpu.matmul %396, %287, %cst_204 {dimension_numbers = #tpu.dot_dimension_numbers<[1], [0], [0], [1], [0, 0, 1, 1], [], []>} : vector<8x32xf32>, vector<32x32xf32>, vector<8x32xf32> -> vector<8x32xf32>
    %410 = arith.addf %409, %297 : vector<8x32xf32>
    %cst_205 = arith.constant dense<0.000000e+00> : vector<8x32xf32>
    %411 = tpu.matmul %396, %289, %cst_205 {dimension_numbers = #tpu.dot_dimension_numbers<[1], [0], [0], [1], [0, 0, 1, 1], [], []>} : vector<8x32xf32>, vector<32x32xf32>, vector<8x32xf32> -> vector<8x32xf32>
    %412 = arith.addf %411, %301 : vector<8x32xf32>
    %413 = arith.addf %402, %408 : vector<8x32xf32>
    %414 = arith.negf %413 : vector<8x32xf32>
    %415 = math.exp %414 : vector<8x32xf32>
    %cst_206 = arith.constant 1.000000e+00 : f32
    %416 = vector.broadcast %cst_206 : f32 to vector<8x32xf32>
    %417 = arith.addf %416, %415 : vector<8x32xf32>
    %418 = arith.divf %416, %417 : vector<8x32xf32>
    %419 = arith.addf %404, %410 : vector<8x32xf32>
    %420 = arith.negf %419 : vector<8x32xf32>
    %421 = math.exp %420 : vector<8x32xf32>
    %cst_207 = arith.constant 1.000000e+00 : f32
    %422 = vector.broadcast %cst_207 : f32 to vector<8x32xf32>
    %423 = arith.addf %422, %421 : vector<8x32xf32>
    %424 = arith.divf %422, %423 : vector<8x32xf32>
    %425 = arith.mulf %418, %412 : vector<8x32xf32>
    %426 = arith.addf %406, %425 : vector<8x32xf32>
    %427 = math.tanh %426 : vector<8x32xf32>
    %cst_208 = arith.constant 1.000000e+00 : f32
    %428 = vector.broadcast %cst_208 : f32 to vector<8x32xf32>
    %429 = arith.subf %428, %424 : vector<8x32xf32>
    %430 = arith.mulf %429, %427 : vector<8x32xf32>
    %431 = arith.mulf %424, %396 : vector<8x32xf32>
    %432 = arith.addf %430, %431 : vector<8x32xf32>
    %433 = arith.index_cast %400 : i32 to index
    %c0_209 = arith.constant 0 : index
    %434 = vector.load %arg6[%433, %c0_209] : memref<64x32xf32, #tpu.memory_space<vmem>>, vector<8x32xf32>
    tpu.vector_store %arg6[%433, %c0_209], %432 {strides = array<i32>} : memref<64x32xf32, #tpu.memory_space<vmem>>, vector<8x32xf32>,
    %c3_i32_210 = arith.constant 3 : i32
    %c8_i32_211 = arith.constant 8 : i32
    %435 = arith.muli %c3_i32_210, %c8_i32_211 : i32
    %436 = tpu.assume_multiple %435, 8 : i32
    %437 = arith.index_cast %436 : i32 to index
    %c0_212 = arith.constant 0 : index
    %438 = vector.load %arg8[%437, %c0_212] : memref<64x32xf32, #tpu.memory_space<vmem>>, vector<8x32xf32>
    %439 = arith.index_cast %436 : i32 to index
    %c0_213 = arith.constant 0 : index
    %440 = vector.load %arg9[%439, %c0_213] : memref<64x32xf32, #tpu.memory_space<vmem>>, vector<8x32xf32>
    %441 = arith.index_cast %436 : i32 to index
    %c0_214 = arith.constant 0 : index
    %442 = vector.load %arg10[%441, %c0_214] : memref<64x32xf32, #tpu.memory_space<vmem>>, vector<8x32xf32>
    %cst_215 = arith.constant dense<0.000000e+00> : vector<8x32xf32>
    %443 = tpu.matmul %432, %285, %cst_215 {dimension_numbers = #tpu.dot_dimension_numbers<[1], [0], [0], [1], [0, 0, 1, 1], [], []>} : vector<8x32xf32>, vector<32x32xf32>, vector<8x32xf32> -> vector<8x32xf32>
    %444 = arith.addf %443, %293 : vector<8x32xf32>
    %cst_216 = arith.constant dense<0.000000e+00> : vector<8x32xf32>
    %445 = tpu.matmul %432, %287, %cst_216 {dimension_numbers = #tpu.dot_dimension_numbers<[1], [0], [0], [1], [0, 0, 1, 1], [], []>} : vector<8x32xf32>, vector<32x32xf32>, vector<8x32xf32> -> vector<8x32xf32>
    %446 = arith.addf %445, %297 : vector<8x32xf32>
    %cst_217 = arith.constant dense<0.000000e+00> : vector<8x32xf32>
    %447 = tpu.matmul %432, %289, %cst_217 {dimension_numbers = #tpu.dot_dimension_numbers<[1], [0], [0], [1], [0, 0, 1, 1], [], []>} : vector<8x32xf32>, vector<32x32xf32>, vector<8x32xf32> -> vector<8x32xf32>
    %448 = arith.addf %447, %301 : vector<8x32xf32>
    %449 = arith.addf %438, %444 : vector<8x32xf32>
    %450 = arith.negf %449 : vector<8x32xf32>
    %451 = math.exp %450 : vector<8x32xf32>
    %cst_218 = arith.constant 1.000000e+00 : f32
    %452 = vector.broadcast %cst_218 : f32 to vector<8x32xf32>
    %453 = arith.addf %452, %451 : vector<8x32xf32>
    %454 = arith.divf %452, %453 : vector<8x32xf32>
    %455 = arith.addf %440, %446 : vector<8x32xf32>
    %456 = arith.negf %455 : vector<8x32xf32>
    %457 = math.exp %456 : vector<8x32xf32>
    %cst_219 = arith.constant 1.000000e+00 : f32
    %458 = vector.broadcast %cst_219 : f32 to vector<8x32xf32>
    %459 = arith.addf %458, %457 : vector<8x32xf32>
    %460 = arith.divf %458, %459 : vector<8x32xf32>
    %461 = arith.mulf %454, %448 : vector<8x32xf32>
    %462 = arith.addf %442, %461 : vector<8x32xf32>
    %463 = math.tanh %462 : vector<8x32xf32>
    %cst_220 = arith.constant 1.000000e+00 : f32
    %464 = vector.broadcast %cst_220 : f32 to vector<8x32xf32>
    %465 = arith.subf %464, %460 : vector<8x32xf32>
    %466 = arith.mulf %465, %463 : vector<8x32xf32>
    %467 = arith.mulf %460, %432 : vector<8x32xf32>
    %468 = arith.addf %466, %467 : vector<8x32xf32>
    %469 = arith.index_cast %436 : i32 to index
    %c0_221 = arith.constant 0 : index
    %470 = vector.load %arg6[%469, %c0_221] : memref<64x32xf32, #tpu.memory_space<vmem>>, vector<8x32xf32>
    tpu.vector_store %arg6[%469, %c0_221], %468 {strides = array<i32>} : memref<64x32xf32, #tpu.memory_space<vmem>>, vector<8x32xf32>,
    %c4_i32_222 = arith.constant 4 : i32
    %c8_i32_223 = arith.constant 8 : i32
    %471 = arith.muli %c4_i32_222, %c8_i32_223 : i32
    %472 = tpu.assume_multiple %471, 8 : i32
    %473 = arith.index_cast %472 : i32 to index
    %c0_224 = arith.constant 0 : index
    %474 = vector.load %arg8[%473, %c0_224] : memref<64x32xf32, #tpu.memory_space<vmem>>, vector<8x32xf32>
    %475 = arith.index_cast %472 : i32 to index
    %c0_225 = arith.constant 0 : index
    %476 = vector.load %arg9[%475, %c0_225] : memref<64x32xf32, #tpu.memory_space<vmem>>, vector<8x32xf32>
    %477 = arith.index_cast %472 : i32 to index
    %c0_226 = arith.constant 0 : index
    %478 = vector.load %arg10[%477, %c0_226] : memref<64x32xf32, #tpu.memory_space<vmem>>, vector<8x32xf32>
    %cst_227 = arith.constant dense<0.000000e+00> : vector<8x32xf32>
    %479 = tpu.matmul %468, %285, %cst_227 {dimension_numbers = #tpu.dot_dimension_numbers<[1], [0], [0], [1], [0, 0, 1, 1], [], []>} : vector<8x32xf32>, vector<32x32xf32>, vector<8x32xf32> -> vector<8x32xf32>
    %480 = arith.addf %479, %293 : vector<8x32xf32>
    %cst_228 = arith.constant dense<0.000000e+00> : vector<8x32xf32>
    %481 = tpu.matmul %468, %287, %cst_228 {dimension_numbers = #tpu.dot_dimension_numbers<[1], [0], [0], [1], [0, 0, 1, 1], [], []>} : vector<8x32xf32>, vector<32x32xf32>, vector<8x32xf32> -> vector<8x32xf32>
    %482 = arith.addf %481, %297 : vector<8x32xf32>
    %cst_229 = arith.constant dense<0.000000e+00> : vector<8x32xf32>
    %483 = tpu.matmul %468, %289, %cst_229 {dimension_numbers = #tpu.dot_dimension_numbers<[1], [0], [0], [1], [0, 0, 1, 1], [], []>} : vector<8x32xf32>, vector<32x32xf32>, vector<8x32xf32> -> vector<8x32xf32>
    %484 = arith.addf %483, %301 : vector<8x32xf32>
    %485 = arith.addf %474, %480 : vector<8x32xf32>
    %486 = arith.negf %485 : vector<8x32xf32>
    %487 = math.exp %486 : vector<8x32xf32>
    %cst_230 = arith.constant 1.000000e+00 : f32
    %488 = vector.broadcast %cst_230 : f32 to vector<8x32xf32>
    %489 = arith.addf %488, %487 : vector<8x32xf32>
    %490 = arith.divf %488, %489 : vector<8x32xf32>
    %491 = arith.addf %476, %482 : vector<8x32xf32>
    %492 = arith.negf %491 : vector<8x32xf32>
    %493 = math.exp %492 : vector<8x32xf32>
    %cst_231 = arith.constant 1.000000e+00 : f32
    %494 = vector.broadcast %cst_231 : f32 to vector<8x32xf32>
    %495 = arith.addf %494, %493 : vector<8x32xf32>
    %496 = arith.divf %494, %495 : vector<8x32xf32>
    %497 = arith.mulf %490, %484 : vector<8x32xf32>
    %498 = arith.addf %478, %497 : vector<8x32xf32>
    %499 = math.tanh %498 : vector<8x32xf32>
    %cst_232 = arith.constant 1.000000e+00 : f32
    %500 = vector.broadcast %cst_232 : f32 to vector<8x32xf32>
    %501 = arith.subf %500, %496 : vector<8x32xf32>
    %502 = arith.mulf %501, %499 : vector<8x32xf32>
    %503 = arith.mulf %496, %468 : vector<8x32xf32>
    %504 = arith.addf %502, %503 : vector<8x32xf32>
    %505 = arith.index_cast %472 : i32 to index
    %c0_233 = arith.constant 0 : index
    %506 = vector.load %arg6[%505, %c0_233] : memref<64x32xf32, #tpu.memory_space<vmem>>, vector<8x32xf32>
    tpu.vector_store %arg6[%505, %c0_233], %504 {strides = array<i32>} : memref<64x32xf32, #tpu.memory_space<vmem>>, vector<8x32xf32>,
    %c5_i32_234 = arith.constant 5 : i32
    %c8_i32_235 = arith.constant 8 : i32
    %507 = arith.muli %c5_i32_234, %c8_i32_235 : i32
    %508 = tpu.assume_multiple %507, 8 : i32
    %509 = arith.index_cast %508 : i32 to index
    %c0_236 = arith.constant 0 : index
    %510 = vector.load %arg8[%509, %c0_236] : memref<64x32xf32, #tpu.memory_space<vmem>>, vector<8x32xf32>
    %511 = arith.index_cast %508 : i32 to index
    %c0_237 = arith.constant 0 : index
    %512 = vector.load %arg9[%511, %c0_237] : memref<64x32xf32, #tpu.memory_space<vmem>>, vector<8x32xf32>
    %513 = arith.index_cast %508 : i32 to index
    %c0_238 = arith.constant 0 : index
    %514 = vector.load %arg10[%513, %c0_238] : memref<64x32xf32, #tpu.memory_space<vmem>>, vector<8x32xf32>
    %cst_239 = arith.constant dense<0.000000e+00> : vector<8x32xf32>
    %515 = tpu.matmul %504, %285, %cst_239 {dimension_numbers = #tpu.dot_dimension_numbers<[1], [0], [0], [1], [0, 0, 1, 1], [], []>} : vector<8x32xf32>, vector<32x32xf32>, vector<8x32xf32> -> vector<8x32xf32>
    %516 = arith.addf %515, %293 : vector<8x32xf32>
    %cst_240 = arith.constant dense<0.000000e+00> : vector<8x32xf32>
    %517 = tpu.matmul %504, %287, %cst_240 {dimension_numbers = #tpu.dot_dimension_numbers<[1], [0], [0], [1], [0, 0, 1, 1], [], []>} : vector<8x32xf32>, vector<32x32xf32>, vector<8x32xf32> -> vector<8x32xf32>
    %518 = arith.addf %517, %297 : vector<8x32xf32>
    %cst_241 = arith.constant dense<0.000000e+00> : vector<8x32xf32>
    %519 = tpu.matmul %504, %289, %cst_241 {dimension_numbers = #tpu.dot_dimension_numbers<[1], [0], [0], [1], [0, 0, 1, 1], [], []>} : vector<8x32xf32>, vector<32x32xf32>, vector<8x32xf32> -> vector<8x32xf32>
    %520 = arith.addf %519, %301 : vector<8x32xf32>
    %521 = arith.addf %510, %516 : vector<8x32xf32>
    %522 = arith.negf %521 : vector<8x32xf32>
    %523 = math.exp %522 : vector<8x32xf32>
    %cst_242 = arith.constant 1.000000e+00 : f32
    %524 = vector.broadcast %cst_242 : f32 to vector<8x32xf32>
    %525 = arith.addf %524, %523 : vector<8x32xf32>
    %526 = arith.divf %524, %525 : vector<8x32xf32>
    %527 = arith.addf %512, %518 : vector<8x32xf32>
    %528 = arith.negf %527 : vector<8x32xf32>
    %529 = math.exp %528 : vector<8x32xf32>
    %cst_243 = arith.constant 1.000000e+00 : f32
    %530 = vector.broadcast %cst_243 : f32 to vector<8x32xf32>
    %531 = arith.addf %530, %529 : vector<8x32xf32>
    %532 = arith.divf %530, %531 : vector<8x32xf32>
    %533 = arith.mulf %526, %520 : vector<8x32xf32>
    %534 = arith.addf %514, %533 : vector<8x32xf32>
    %535 = math.tanh %534 : vector<8x32xf32>
    %cst_244 = arith.constant 1.000000e+00 : f32
    %536 = vector.broadcast %cst_244 : f32 to vector<8x32xf32>
    %537 = arith.subf %536, %532 : vector<8x32xf32>
    %538 = arith.mulf %537, %535 : vector<8x32xf32>
    %539 = arith.mulf %532, %504 : vector<8x32xf32>
    %540 = arith.addf %538, %539 : vector<8x32xf32>
    %541 = arith.index_cast %508 : i32 to index
    %c0_245 = arith.constant 0 : index
    %542 = vector.load %arg6[%541, %c0_245] : memref<64x32xf32, #tpu.memory_space<vmem>>, vector<8x32xf32>
    tpu.vector_store %arg6[%541, %c0_245], %540 {strides = array<i32>} : memref<64x32xf32, #tpu.memory_space<vmem>>, vector<8x32xf32>,
    %c6_i32_246 = arith.constant 6 : i32
    %c8_i32_247 = arith.constant 8 : i32
    %543 = arith.muli %c6_i32_246, %c8_i32_247 : i32
    %544 = tpu.assume_multiple %543, 8 : i32
    %545 = arith.index_cast %544 : i32 to index
    %c0_248 = arith.constant 0 : index
    %546 = vector.load %arg8[%545, %c0_248] : memref<64x32xf32, #tpu.memory_space<vmem>>, vector<8x32xf32>
    %547 = arith.index_cast %544 : i32 to index
    %c0_249 = arith.constant 0 : index
    %548 = vector.load %arg9[%547, %c0_249] : memref<64x32xf32, #tpu.memory_space<vmem>>, vector<8x32xf32>
    %549 = arith.index_cast %544 : i32 to index
    %c0_250 = arith.constant 0 : index
    %550 = vector.load %arg10[%549, %c0_250] : memref<64x32xf32, #tpu.memory_space<vmem>>, vector<8x32xf32>
    %cst_251 = arith.constant dense<0.000000e+00> : vector<8x32xf32>
    %551 = tpu.matmul %540, %285, %cst_251 {dimension_numbers = #tpu.dot_dimension_numbers<[1], [0], [0], [1], [0, 0, 1, 1], [], []>} : vector<8x32xf32>, vector<32x32xf32>, vector<8x32xf32> -> vector<8x32xf32>
    %552 = arith.addf %551, %293 : vector<8x32xf32>
    %cst_252 = arith.constant dense<0.000000e+00> : vector<8x32xf32>
    %553 = tpu.matmul %540, %287, %cst_252 {dimension_numbers = #tpu.dot_dimension_numbers<[1], [0], [0], [1], [0, 0, 1, 1], [], []>} : vector<8x32xf32>, vector<32x32xf32>, vector<8x32xf32> -> vector<8x32xf32>
    %554 = arith.addf %553, %297 : vector<8x32xf32>
    %cst_253 = arith.constant dense<0.000000e+00> : vector<8x32xf32>
    %555 = tpu.matmul %540, %289, %cst_253 {dimension_numbers = #tpu.dot_dimension_numbers<[1], [0], [0], [1], [0, 0, 1, 1], [], []>} : vector<8x32xf32>, vector<32x32xf32>, vector<8x32xf32> -> vector<8x32xf32>
    %556 = arith.addf %555, %301 : vector<8x32xf32>
    %557 = arith.addf %546, %552 : vector<8x32xf32>
    %558 = arith.negf %557 : vector<8x32xf32>
    %559 = math.exp %558 : vector<8x32xf32>
    %cst_254 = arith.constant 1.000000e+00 : f32
    %560 = vector.broadcast %cst_254 : f32 to vector<8x32xf32>
    %561 = arith.addf %560, %559 : vector<8x32xf32>
    %562 = arith.divf %560, %561 : vector<8x32xf32>
    %563 = arith.addf %548, %554 : vector<8x32xf32>
    %564 = arith.negf %563 : vector<8x32xf32>
    %565 = math.exp %564 : vector<8x32xf32>
    %cst_255 = arith.constant 1.000000e+00 : f32
    %566 = vector.broadcast %cst_255 : f32 to vector<8x32xf32>
    %567 = arith.addf %566, %565 : vector<8x32xf32>
    %568 = arith.divf %566, %567 : vector<8x32xf32>
    %569 = arith.mulf %562, %556 : vector<8x32xf32>
    %570 = arith.addf %550, %569 : vector<8x32xf32>
    %571 = math.tanh %570 : vector<8x32xf32>
    %cst_256 = arith.constant 1.000000e+00 : f32
    %572 = vector.broadcast %cst_256 : f32 to vector<8x32xf32>
    %573 = arith.subf %572, %568 : vector<8x32xf32>
    %574 = arith.mulf %573, %571 : vector<8x32xf32>
    %575 = arith.mulf %568, %540 : vector<8x32xf32>
    %576 = arith.addf %574, %575 : vector<8x32xf32>
    %577 = arith.index_cast %544 : i32 to index
    %c0_257 = arith.constant 0 : index
    %578 = vector.load %arg6[%577, %c0_257] : memref<64x32xf32, #tpu.memory_space<vmem>>, vector<8x32xf32>
    tpu.vector_store %arg6[%577, %c0_257], %576 {strides = array<i32>} : memref<64x32xf32, #tpu.memory_space<vmem>>, vector<8x32xf32>,
    %c7_i32_258 = arith.constant 7 : i32
    %c8_i32_259 = arith.constant 8 : i32
    %579 = arith.muli %c7_i32_258, %c8_i32_259 : i32
    %580 = tpu.assume_multiple %579, 8 : i32
    %581 = arith.index_cast %580 : i32 to index
    %c0_260 = arith.constant 0 : index
    %582 = vector.load %arg8[%581, %c0_260] : memref<64x32xf32, #tpu.memory_space<vmem>>, vector<8x32xf32>
    %583 = arith.index_cast %580 : i32 to index
    %c0_261 = arith.constant 0 : index
    %584 = vector.load %arg9[%583, %c0_261] : memref<64x32xf32, #tpu.memory_space<vmem>>, vector<8x32xf32>
    %585 = arith.index_cast %580 : i32 to index
    %c0_262 = arith.constant 0 : index
    %586 = vector.load %arg10[%585, %c0_262] : memref<64x32xf32, #tpu.memory_space<vmem>>, vector<8x32xf32>
    %cst_263 = arith.constant dense<0.000000e+00> : vector<8x32xf32>
    %587 = tpu.matmul %576, %285, %cst_263 {dimension_numbers = #tpu.dot_dimension_numbers<[1], [0], [0], [1], [0, 0, 1, 1], [], []>} : vector<8x32xf32>, vector<32x32xf32>, vector<8x32xf32> -> vector<8x32xf32>
    %588 = arith.addf %587, %293 : vector<8x32xf32>
    %cst_264 = arith.constant dense<0.000000e+00> : vector<8x32xf32>
    %589 = tpu.matmul %576, %287, %cst_264 {dimension_numbers = #tpu.dot_dimension_numbers<[1], [0], [0], [1], [0, 0, 1, 1], [], []>} : vector<8x32xf32>, vector<32x32xf32>, vector<8x32xf32> -> vector<8x32xf32>
    %590 = arith.addf %589, %297 : vector<8x32xf32>
    %cst_265 = arith.constant dense<0.000000e+00> : vector<8x32xf32>
    %591 = tpu.matmul %576, %289, %cst_265 {dimension_numbers = #tpu.dot_dimension_numbers<[1], [0], [0], [1], [0, 0, 1, 1], [], []>} : vector<8x32xf32>, vector<32x32xf32>, vector<8x32xf32> -> vector<8x32xf32>
    %592 = arith.addf %591, %301 : vector<8x32xf32>
    %593 = arith.addf %582, %588 : vector<8x32xf32>
    %594 = arith.negf %593 : vector<8x32xf32>
    %595 = math.exp %594 : vector<8x32xf32>
    %cst_266 = arith.constant 1.000000e+00 : f32
    %596 = vector.broadcast %cst_266 : f32 to vector<8x32xf32>
    %597 = arith.addf %596, %595 : vector<8x32xf32>
    %598 = arith.divf %596, %597 : vector<8x32xf32>
    %599 = arith.addf %584, %590 : vector<8x32xf32>
    %600 = arith.negf %599 : vector<8x32xf32>
    %601 = math.exp %600 : vector<8x32xf32>
    %cst_267 = arith.constant 1.000000e+00 : f32
    %602 = vector.broadcast %cst_267 : f32 to vector<8x32xf32>
    %603 = arith.addf %602, %601 : vector<8x32xf32>
    %604 = arith.divf %602, %603 : vector<8x32xf32>
    %605 = arith.mulf %598, %592 : vector<8x32xf32>
    %606 = arith.addf %586, %605 : vector<8x32xf32>
    %607 = math.tanh %606 : vector<8x32xf32>
    %cst_268 = arith.constant 1.000000e+00 : f32
    %608 = vector.broadcast %cst_268 : f32 to vector<8x32xf32>
    %609 = arith.subf %608, %604 : vector<8x32xf32>
    %610 = arith.mulf %609, %607 : vector<8x32xf32>
    %611 = arith.mulf %604, %576 : vector<8x32xf32>
    %612 = arith.addf %610, %611 : vector<8x32xf32>
    %613 = arith.index_cast %580 : i32 to index
    %c0_269 = arith.constant 0 : index
    %614 = vector.load %arg6[%613, %c0_269] : memref<64x32xf32, #tpu.memory_space<vmem>>, vector<8x32xf32>
    tpu.vector_store %arg6[%613, %c0_269], %612 {strides = array<i32>} : memref<64x32xf32, #tpu.memory_space<vmem>>, vector<8x32xf32>,
    %c8_i32_270 = arith.constant 8 : i32
    return
  }
}

</mosaic_0001>

<llo_original>
// kernel: tpu_custom_call.1
$region0: #{tpu_custom_call.1}
  #allocation0 [shape = 'u32[]', space=smem, size = 0x4, offset = 0x4, fixed_abs, tag = 'smem constant byte address 0x4 - core index']
  #allocation1 [shape = 'u32[72,128]{1,0:T(1,128)}', space=vmem, size = 0x9000, scoped, tag = 'internal scratch']
  #allocation2 [shape = 'f32[64,32]{1,0:T(8,128)}', space=vmem, size = 0x8000, scoped, tag = 'scratch operand']
  #allocation3 [shape = 'f32[64,32]{1,0:T(8,128)}', space=vmem, size = 0x8000, scoped, tag = 'scratch operand']
  #allocation4 [shape = 'f32[64,32]{1,0:T(8,128)}', space=vmem, size = 0x8000, scoped, tag = 'scratch operand']
  #allocation5 [shape = 'f32[64,32]{1,0:T(8,128)}', space=vmem, size = 0x8000, scoped, tag = 'scratch operand']
  %s0 = inlined_call_operand.hbm [shape: f32[8,32], index: 0, kind: input, shape index: {}]
  %s1 = inlined_call_operand.hbm [shape: f32[1,32], index: 1, kind: input, shape index: {}]
  %s2 = inlined_call_operand.hbm [shape: f32[2,3,32,32], index: 2, kind: input, shape index: {}]
  %s3 = inlined_call_operand.hbm [shape: f32[2,3,32,32], index: 3, kind: input, shape index: {}]
  %s4 = inlined_call_operand.hbm [shape: f32[2,3,1,32], index: 4, kind: input, shape index: {}]
  %s5 = inlined_call_operand.hbm [shape: f32[2,3,1,32], index: 5, kind: input, shape index: {}]
  %s6 = inlined_call_operand.vmem [shape: f32[64,32], index: 6, kind: output, shape index: {}]
  %s7 = sld [smem:[#allocation0]]
  $region58: #{tpu_custom_call.1} parent=0
    _
  %s9 = ssub.s32 1, %s7
  %s10 = scalar_select 0, %s9, %s7
  $region1: #{tpu_custom_call.1} parent=0
    #allocation6 [shape = 'u8[4096]{0}', space=vmem, size = 0x1000, scoped, tag = 'input window, operand 0, single buffered']
    #allocation7 [shape = 's32[1]{0}', space=sflag, size = 0x4, scoped, tag = 'scoped memory for tpu_custom_call.1']
    #allocation8 [shape = 'u8[512]{0}', space=vmem, size = 0x400, scoped, tag = 'input window, operand 1, single buffered']
    #allocation9 [shape = 's32[1]{0}', space=sflag, size = 0x4, scoped, tag = 'scoped memory for tpu_custom_call.1']
    #allocation10 [shape = 'u8[98304]{0}', space=vmem, size = 0x18000, scoped, tag = 'input window, operand 2, single buffered']
    #allocation11 [shape = 'u8[98304]{0}', space=vmem, size = 0x18000, scoped, tag = 'input window, operand 3, single buffered']
    #allocation12 [shape = 's32[1]{0}', space=sflag, size = 0x4, scoped, tag = 'scoped memory for tpu_custom_call.1']
    #allocation13 [shape = 'u8[3072]{0}', space=vmem, size = 0xc00, scoped, tag = 'input window, operand 4, single buffered']
    #allocation14 [shape = 'u8[3072]{0}', space=vmem, size = 0xc00, scoped, tag = 'input window, operand 5, single buffered']
    #allocation15 [shape = 's32[1]{0}', space=sflag, size = 0x4, scoped, tag = 'scoped memory for tpu_custom_call.1']
    %11 = vsyncpa [#allocation7], 0
    %12 = vsyncpa [#allocation9], 0
    %13 = vsyncpa [#allocation12], 0
    %14 = vsyncpa [#allocation15], 0
    // Predicated region
    $region2: #{tpu_custom_call.1} parent=1 // pred_check
      _
    $region3: #{tpu_custom_call.1} parent=1 // pred_check_branch
      %16 = sbr.rel (0) target = $region5
    $region4: #{tpu_custom_call.1} parent=1 // pred_region
      %18 = vsyncadd [#allocation7], 0
      %s20 = sshll.u32 %s0, 4
      %s21 = int_to_ptr.hbm [resolvable:$true] %s20
      %s22 = sshll.u32 [#allocation6], 4
      %s23 = int_to_ptr.vmem [resolvable:$true] %s22
      %25 = dma.hbm_to_vmem [thread:$0]  %s21, 128, %s23, [#allocation7]
    $region5: #{tpu_custom_call.1} parent=1 // pred_fallthru
      _
    // Predicated region
    $region6: #{tpu_custom_call.1} parent=1 // pred_check
      _
    $region7: #{tpu_custom_call.1} parent=1 // pred_check_branch
      %27 = sbr.rel (0) target = $region9
    $region8: #{tpu_custom_call.1} parent=1 // pred_region
      %29 = vsyncadd [#allocation9], 0
      %s31 = sshll.u32 %s1, 4
      %s32 = int_to_ptr.hbm [resolvable:$true] %s31
      %s33 = sshll.u32 [#allocation8], 4
      %s34 = int_to_ptr.vmem [resolvable:$true] %s33
      %36 = dma.hbm_to_vmem [thread:$0]  %s32, 16, %s34, [#allocation9]
    $region9: #{tpu_custom_call.1} parent=1 // pred_fallthru
      _
    // Predicated region
    $region10: #{tpu_custom_call.1} parent=1 // pred_check
      _
    $region11: #{tpu_custom_call.1} parent=1 // pred_check_branch
      %38 = sbr.rel (0) target = $region13
    $region12: #{tpu_custom_call.1} parent=1 // pred_region
      %40 = vsyncadd [#allocation9], 0
      %s41 = sshll.u32 %s2, 4
      %s42 = int_to_ptr.hbm [resolvable:$true] %s41
      %s43 = sshll.u32 [#allocation10], 4
      %s44 = int_to_ptr.vmem [resolvable:$true] %s43
      %49 = dma.hbm_to_vmem [thread:$0]  %s42, 3072, %s44, [#allocation9], 128, 128, 8
    $region13: #{tpu_custom_call.1} parent=1 // pred_fallthru
      _
    // Predicated region
    $region14: #{tpu_custom_call.1} parent=1 // pred_check
      _
    $region15: #{tpu_custom_call.1} parent=1 // pred_check_branch
      %51 = sbr.rel (0) target = $region17
    $region16: #{tpu_custom_call.1} parent=1 // pred_region
      %53 = vsyncadd [#allocation12], 0
      %s54 = sshll.u32 %s3, 4
      %s55 = int_to_ptr.hbm [resolvable:$true] %s54
      %s56 = sshll.u32 [#allocation11], 4
      %s57 = int_to_ptr.vmem [resolvable:$true] %s56
      %62 = dma.hbm_to_vmem [thread:$0]  %s55, 3072, %s57, [#allocation12], 128, 128, 8
    $region17: #{tpu_custom_call.1} parent=1 // pred_fallthru
      _
    // Predicated region
    $region18: #{tpu_custom_call.1} parent=1 // pred_check
      _
    $region19: #{tpu_custom_call.1} parent=1 // pred_check_branch
      %64 = sbr.rel (0) target = $region21
    $region20: #{tpu_custom_call.1} parent=1 // pred_region
      %66 = vsyncadd [#allocation12], 0
      %s67 = sshll.u32 %s4, 4
      %s68 = int_to_ptr.hbm [resolvable:$true] %s67
      %s69 = sshll.u32 [#allocation13], 4
      %s70 = int_to_ptr.vmem [resolvable:$true] %s69
      %75 = dma.hbm_to_vmem [thread:$0]  %s68, 96, %s70, [#allocation12], 16, 16, 1
    $region21: #{tpu_custom_call.1} parent=1 // pred_fallthru
      _
    // Predicated region
    $region22: #{tpu_custom_call.1} parent=1 // pred_check
      _
    $region23: #{tpu_custom_call.1} parent=1 // pred_check_branch
      %77 = sbr.rel (0) target = $region25
    $region24: #{tpu_custom_call.1} parent=1 // pred_region
      %79 = vsyncadd [#allocation15], 0
      %s80 = sshll.u32 %s5, 4
      %s81 = int_to_ptr.hbm [resolvable:$true] %s80
      %s82 = sshll.u32 [#allocation14], 4
      %s83 = int_to_ptr.vmem [resolvable:$true] %s82
      %88 = dma.hbm_to_vmem [thread:$0]  %s81, 96, %s83, [#allocation15], 16, 16, 1
    $region25: #{tpu_custom_call.1} parent=1 // pred_fallthru
      _
    // Predicated region
    $region26: #{tpu_custom_call.1} parent=1 // pred_check
      _
    $region27: #{tpu_custom_call.1} parent=1 // pred_check_branch
      %90 = sbr.rel (0) target = $region29
    $region28: #{tpu_custom_call.1} parent=1 // pred_region
      %92 = dma.done [#allocation7], 128
    $region29: #{tpu_custom_call.1} parent=1 // pred_fallthru
      _
    // Predicated region
    $region30: #{tpu_custom_call.1} parent=1 // pred_check
      _
    $region31: #{tpu_custom_call.1} parent=1 // pred_check_branch
      %94 = sbr.rel (0) target = $region33
    $region32: #{tpu_custom_call.1} parent=1 // pred_region
      %96 = dma.done [#allocation9], 16
    $region33: #{tpu_custom_call.1} parent=1 // pred_fallthru
      _
    // Predicated region
    $region34: #{tpu_custom_call.1} parent=1 // pred_check
      _
    $region35: #{tpu_custom_call.1} parent=1 // pred_check_branch
      %98 = sbr.rel (0) target = $region37
    $region36: #{tpu_custom_call.1} parent=1 // pred_region
      %100 = dma.done [#allocation9], 3072
    $region37: #{tpu_custom_call.1} parent=1 // pred_fallthru
      _
    // Predicated region
    $region38: #{tpu_custom_call.1} parent=1 // pred_check
      _
    $region39: #{tpu_custom_call.1} parent=1 // pred_check_branch
      %102 = sbr.rel (0) target = $region41
    $region40: #{tpu_custom_call.1} parent=1 // pred_region
      %104 = dma.done [#allocation12], 3072
    $region41: #{tpu_custom_call.1} parent=1 // pred_fallthru
      _
    // Predicated region
    $region42: #{tpu_custom_call.1} parent=1 // pred_check
      _
    $region43: #{tpu_custom_call.1} parent=1 // pred_check_branch
      %106 = sbr.rel (0) target = $region45
    $region44: #{tpu_custom_call.1} parent=1 // pred_region
      %108 = dma.done [#allocation12], 96
    $region45: #{tpu_custom_call.1} parent=1 // pred_fallthru
      _
    // Predicated region
    $region46: #{tpu_custom_call.1} parent=1 // pred_check
      _
    $region47: #{tpu_custom_call.1} parent=1 // pred_check_branch
      %110 = sbr.rel (0) target = $region49
    $region48: #{tpu_custom_call.1} parent=1 // pred_region
      %112 = dma.done [#allocation15], 96
    $region49: #{tpu_custom_call.1} parent=1 // pred_fallthru
      _
    %v113 = vld [vmem:[#allocation6] sm:$0xff]
    %v114 = vld [vmem:[#allocation11] sm:$0xff]
    %v115 = vld [vmem:[#allocation11 + $0x8] sm:$0xff]
    %v116 = vld [vmem:[#allocation11 + $0x10] sm:$0xff]
    %v117 = vld [vmem:[#allocation11 + $0x18] sm:$0xff]
    %s118 = scalar_lea.vmem [#allocation11], 32
    %v119 = vld [vmem:[%s118] sm:$0xff]
    %v120 = vld [vmem:[%s118 + $0x8] sm:$0xff]
    %v121 = vld [vmem:[%s118 + $0x10] sm:$0xff]
    %v122 = vld [vmem:[%s118 + $0x18] sm:$0xff]
    %s123 = scalar_lea.vmem [#allocation11], 64
    %v124 = vld [vmem:[%s123] sm:$0xff]
    %v125 = vld [vmem:[%s123 + $0x8] sm:$0xff]
    %v126 = vld [vmem:[%s123 + $0x10] sm:$0xff]
    %v127 = vld [vmem:[%s123 + $0x18] sm:$0xff]
    %v128 = vld [vmem:[#allocation14] sm:$0x1]
    %v130 = vperm.slane %v128, 0
    %s132 = scalar_lea.vmem [#allocation14], 1
    %v133 = vld [vmem:[%s132] sm:$0x1]
    %v135 = vperm.slane %v133, 0
    %s137 = scalar_lea.vmem [#allocation14], 2
    %v138 = vld [vmem:[%s137] sm:$0x1]
    %v140 = vperm.slane %v138, 0
    %v142 = vld [vmem:[#allocation8] sm:$0x1]
    %v143 = vld [vmem:[#allocation10] sm:$0xff]
    %v144 = vld [vmem:[#allocation10 + $0x8] sm:$0xff]
    %v145 = vld [vmem:[#allocation10 + $0x10] sm:$0xff]
    %v146 = vld [vmem:[#allocation10 + $0x18] sm:$0xff]
    %v147 = vld [vmem:[#allocation13] sm:$0x1]
    %vm148 = vcmask 261120
    %v150 = vsel %vm148, %v142, 0
    %152 = vmatpush.msra.mxu0 0.0
    %153 = vmatpush.msra.mxu0 0.0
    %154 = vmatpush.msra.mxu0 0.0
    %155 = vmatpush.msra.mxu0 0.0
    %156 = vmatpush.msra.mxu0 0.0
    %157 = vmatpush.msra.mxu0 0.0
    %158 = vmatpush.msra.mxu0 0.0
    %159 = vmatpush.msra.mxu0 0.0
    %160 = vmatpush.msra.mxu0 0.0
    %161 = vmatpush.msra.mxu0 0.0
    %162 = vmatpush.msra.mxu0 0.0
    %163 = vmatpush.msra.mxu0 0.0
    %164 = vmatpush.msra.mxu0 %v146
    %165 = vmatpush.msra.mxu0 %v145
    %166 = vmatpush.msra.mxu0 %v144
    %167 = vmatpush.msra.mxu0 %v143
    %168 = vmatmul.f32.gmra.mxu0 %v150
    %v169 = vpop.f32.mrf.mxu0
    %v170 = vadd.f32 %v147, %v169
    %171 = vdwg.mxu0
    %v172 = vperm.slane %v170, 0
    %s173 = scalar_lea.vmem [#allocation10], 32
    %v174 = vld [vmem:[%s173] sm:$0xff]
    %v175 = vld [vmem:[%s173 + $0x8] sm:$0xff]
    %v176 = vld [vmem:[%s173 + $0x10] sm:$0xff]
    %v177 = vld [vmem:[%s173 + $0x18] sm:$0xff]
    %s178 = scalar_lea.vmem [#allocation13], 1
    %v179 = vld [vmem:[%s178] sm:$0x1]
    %180 = vmatpush.msra.mxu0 0.0
    %181 = vmatpush.msra.mxu0 0.0
    %182 = vmatpush.msra.mxu0 0.0
    %183 = vmatpush.msra.mxu0 0.0
    %184 = vmatpush.msra.mxu0 0.0
    %185 = vmatpush.msra.mxu0 0.0
    %186 = vmatpush.msra.mxu0 0.0
    %187 = vmatpush.msra.mxu0 0.0
    %188 = vmatpush.msra.mxu0 0.0
    %189 = vmatpush.msra.mxu0 0.0
    %190 = vmatpush.msra.mxu0 0.0
    %191 = vmatpush.msra.mxu0 0.0
    %192 = vmatpush.msra.mxu0 %v177
    %193 = vmatpush.msra.mxu0 %v176
    %194 = vmatpush.msra.mxu0 %v175
    %195 = vmatpush.msra.mxu0 %v174
    %196 = vmatmul.f32.gmra.mxu0 %v150
    %v197 = vpop.f32.mrf.mxu0
    %v198 = vadd.f32 %v179, %v197
    %199 = vdwg.mxu0
    %v200 = vperm.slane %v198, 0
    %s201 = scalar_lea.vmem [#allocation10], 64
    %v202 = vld [vmem:[%s201] sm:$0xff]
    %v203 = vld [vmem:[%s201 + $0x8] sm:$0xff]
    %v204 = vld [vmem:[%s201 + $0x10] sm:$0xff]
    %v205 = vld [vmem:[%s201 + $0x18] sm:$0xff]
    %s206 = scalar_lea.vmem [#allocation13], 2
    %v207 = vld [vmem:[%s206] sm:$0x1]
    %208 = vmatpush.msra.mxu0 0.0
    %209 = vmatpush.msra.mxu0 0.0
    %210 = vmatpush.msra.mxu0 0.0
    %211 = vmatpush.msra.mxu0 0.0
    %212 = vmatpush.msra.mxu0 0.0
    %213 = vmatpush.msra.mxu0 0.0
    %214 = vmatpush.msra.mxu0 0.0
    %215 = vmatpush.msra.mxu0 0.0
    %216 = vmatpush.msra.mxu0 0.0
    %217 = vmatpush.msra.mxu0 0.0
    %218 = vmatpush.msra.mxu0 0.0
    %219 = vmatpush.msra.mxu0 0.0
    %220 = vmatpush.msra.mxu0 %v205
    %221 = vmatpush.msra.mxu0 %v204
    %222 = vmatpush.msra.mxu0 %v203
    %223 = vmatpush.msra.mxu0 %v202
    %224 = vmatmul.f32.gmra.mxu0 %v150
    %v225 = vpop.f32.mrf.mxu0
    %v226 = vadd.f32 %v207, %v225
    %227 = vdwg.mxu0
    %v228 = vperm.slane %v226, 0
    %v230 = vsel %vm148, %v113, 0
    %232 = vmatpush.msra.mxu0 0.0
    %233 = vmatpush.msra.mxu0 0.0
    %234 = vmatpush.msra.mxu0 0.0
    %235 = vmatpush.msra.mxu0 0.0
    %236 = vmatpush.msra.mxu0 0.0
    %237 = vmatpush.msra.mxu0 0.0
    %238 = vmatpush.msra.mxu0 0.0
    %239 = vmatpush.msra.mxu0 0.0
    %240 = vmatpush.msra.mxu0 0.0
    %241 = vmatpush.msra.mxu0 0.0
    %242 = vmatpush.msra.mxu0 0.0
    %243 = vmatpush.msra.mxu0 0.0
    %244 = vmatpush.msra.mxu0 %v117
    %245 = vmatpush.msra.mxu0 %v116
    %246 = vmatpush.msra.mxu0 %v115
    %247 = vmatpush.msra.mxu0 %v114
    %248 = vmatmul.f32.gmra.mxu0 %v230
    %v249 = vpop.f32.mrf.mxu0
    %v250 = vadd.f32 %v130, %v249
    %251 = vdwg.mxu0
    %252 = vmatpush.msra.mxu0 0.0
    %253 = vmatpush.msra.mxu0 0.0
    %254 = vmatpush.msra.mxu0 0.0
    %255 = vmatpush.msra.mxu0 0.0
    %256 = vmatpush.msra.mxu0 0.0
    %257 = vmatpush.msra.mxu0 0.0
    %258 = vmatpush.msra.mxu0 0.0
    %259 = vmatpush.msra.mxu0 0.0
    %260 = vmatpush.msra.mxu0 0.0
    %261 = vmatpush.msra.mxu0 0.0
    %262 = vmatpush.msra.mxu0 0.0
    %263 = vmatpush.msra.mxu0 0.0
    %264 = vmatpush.msra.mxu0 %v122
    %265 = vmatpush.msra.mxu0 %v121
    %266 = vmatpush.msra.mxu0 %v120
    %267 = vmatpush.msra.mxu0 %v119
    %268 = vmatmul.f32.gmra.mxu0 %v230
    %v269 = vpop.f32.mrf.mxu0
    %v270 = vadd.f32 %v135, %v269
    %271 = vdwg.mxu0
    %272 = vmatpush.msra.mxu0 0.0
    %273 = vmatpush.msra.mxu0 0.0
    %274 = vmatpush.msra.mxu0 0.0
    %275 = vmatpush.msra.mxu0 0.0
    %276 = vmatpush.msra.mxu0 0.0
    %277 = vmatpush.msra.mxu0 0.0
    %278 = vmatpush.msra.mxu0 0.0
    %279 = vmatpush.msra.mxu0 0.0
    %280 = vmatpush.msra.mxu0 0.0
    %281 = vmatpush.msra.mxu0 0.0
    %282 = vmatpush.msra.mxu0 0.0
    %283 = vmatpush.msra.mxu0 0.0
    %284 = vmatpush.msra.mxu0 %v127
    %285 = vmatpush.msra.mxu0 %v126
    %286 = vmatpush.msra.mxu0 %v125
    %287 = vmatpush.msra.mxu0 %v124
    %288 = vmatmul.f32.gmra.mxu0 %v230
    %v289 = vpop.f32.mrf.mxu0
    %v290 = vadd.f32 %v140, %v289
    %291 = vdwg.mxu0
    %v292 = vadd.f32 %v172, %v250
    %v293 = vxor.u32 %v292, 2147483648
    %v294 = vmul.f32 %v293, 1.442695
    %v295 = vpow.pop %v294
    %v296 = vadd.f32 %v295, 1.0
    %v297 = vrcp.pop %v296
    %v298 = vmul.f32 %v296, %v297
    %v299 = vsub.f32 1.0, %v298
    %v300 = vmul.f32 %v297, %v299
    %v301 = vadd.f32 %v297, %v300
    %vm302 = vweird.f32 %v296
    %vm303 = vweird.f32 %v297
    %vm304 = vmor %vm302, %vm303
    %v305 = vsel %vm304, %v297, %v301
    %v306 = vand.u32 2147483647, %v296
    %vm307 = vcmp.eq.f32.partialorder %v306, 8.507059e+37
    %v308 = vand.u32 %v296, 2147483648
    %v309 = vor.u32 1.1754944e-38, %v308
    %v310 = vsel %vm307, %v309, %v305
    %v311 = vmul.f32 1.0, %v310
    %v312 = vadd.f32 %v200, %v270
    %v313 = vxor.u32 %v312, 2147483648
    %v314 = vmul.f32 %v313, 1.442695
    %v315 = vpow.pop %v314
    %v316 = vadd.f32 %v315, 1.0
    %v317 = vrcp.pop %v316
    %v318 = vmul.f32 %v316, %v317
    %v319 = vsub.f32 1.0, %v318
    %v320 = vmul.f32 %v317, %v319
    %v321 = vadd.f32 %v317, %v320
    %vm322 = vweird.f32 %v316
    %vm323 = vweird.f32 %v317
    %vm324 = vmor %vm322, %vm323
    %v325 = vsel %vm324, %v317, %v321
    %v326 = vand.u32 2147483647, %v316
    %vm327 = vcmp.eq.f32.partialorder %v326, 8.507059e+37
    %v328 = vand.u32 %v316, 2147483648
    %v329 = vor.u32 1.1754944e-38, %v328
    %v330 = vsel %vm327, %v329, %v325
    %v331 = vmul.f32 1.0, %v330
    %v332 = vmul.f32 %v311, %v290
    %v333 = vadd.f32 %v228, %v332
    %v334 = vtanh.pop %v333
    %v335 = vsub.f32 1.0, %v331
    %v336 = vmul.f32 %v335, %v334
    %v337 = vmul.f32 %v331, %v113
    %v338 = vadd.f32 %v336, %v337
    %339 = vst.msk [vmem:[#allocation2] sm:$0xff] %vm148, %v338
    %v341 = vsel %vm148, %v338, 0
    %343 = vmatpush.msra.mxu0 0.0
    %344 = vmatpush.msra.mxu0 0.0
    %345 = vmatpush.msra.mxu0 0.0
    %346 = vmatpush.msra.mxu0 0.0
    %347 = vmatpush.msra.mxu0 0.0
    %348 = vmatpush.msra.mxu0 0.0
    %349 = vmatpush.msra.mxu0 0.0
    %350 = vmatpush.msra.mxu0 0.0
    %351 = vmatpush.msra.mxu0 0.0
    %352 = vmatpush.msra.mxu0 0.0
    %353 = vmatpush.msra.mxu0 0.0
    %354 = vmatpush.msra.mxu0 0.0
    %355 = vmatpush.msra.mxu0 %v117
    %356 = vmatpush.msra.mxu0 %v116
    %357 = vmatpush.msra.mxu0 %v115
    %358 = vmatpush.msra.mxu0 %v114
    %359 = vmatmul.f32.gmra.mxu0 %v341
    %v360 = vpop.f32.mrf.mxu0
    %v361 = vadd.f32 %v130, %v360
    %362 = vdwg.mxu0
    %363 = vmatpush.msra.mxu0 0.0
    %364 = vmatpush.msra.mxu0 0.0
    %365 = vmatpush.msra.mxu0 0.0
    %366 = vmatpush.msra.mxu0 0.0
    %367 = vmatpush.msra.mxu0 0.0
    %368 = vmatpush.msra.mxu0 0.0
    %369 = vmatpush.msra.mxu0 0.0
    %370 = vmatpush.msra.mxu0 0.0
    %371 = vmatpush.msra.mxu0 0.0
    %372 = vmatpush.msra.mxu0 0.0
    %373 = vmatpush.msra.mxu0 0.0
    %374 = vmatpush.msra.mxu0 0.0
    %375 = vmatpush.msra.mxu0 %v122
    %376 = vmatpush.msra.mxu0 %v121
    %377 = vmatpush.msra.mxu0 %v120
    %378 = vmatpush.msra.mxu0 %v119
    %379 = vmatmul.f32.gmra.mxu0 %v341
    %v380 = vpop.f32.mrf.mxu0
    %v381 = vadd.f32 %v135, %v380
    %382 = vdwg.mxu0
    %383 = vmatpush.msra.mxu0 0.0
    %384 = vmatpush.msra.mxu0 0.0
    %385 = vmatpush.msra.mxu0 0.0
    %386 = vmatpush.msra.mxu0 0.0
    %387 = vmatpush.msra.mxu0 0.0
    %388 = vmatpush.msra.mxu0 0.0
    %389 = vmatpush.msra.mxu0 0.0
    %390 = vmatpush.msra.mxu0 0.0
    %391 = vmatpush.msra.mxu0 0.0
    %392 = vmatpush.msra.mxu0 0.0
    %393 = vmatpush.msra.mxu0 0.0
    %394 = vmatpush.msra.mxu0 0.0
    %395 = vmatpush.msra.mxu0 %v127
    %396 = vmatpush.msra.mxu0 %v126
    %397 = vmatpush.msra.mxu0 %v125
    %398 = vmatpush.msra.mxu0 %v124
    %399 = vmatmul.f32.gmra.mxu0 %v341
    %v400 = vpop.f32.mrf.mxu0
    %v401 = vadd.f32 %v140, %v400
    %402 = vdwg.mxu0
    %v403 = vadd.f32 %v172, %v361
    %v404 = vxor.u32 %v403, 2147483648
    %v405 = vmul.f32 %v404, 1.442695
    %v406 = vpow.pop %v405
    %v407 = vadd.f32 %v406, 1.0
    %v408 = vrcp.pop %v407
    %v409 = vmul.f32 %v407, %v408
    %v410 = vsub.f32 1.0, %v409
    %v411 = vmul.f32 %v408, %v410
    %v412 = vadd.f32 %v408, %v411
    %vm413 = vweird.f32 %v407
    %vm414 = vweird.f32 %v408
    %vm415 = vmor %vm413, %vm414
    %v416 = vsel %vm415, %v408, %v412
    %v417 = vand.u32 2147483647, %v407
    %vm418 = vcmp.eq.f32.partialorder %v417, 8.507059e+37
    %v419 = vand.u32 %v407, 2147483648
    %v420 = vor.u32 1.1754944e-38, %v419
    %v421 = vsel %vm418, %v420, %v416
    %v422 = vmul.f32 1.0, %v421
    %v423 = vadd.f32 %v200, %v381
    %v424 = vxor.u32 %v423, 2147483648
    %v425 = vmul.f32 %v424, 1.442695
    %v426 = vpow.pop %v425
    %v427 = vadd.f32 %v426, 1.0
    %v428 = vrcp.pop %v427
    %v429 = vmul.f32 %v427, %v428
    %v430 = vsub.f32 1.0, %v429
    %v431 = vmul.f32 %v428, %v430
    %v432 = vadd.f32 %v428, %v431
    %vm433 = vweird.f32 %v427
    %vm434 = vweird.f32 %v428
    %vm435 = vmor %vm433, %vm434
    %v436 = vsel %vm435, %v428, %v432
    %v437 = vand.u32 2147483647, %v427
    %vm438 = vcmp.eq.f32.partialorder %v437, 8.507059e+37
    %v439 = vand.u32 %v427, 2147483648
    %v440 = vor.u32 1.1754944e-38, %v439
    %v441 = vsel %vm438, %v440, %v436
    %v442 = vmul.f32 1.0, %v441
    %v443 = vmul.f32 %v422, %v401
    %v444 = vadd.f32 %v228, %v443
    %v445 = vtanh.pop %v444
    %v446 = vsub.f32 1.0, %v442
    %v447 = vmul.f32 %v446, %v445
    %v448 = vmul.f32 %v442, %v338
    %v449 = vadd.f32 %v447, %v448
    %s450 = scalar_lea.vmem [#allocation2], 8
    %451 = vst.msk [vmem:[%s450] sm:$0xff] %vm148, %v449
    %v453 = vsel %vm148, %v449, 0
    %455 = vmatpush.msra.mxu0 0.0
    %456 = vmatpush.msra.mxu0 0.0
    %457 = vmatpush.msra.mxu0 0.0
    %458 = vmatpush.msra.mxu0 0.0
    %459 = vmatpush.msra.mxu0 0.0
    %460 = vmatpush.msra.mxu0 0.0
    %461 = vmatpush.msra.mxu0 0.0
    %462 = vmatpush.msra.mxu0 0.0
    %463 = vmatpush.msra.mxu0 0.0
    %464 = vmatpush.msra.mxu0 0.0
    %465 = vmatpush.msra.mxu0 0.0
    %466 = vmatpush.msra.mxu0 0.0
    %467 = vmatpush.msra.mxu0 %v117
    %468 = vmatpush.msra.mxu0 %v116
    %469 = vmatpush.msra.mxu0 %v115
    %470 = vmatpush.msra.mxu0 %v114
    %471 = vmatmul.f32.gmra.mxu0 %v453
    %v472 = vpop.f32.mrf.mxu0
    %v473 = vadd.f32 %v130, %v472
    %474 = vdwg.mxu0
    %475 = vmatpush.msra.mxu0 0.0
    %476 = vmatpush.msra.mxu0 0.0
    %477 = vmatpush.msra.mxu0 0.0
    %478 = vmatpush.msra.mxu0 0.0
    %479 = vmatpush.msra.mxu0 0.0
    %480 = vmatpush.msra.mxu0 0.0
    %481 = vmatpush.msra.mxu0 0.0
    %482 = vmatpush.msra.mxu0 0.0
    %483 = vmatpush.msra.mxu0 0.0
    %484 = vmatpush.msra.mxu0 0.0
    %485 = vmatpush.msra.mxu0 0.0
    %486 = vmatpush.msra.mxu0 0.0
    %487 = vmatpush.msra.mxu0 %v122
    %488 = vmatpush.msra.mxu0 %v121
    %489 = vmatpush.msra.mxu0 %v120
    %490 = vmatpush.msra.mxu0 %v119
    %491 = vmatmul.f32.gmra.mxu0 %v453
    %v492 = vpop.f32.mrf.mxu0
    %v493 = vadd.f32 %v135, %v492
    %494 = vdwg.mxu0
    %495 = vmatpush.msra.mxu0 0.0
    %496 = vmatpush.msra.mxu0 0.0
    %497 = vmatpush.msra.mxu0 0.0
    %498 = vmatpush.msra.mxu0 0.0
    %499 = vmatpush.msra.mxu0 0.0
    %500 = vmatpush.msra.mxu0 0.0
    %501 = vmatpush.msra.mxu0 0.0
    %502 = vmatpush.msra.mxu0 0.0
    %503 = vmatpush.msra.mxu0 0.0
    %504 = vmatpush.msra.mxu0 0.0
    %505 = vmatpush.msra.mxu0 0.0
    %506 = vmatpush.msra.mxu0 0.0
    %507 = vmatpush.msra.mxu0 %v127
    %508 = vmatpush.msra.mxu0 %v126
    %509 = vmatpush.msra.mxu0 %v125
    %510 = vmatpush.msra.mxu0 %v124
    %511 = vmatmul.f32.gmra.mxu0 %v453
    %v512 = vpop.f32.mrf.mxu0
    %v513 = vadd.f32 %v140, %v512
    %514 = vdwg.mxu0
    %v515 = vadd.f32 %v172, %v473
    %v516 = vxor.u32 %v515, 2147483648
    %v517 = vmul.f32 %v516, 1.442695
    %v518 = vpow.pop %v517
    %v519 = vadd.f32 %v518, 1.0
    %v520 = vrcp.pop %v519
    %v521 = vmul.f32 %v519, %v520
    %v522 = vsub.f32 1.0, %v521
    %v523 = vmul.f32 %v520, %v522
    %v524 = vadd.f32 %v520, %v523
    %vm525 = vweird.f32 %v519
    %vm526 = vweird.f32 %v520
    %vm527 = vmor %vm525, %vm526
    %v528 = vsel %vm527, %v520, %v524
    %v529 = vand.u32 2147483647, %v519
    %vm530 = vcmp.eq.f32.partialorder %v529, 8.507059e+37
    %v531 = vand.u32 %v519, 2147483648
    %v532 = vor.u32 1.1754944e-38, %v531
    %v533 = vsel %vm530, %v532, %v528
    %v534 = vmul.f32 1.0, %v533
    %v535 = vadd.f32 %v200, %v493
    %v536 = vxor.u32 %v535, 2147483648
    %v537 = vmul.f32 %v536, 1.442695
    %v538 = vpow.pop %v537
    %v539 = vadd.f32 %v538, 1.0
    %v540 = vrcp.pop %v539
    %v541 = vmul.f32 %v539, %v540
    %v542 = vsub.f32 1.0, %v541
    %v543 = vmul.f32 %v540, %v542
    %v544 = vadd.f32 %v540, %v543
    %vm545 = vweird.f32 %v539
    %vm546 = vweird.f32 %v540
    %vm547 = vmor %vm545, %vm546
    %v548 = vsel %vm547, %v540, %v544
    %v549 = vand.u32 2147483647, %v539
    %vm550 = vcmp.eq.f32.partialorder %v549, 8.507059e+37
    %v551 = vand.u32 %v539, 2147483648
    %v552 = vor.u32 1.1754944e-38, %v551
    %v553 = vsel %vm550, %v552, %v548
    %v554 = vmul.f32 1.0, %v553
    %v555 = vmul.f32 %v534, %v513
    %v556 = vadd.f32 %v228, %v555
    %v557 = vtanh.pop %v556
    %v558 = vsub.f32 1.0, %v554
    %v559 = vmul.f32 %v558, %v557
    %v560 = vmul.f32 %v554, %v449
    %v561 = vadd.f32 %v559, %v560
    %s562 = scalar_lea.vmem [#allocation2], 16
    %563 = vst.msk [vmem:[%s562] sm:$0xff] %vm148, %v561
    %v565 = vsel %vm148, %v561, 0
    %567 = vmatpush.msra.mxu0 0.0
    %568 = vmatpush.msra.mxu0 0.0
    %569 = vmatpush.msra.mxu0 0.0
    %570 = vmatpush.msra.mxu0 0.0
    %571 = vmatpush.msra.mxu0 0.0
    %572 = vmatpush.msra.mxu0 0.0
    %573 = vmatpush.msra.mxu0 0.0
    %574 = vmatpush.msra.mxu0 0.0
    %575 = vmatpush.msra.mxu0 0.0
    %576 = vmatpush.msra.mxu0 0.0
    %577 = vmatpush.msra.mxu0 0.0
    %578 = vmatpush.msra.mxu0 0.0
    %579 = vmatpush.msra.mxu0 %v117
    %580 = vmatpush.msra.mxu0 %v116
    %581 = vmatpush.msra.mxu0 %v115
    %582 = vmatpush.msra.mxu0 %v114
    %583 = vmatmul.f32.gmra.mxu0 %v565
    %v584 = vpop.f32.mrf.mxu0
    %v585 = vadd.f32 %v130, %v584
    %586 = vdwg.mxu0
    %587 = vmatpush.msra.mxu0 0.0
    %588 = vmatpush.msra.mxu0 0.0
    %589 = vmatpush.msra.mxu0 0.0
    %590 = vmatpush.msra.mxu0 0.0
    %591 = vmatpush.msra.mxu0 0.0
    %592 = vmatpush.msra.mxu0 0.0
    %593 = vmatpush.msra.mxu0 0.0
    %594 = vmatpush.msra.mxu0 0.0
    %595 = vmatpush.msra.mxu0 0.0
    %596 = vmatpush.msra.mxu0 0.0
    %597 = vmatpush.msra.mxu0 0.0
    %598 = vmatpush.msra.mxu0 0.0
    %599 = vmatpush.msra.mxu0 %v122
    %600 = vmatpush.msra.mxu0 %v121
    %601 = vmatpush.msra.mxu0 %v120
    %602 = vmatpush.msra.mxu0 %v119
    %603 = vmatmul.f32.gmra.mxu0 %v565
    %v604 = vpop.f32.mrf.mxu0
    %v605 = vadd.f32 %v135, %v604
    %606 = vdwg.mxu0
    %607 = vmatpush.msra.mxu0 0.0
    %608 = vmatpush.msra.mxu0 0.0
    %609 = vmatpush.msra.mxu0 0.0
    %610 = vmatpush.msra.mxu0 0.0
    %611 = vmatpush.msra.mxu0 0.0
    %612 = vmatpush.msra.mxu0 0.0
    %613 = vmatpush.msra.mxu0 0.0
    %614 = vmatpush.msra.mxu0 0.0
    %615 = vmatpush.msra.mxu0 0.0
    %616 = vmatpush.msra.mxu0 0.0
    %617 = vmatpush.msra.mxu0 0.0
    %618 = vmatpush.msra.mxu0 0.0
    %619 = vmatpush.msra.mxu0 %v127
    %620 = vmatpush.msra.mxu0 %v126
    %621 = vmatpush.msra.mxu0 %v125
    %622 = vmatpush.msra.mxu0 %v124
    %623 = vmatmul.f32.gmra.mxu0 %v565
    %v624 = vpop.f32.mrf.mxu0
    %v625 = vadd.f32 %v140, %v624
    %626 = vdwg.mxu0
    %v627 = vadd.f32 %v172, %v585
    %v628 = vxor.u32 %v627, 2147483648
    %v629 = vmul.f32 %v628, 1.442695
    %v630 = vpow.pop %v629
    %v631 = vadd.f32 %v630, 1.0
    %v632 = vrcp.pop %v631
    %v633 = vmul.f32 %v631, %v632
    %v634 = vsub.f32 1.0, %v633
    %v635 = vmul.f32 %v632, %v634
    %v636 = vadd.f32 %v632, %v635
    %vm637 = vweird.f32 %v631
    %vm638 = vweird.f32 %v632
    %vm639 = vmor %vm637, %vm638
    %v640 = vsel %vm639, %v632, %v636
    %v641 = vand.u32 2147483647, %v631
    %vm642 = vcmp.eq.f32.partialorder %v641, 8.507059e+37
    %v643 = vand.u32 %v631, 2147483648
    %v644 = vor.u32 1.1754944e-38, %v643
    %v645 = vsel %vm642, %v644, %v640
    %v646 = vmul.f32 1.0, %v645
    %v647 = vadd.f32 %v200, %v605
    %v648 = vxor.u32 %v647, 2147483648
    %v649 = vmul.f32 %v648, 1.442695
    %v650 = vpow.pop %v649
    %v651 = vadd.f32 %v650, 1.0
    %v652 = vrcp.pop %v651
    %v653 = vmul.f32 %v651, %v652
    %v654 = vsub.f32 1.0, %v653
    %v655 = vmul.f32 %v652, %v654
    %v656 = vadd.f32 %v652, %v655
    %vm657 = vweird.f32 %v651
    %vm658 = vweird.f32 %v652
    %vm659 = vmor %vm657, %vm658
    %v660 = vsel %vm659, %v652, %v656
    %v661 = vand.u32 2147483647, %v651
    %vm662 = vcmp.eq.f32.partialorder %v661, 8.507059e+37
    %v663 = vand.u32 %v651, 2147483648
    %v664 = vor.u32 1.1754944e-38, %v663
    %v665 = vsel %vm662, %v664, %v660
    %v666 = vmul.f32 1.0, %v665
    %v667 = vmul.f32 %v646, %v625
    %v668 = vadd.f32 %v228, %v667
    %v669 = vtanh.pop %v668
    %v670 = vsub.f32 1.0, %v666
    %v671 = vmul.f32 %v670, %v669
    %v672 = vmul.f32 %v666, %v561
    %v673 = vadd.f32 %v671, %v672
    %s674 = scalar_lea.vmem [#allocation2], 24
    %675 = vst.msk [vmem:[%s674] sm:$0xff] %vm148, %v673
    %v677 = vsel %vm148, %v673, 0
    %679 = vmatpush.msra.mxu0 0.0
    %680 = vmatpush.msra.mxu0 0.0
    %681 = vmatpush.msra.mxu0 0.0
    %682 = vmatpush.msra.mxu0 0.0
    %683 = vmatpush.msra.mxu0 0.0
    %684 = vmatpush.msra.mxu0 0.0
    %685 = vmatpush.msra.mxu0 0.0
    %686 = vmatpush.msra.mxu0 0.0
    %687 = vmatpush.msra.mxu0 0.0
    %688 = vmatpush.msra.mxu0 0.0
    %689 = vmatpush.msra.mxu0 0.0
    %690 = vmatpush.msra.mxu0 0.0
    %691 = vmatpush.msra.mxu0 %v117
    %692 = vmatpush.msra.mxu0 %v116
    %693 = vmatpush.msra.mxu0 %v115
    %694 = vmatpush.msra.mxu0 %v114
    %695 = vmatmul.f32.gmra.mxu0 %v677
    %v696 = vpop.f32.mrf.mxu0
    %v697 = vadd.f32 %v130, %v696
    %698 = vdwg.mxu0
    %699 = vmatpush.msra.mxu0 0.0
    %700 = vmatpush.msra.mxu0 0.0
    %701 = vmatpush.msra.mxu0 0.0
    %702 = vmatpush.msra.mxu0 0.0
    %703 = vmatpush.msra.mxu0 0.0
    %704 = vmatpush.msra.mxu0 0.0
    %705 = vmatpush.msra.mxu0 0.0
    %706 = vmatpush.msra.mxu0 0.0
    %707 = vmatpush.msra.mxu0 0.0
    %708 = vmatpush.msra.mxu0 0.0
    %709 = vmatpush.msra.mxu0 0.0
    %710 = vmatpush.msra.mxu0 0.0
    %711 = vmatpush.msra.mxu0 %v122
    %712 = vmatpush.msra.mxu0 %v121
    %713 = vmatpush.msra.mxu0 %v120
    %714 = vmatpush.msra.mxu0 %v119
    %715 = vmatmul.f32.gmra.mxu0 %v677
    %v716 = vpop.f32.mrf.mxu0
    %v717 = vadd.f32 %v135, %v716
    %718 = vdwg.mxu0
    %719 = vmatpush.msra.mxu0 0.0
    %720 = vmatpush.msra.mxu0 0.0
    %721 = vmatpush.msra.mxu0 0.0
    %722 = vmatpush.msra.mxu0 0.0
    %723 = vmatpush.msra.mxu0 0.0
    %724 = vmatpush.msra.mxu0 0.0
    %725 = vmatpush.msra.mxu0 0.0
    %726 = vmatpush.msra.mxu0 0.0
    %727 = vmatpush.msra.mxu0 0.0
    %728 = vmatpush.msra.mxu0 0.0
    %729 = vmatpush.msra.mxu0 0.0
    %730 = vmatpush.msra.mxu0 0.0
    %731 = vmatpush.msra.mxu0 %v127
    %732 = vmatpush.msra.mxu0 %v126
    %733 = vmatpush.msra.mxu0 %v125
    %734 = vmatpush.msra.mxu0 %v124
    %735 = vmatmul.f32.gmra.mxu0 %v677
    %v736 = vpop.f32.mrf.mxu0
    %v737 = vadd.f32 %v140, %v736
    %738 = vdwg.mxu0
    %v739 = vadd.f32 %v172, %v697
    %v740 = vxor.u32 %v739, 2147483648
    %v741 = vmul.f32 %v740, 1.442695
    %v742 = vpow.pop %v741
    %v743 = vadd.f32 %v742, 1.0
    %v744 = vrcp.pop %v743
    %v745 = vmul.f32 %v743, %v744
    %v746 = vsub.f32 1.0, %v745
    %v747 = vmul.f32 %v744, %v746
    %v748 = vadd.f32 %v744, %v747
    %vm749 = vweird.f32 %v743
    %vm750 = vweird.f32 %v744
    %vm751 = vmor %vm749, %vm750
    %v752 = vsel %vm751, %v744, %v748
    %v753 = vand.u32 2147483647, %v743
    %vm754 = vcmp.eq.f32.partialorder %v753, 8.507059e+37
    %v755 = vand.u32 %v743, 2147483648
    %v756 = vor.u32 1.1754944e-38, %v755
    %v757 = vsel %vm754, %v756, %v752
    %v758 = vmul.f32 1.0, %v757
    %v759 = vadd.f32 %v200, %v717
    %v760 = vxor.u32 %v759, 2147483648
    %v761 = vmul.f32 %v760, 1.442695
    %v762 = vpow.pop %v761
    %v763 = vadd.f32 %v762, 1.0
    %v764 = vrcp.pop %v763
    %v765 = vmul.f32 %v763, %v764
    %v766 = vsub.f32 1.0, %v765
    %v767 = vmul.f32 %v764, %v766
    %v768 = vadd.f32 %v764, %v767
    %vm769 = vweird.f32 %v763
    %vm770 = vweird.f32 %v764
    %vm771 = vmor %vm769, %vm770
    %v772 = vsel %vm771, %v764, %v768
    %v773 = vand.u32 2147483647, %v763
    %vm774 = vcmp.eq.f32.partialorder %v773, 8.507059e+37
    %v775 = vand.u32 %v763, 2147483648
    %v776 = vor.u32 1.1754944e-38, %v775
    %v777 = vsel %vm774, %v776, %v772
    %v778 = vmul.f32 1.0, %v777
    %v779 = vmul.f32 %v758, %v737
    %v780 = vadd.f32 %v228, %v779
    %v781 = vtanh.pop %v780
    %v782 = vsub.f32 1.0, %v778
    %v783 = vmul.f32 %v782, %v781
    %v784 = vmul.f32 %v778, %v673
    %v785 = vadd.f32 %v783, %v784
    %s786 = scalar_lea.vmem [#allocation2], 32
    %787 = vst.msk [vmem:[%s786] sm:$0xff] %vm148, %v785
    %v789 = vsel %vm148, %v785, 0
    %791 = vmatpush.msra.mxu0 0.0
    %792 = vmatpush.msra.mxu0 0.0
    %793 = vmatpush.msra.mxu0 0.0
    %794 = vmatpush.msra.mxu0 0.0
    %795 = vmatpush.msra.mxu0 0.0
    %796 = vmatpush.msra.mxu0 0.0
    %797 = vmatpush.msra.mxu0 0.0
    %798 = vmatpush.msra.mxu0 0.0
    %799 = vmatpush.msra.mxu0 0.0
    %800 = vmatpush.msra.mxu0 0.0
    %801 = vmatpush.msra.mxu0 0.0
    %802 = vmatpush.msra.mxu0 0.0
    %803 = vmatpush.msra.mxu0 %v117
    %804 = vmatpush.msra.mxu0 %v116
    %805 = vmatpush.msra.mxu0 %v115
    %806 = vmatpush.msra.mxu0 %v114
    %807 = vmatmul.f32.gmra.mxu0 %v789
    %v808 = vpop.f32.mrf.mxu0
    %v809 = vadd.f32 %v130, %v808
    %810 = vdwg.mxu0
    %811 = vmatpush.msra.mxu0 0.0
    %812 = vmatpush.msra.mxu0 0.0
    %813 = vmatpush.msra.mxu0 0.0
    %814 = vmatpush.msra.mxu0 0.0
    %815 = vmatpush.msra.mxu0 0.0
    %816 = vmatpush.msra.mxu0 0.0
    %817 = vmatpush.msra.mxu0 0.0
    %818 = vmatpush.msra.mxu0 0.0
    %819 = vmatpush.msra.mxu0 0.0
    %820 = vmatpush.msra.mxu0 0.0
    %821 = vmatpush.msra.mxu0 0.0
    %822 = vmatpush.msra.mxu0 0.0
    %823 = vmatpush.msra.mxu0 %v122
    %824 = vmatpush.msra.mxu0 %v121
    %825 = vmatpush.msra.mxu0 %v120
    %826 = vmatpush.msra.mxu0 %v119
    %827 = vmatmul.f32.gmra.mxu0 %v789
    %v828 = vpop.f32.mrf.mxu0
    %v829 = vadd.f32 %v135, %v828
    %830 = vdwg.mxu0
    %831 = vmatpush.msra.mxu0 0.0
    %832 = vmatpush.msra.mxu0 0.0
    %833 = vmatpush.msra.mxu0 0.0
    %834 = vmatpush.msra.mxu0 0.0
    %835 = vmatpush.msra.mxu0 0.0
    %836 = vmatpush.msra.mxu0 0.0
    %837 = vmatpush.msra.mxu0 0.0
    %838 = vmatpush.msra.mxu0 0.0
    %839 = vmatpush.msra.mxu0 0.0
    %840 = vmatpush.msra.mxu0 0.0
    %841 = vmatpush.msra.mxu0 0.0
    %842 = vmatpush.msra.mxu0 0.0
    %843 = vmatpush.msra.mxu0 %v127
    %844 = vmatpush.msra.mxu0 %v126
    %845 = vmatpush.msra.mxu0 %v125
    %846 = vmatpush.msra.mxu0 %v124
    %847 = vmatmul.f32.gmra.mxu0 %v789
    %v848 = vpop.f32.mrf.mxu0
    %v849 = vadd.f32 %v140, %v848
    %850 = vdwg.mxu0
    %v851 = vadd.f32 %v172, %v809
    %v852 = vxor.u32 %v851, 2147483648
    %v853 = vmul.f32 %v852, 1.442695
    %v854 = vpow.pop %v853
    %v855 = vadd.f32 %v854, 1.0
    %v856 = vrcp.pop %v855
    %v857 = vmul.f32 %v855, %v856
    %v858 = vsub.f32 1.0, %v857
    %v859 = vmul.f32 %v856, %v858
    %v860 = vadd.f32 %v856, %v859
    %vm861 = vweird.f32 %v855
    %vm862 = vweird.f32 %v856
    %vm863 = vmor %vm861, %vm862
    %v864 = vsel %vm863, %v856, %v860
    %v865 = vand.u32 2147483647, %v855
    %vm866 = vcmp.eq.f32.partialorder %v865, 8.507059e+37
    %v867 = vand.u32 %v855, 2147483648
    %v868 = vor.u32 1.1754944e-38, %v867
    %v869 = vsel %vm866, %v868, %v864
    %v870 = vmul.f32 1.0, %v869
    %v871 = vadd.f32 %v200, %v829
    %v872 = vxor.u32 %v871, 2147483648
    %v873 = vmul.f32 %v872, 1.442695
    %v874 = vpow.pop %v873
    %v875 = vadd.f32 %v874, 1.0
    %v876 = vrcp.pop %v875
    %v877 = vmul.f32 %v875, %v876
    %v878 = vsub.f32 1.0, %v877
    %v879 = vmul.f32 %v876, %v878
    %v880 = vadd.f32 %v876, %v879
    %vm881 = vweird.f32 %v875
    %vm882 = vweird.f32 %v876
    %vm883 = vmor %vm881, %vm882
    %v884 = vsel %vm883, %v876, %v880
    %v885 = vand.u32 2147483647, %v875
    %vm886 = vcmp.eq.f32.partialorder %v885, 8.507059e+37
    %v887 = vand.u32 %v875, 2147483648
    %v888 = vor.u32 1.1754944e-38, %v887
    %v889 = vsel %vm886, %v888, %v884
    %v890 = vmul.f32 1.0, %v889
    %v891 = vmul.f32 %v870, %v849
    %v892 = vadd.f32 %v228, %v891
    %v893 = vtanh.pop %v892
    %v894 = vsub.f32 1.0, %v890
    %v895 = vmul.f32 %v894, %v893
    %v896 = vmul.f32 %v890, %v785
    %v897 = vadd.f32 %v895, %v896
    %s898 = scalar_lea.vmem [#allocation2], 40
    %899 = vst.msk [vmem:[%s898] sm:$0xff] %vm148, %v897
    %v901 = vsel %vm148, %v897, 0
    %903 = vmatpush.msra.mxu0 0.0
    %904 = vmatpush.msra.mxu0 0.0
    %905 = vmatpush.msra.mxu0 0.0
    %906 = vmatpush.msra.mxu0 0.0
    %907 = vmatpush.msra.mxu0 0.0
    %908 = vmatpush.msra.mxu0 0.0
    %909 = vmatpush.msra.mxu0 0.0
    %910 = vmatpush.msra.mxu0 0.0
    %911 = vmatpush.msra.mxu0 0.0
    %912 = vmatpush.msra.mxu0 0.0
    %913 = vmatpush.msra.mxu0 0.0
    %914 = vmatpush.msra.mxu0 0.0
    %915 = vmatpush.msra.mxu0 %v117
    %916 = vmatpush.msra.mxu0 %v116
    %917 = vmatpush.msra.mxu0 %v115
    %918 = vmatpush.msra.mxu0 %v114
    %919 = vmatmul.f32.gmra.mxu0 %v901
    %v920 = vpop.f32.mrf.mxu0
    %v921 = vadd.f32 %v130, %v920
    %922 = vdwg.mxu0
    %923 = vmatpush.msra.mxu0 0.0
    %924 = vmatpush.msra.mxu0 0.0
    %925 = vmatpush.msra.mxu0 0.0
    %926 = vmatpush.msra.mxu0 0.0
    %927 = vmatpush.msra.mxu0 0.0
    %928 = vmatpush.msra.mxu0 0.0
    %929 = vmatpush.msra.mxu0 0.0
    %930 = vmatpush.msra.mxu0 0.0
    %931 = vmatpush.msra.mxu0 0.0
    %932 = vmatpush.msra.mxu0 0.0
    %933 = vmatpush.msra.mxu0 0.0
    %934 = vmatpush.msra.mxu0 0.0
    %935 = vmatpush.msra.mxu0 %v122
    %936 = vmatpush.msra.mxu0 %v121
    %937 = vmatpush.msra.mxu0 %v120
    %938 = vmatpush.msra.mxu0 %v119
    %939 = vmatmul.f32.gmra.mxu0 %v901
    %v940 = vpop.f32.mrf.mxu0
    %v941 = vadd.f32 %v135, %v940
    %942 = vdwg.mxu0
    %943 = vmatpush.msra.mxu0 0.0
    %944 = vmatpush.msra.mxu0 0.0
    %945 = vmatpush.msra.mxu0 0.0
    %946 = vmatpush.msra.mxu0 0.0
    %947 = vmatpush.msra.mxu0 0.0
    %948 = vmatpush.msra.mxu0 0.0
    %949 = vmatpush.msra.mxu0 0.0
    %950 = vmatpush.msra.mxu0 0.0
    %951 = vmatpush.msra.mxu0 0.0
    %952 = vmatpush.msra.mxu0 0.0
    %953 = vmatpush.msra.mxu0 0.0
    %954 = vmatpush.msra.mxu0 0.0
    %955 = vmatpush.msra.mxu0 %v127
    %956 = vmatpush.msra.mxu0 %v126
    %957 = vmatpush.msra.mxu0 %v125
    %958 = vmatpush.msra.mxu0 %v124
    %959 = vmatmul.f32.gmra.mxu0 %v901
    %v960 = vpop.f32.mrf.mxu0
    %v961 = vadd.f32 %v140, %v960
    %962 = vdwg.mxu0
    %v963 = vadd.f32 %v172, %v921
    %v964 = vxor.u32 %v963, 2147483648
    %v965 = vmul.f32 %v964, 1.442695
    %v966 = vpow.pop %v965
    %v967 = vadd.f32 %v966, 1.0
    %v968 = vrcp.pop %v967
    %v969 = vmul.f32 %v967, %v968
    %v970 = vsub.f32 1.0, %v969
    %v971 = vmul.f32 %v968, %v970
    %v972 = vadd.f32 %v968, %v971
    %vm973 = vweird.f32 %v967
    %vm974 = vweird.f32 %v968
    %vm975 = vmor %vm973, %vm974
    %v976 = vsel %vm975, %v968, %v972
    %v977 = vand.u32 2147483647, %v967
    %vm978 = vcmp.eq.f32.partialorder %v977, 8.507059e+37
    %v979 = vand.u32 %v967, 2147483648
    %v980 = vor.u32 1.1754944e-38, %v979
    %v981 = vsel %vm978, %v980, %v976
    %v982 = vmul.f32 1.0, %v981
    %v983 = vadd.f32 %v200, %v941
    %v984 = vxor.u32 %v983, 2147483648
    %v985 = vmul.f32 %v984, 1.442695
    %v986 = vpow.pop %v985
    %v987 = vadd.f32 %v986, 1.0
    %v988 = vrcp.pop %v987
    %v989 = vmul.f32 %v987, %v988
    %v990 = vsub.f32 1.0, %v989
    %v991 = vmul.f32 %v988, %v990
    %v992 = vadd.f32 %v988, %v991
    %vm993 = vweird.f32 %v987
    %vm994 = vweird.f32 %v988
    %vm995 = vmor %vm993, %vm994
    %v996 = vsel %vm995, %v988, %v992
    %v997 = vand.u32 2147483647, %v987
    %vm998 = vcmp.eq.f32.partialorder %v997, 8.507059e+37
    %v999 = vand.u32 %v987, 2147483648
    %v1000 = vor.u32 1.1754944e-38, %v999
    %v1001 = vsel %vm998, %v1000, %v996
    %v1002 = vmul.f32 1.0, %v1001
    %v1003 = vmul.f32 %v982, %v961
    %v1004 = vadd.f32 %v228, %v1003
    %v1005 = vtanh.pop %v1004
    %v1006 = vsub.f32 1.0, %v1002
    %v1007 = vmul.f32 %v1006, %v1005
    %v1008 = vmul.f32 %v1002, %v897
    %v1009 = vadd.f32 %v1007, %v1008
    %s1010 = scalar_lea.vmem [#allocation2], 48
    %1011 = vst.msk [vmem:[%s1010] sm:$0xff] %vm148, %v1009
    %v1013 = vsel %vm148, %v1009, 0
    %1015 = vmatpush.msra.mxu0 0.0
    %1016 = vmatpush.msra.mxu0 0.0
    %1017 = vmatpush.msra.mxu0 0.0
    %1018 = vmatpush.msra.mxu0 0.0
    %1019 = vmatpush.msra.mxu0 0.0
    %1020 = vmatpush.msra.mxu0 0.0
    %1021 = vmatpush.msra.mxu0 0.0
    %1022 = vmatpush.msra.mxu0 0.0
    %1023 = vmatpush.msra.mxu0 0.0
    %1024 = vmatpush.msra.mxu0 0.0
    %1025 = vmatpush.msra.mxu0 0.0
    %1026 = vmatpush.msra.mxu0 0.0
    %1027 = vmatpush.msra.mxu0 %v117
    %1028 = vmatpush.msra.mxu0 %v116
    %1029 = vmatpush.msra.mxu0 %v115
    %1030 = vmatpush.msra.mxu0 %v114
    %1031 = vmatmul.f32.gmra.mxu0 %v1013
    %v1032 = vpop.f32.mrf.mxu0
    %v1033 = vadd.f32 %v130, %v1032
    %1034 = vdwg.mxu0
    %1035 = vmatpush.msra.mxu0 0.0
    %1036 = vmatpush.msra.mxu0 0.0
    %1037 = vmatpush.msra.mxu0 0.0
    %1038 = vmatpush.msra.mxu0 0.0
    %1039 = vmatpush.msra.mxu0 0.0
    %1040 = vmatpush.msra.mxu0 0.0
    %1041 = vmatpush.msra.mxu0 0.0
    %1042 = vmatpush.msra.mxu0 0.0
    %1043 = vmatpush.msra.mxu0 0.0
    %1044 = vmatpush.msra.mxu0 0.0
    %1045 = vmatpush.msra.mxu0 0.0
    %1046 = vmatpush.msra.mxu0 0.0
    %1047 = vmatpush.msra.mxu0 %v122
    %1048 = vmatpush.msra.mxu0 %v121
    %1049 = vmatpush.msra.mxu0 %v120
    %1050 = vmatpush.msra.mxu0 %v119
    %1051 = vmatmul.f32.gmra.mxu0 %v1013
    %v1052 = vpop.f32.mrf.mxu0
    %v1053 = vadd.f32 %v135, %v1052
    %1054 = vdwg.mxu0
    %1055 = vmatpush.msra.mxu0 0.0
    %1056 = vmatpush.msra.mxu0 0.0
    %1057 = vmatpush.msra.mxu0 0.0
    %1058 = vmatpush.msra.mxu0 0.0
    %1059 = vmatpush.msra.mxu0 0.0
    %1060 = vmatpush.msra.mxu0 0.0
    %1061 = vmatpush.msra.mxu0 0.0
    %1062 = vmatpush.msra.mxu0 0.0
    %1063 = vmatpush.msra.mxu0 0.0
    %1064 = vmatpush.msra.mxu0 0.0
    %1065 = vmatpush.msra.mxu0 0.0
    %1066 = vmatpush.msra.mxu0 0.0
    %1067 = vmatpush.msra.mxu0 %v127
    %1068 = vmatpush.msra.mxu0 %v126
    %1069 = vmatpush.msra.mxu0 %v125
    %1070 = vmatpush.msra.mxu0 %v124
    %1071 = vmatmul.f32.gmra.mxu0 %v1013
    %v1072 = vpop.f32.mrf.mxu0
    %v1073 = vadd.f32 %v140, %v1072
    %1074 = vdwg.mxu0
    %v1075 = vadd.f32 %v172, %v1033
    %v1076 = vxor.u32 %v1075, 2147483648
    %v1077 = vmul.f32 %v1076, 1.442695
    %v1078 = vpow.pop %v1077
    %v1079 = vadd.f32 %v1078, 1.0
    %v1080 = vrcp.pop %v1079
    %v1081 = vmul.f32 %v1079, %v1080
    %v1082 = vsub.f32 1.0, %v1081
    %v1083 = vmul.f32 %v1080, %v1082
    %v1084 = vadd.f32 %v1080, %v1083
    %vm1085 = vweird.f32 %v1079
    %vm1086 = vweird.f32 %v1080
    %vm1087 = vmor %vm1085, %vm1086
    %v1088 = vsel %vm1087, %v1080, %v1084
    %v1089 = vand.u32 2147483647, %v1079
    %vm1090 = vcmp.eq.f32.partialorder %v1089, 8.507059e+37
    %v1091 = vand.u32 %v1079, 2147483648
    %v1092 = vor.u32 1.1754944e-38, %v1091
    %v1093 = vsel %vm1090, %v1092, %v1088
    %v1094 = vmul.f32 1.0, %v1093
    %v1095 = vadd.f32 %v200, %v1053
    %v1096 = vxor.u32 %v1095, 2147483648
    %v1097 = vmul.f32 %v1096, 1.442695
    %v1098 = vpow.pop %v1097
    %v1099 = vadd.f32 %v1098, 1.0
    %v1100 = vrcp.pop %v1099
    %v1101 = vmul.f32 %v1099, %v1100
    %v1102 = vsub.f32 1.0, %v1101
    %v1103 = vmul.f32 %v1100, %v1102
    %v1104 = vadd.f32 %v1100, %v1103
    %vm1105 = vweird.f32 %v1099
    %vm1106 = vweird.f32 %v1100
    %vm1107 = vmor %vm1105, %vm1106
    %v1108 = vsel %vm1107, %v1100, %v1104
    %v1109 = vand.u32 2147483647, %v1099
    %vm1110 = vcmp.eq.f32.partialorder %v1109, 8.507059e+37
    %v1111 = vand.u32 %v1099, 2147483648
    %v1112 = vor.u32 1.1754944e-38, %v1111
    %v1113 = vsel %vm1110, %v1112, %v1108
    %v1114 = vmul.f32 1.0, %v1113
    %v1115 = vmul.f32 %v1094, %v1073
    %v1116 = vadd.f32 %v228, %v1115
    %v1117 = vtanh.pop %v1116
    %v1118 = vsub.f32 1.0, %v1114
    %v1119 = vmul.f32 %v1118, %v1117
    %v1120 = vmul.f32 %v1114, %v1009
    %v1121 = vadd.f32 %v1119, %v1120
    %s1122 = scalar_lea.vmem [#allocation2], 56
    %1123 = vst.msk [vmem:[%s1122] sm:$0xff] %vm148, %v1121
    %s1124 = scalar_lea.vmem [#allocation11], 96
    %v1125 = vld [vmem:[%s1124] sm:$0xff]
    %v1126 = vld [vmem:[%s1124 + $0x8] sm:$0xff]
    %v1127 = vld [vmem:[%s1124 + $0x10] sm:$0xff]
    %v1128 = vld [vmem:[%s1124 + $0x18] sm:$0xff]
    %s1129 = scalar_lea.vmem [#allocation11], 128
    %v1130 = vld [vmem:[%s1129] sm:$0xff]
    %v1131 = vld [vmem:[%s1129 + $0x8] sm:$0xff]
    %v1132 = vld [vmem:[%s1129 + $0x10] sm:$0xff]
    %v1133 = vld [vmem:[%s1129 + $0x18] sm:$0xff]
    %s1134 = scalar_lea.vmem [#allocation11], 160
    %v1135 = vld [vmem:[%s1134] sm:$0xff]
    %v1136 = vld [vmem:[%s1134 + $0x8] sm:$0xff]
    %v1137 = vld [vmem:[%s1134 + $0x10] sm:$0xff]
    %v1138 = vld [vmem:[%s1134 + $0x18] sm:$0xff]
    %s1139 = scalar_lea.vmem [#allocation14], 3
    %v1140 = vld [vmem:[%s1139] sm:$0x1]
    %v1142 = vperm.slane %v1140, 0
    %s1144 = scalar_lea.vmem [#allocation14], 4
    %v1145 = vld [vmem:[%s1144] sm:$0x1]
    %v1147 = vperm.slane %v1145, 0
    %s1149 = scalar_lea.vmem [#allocation14], 5
    %v1150 = vld [vmem:[%s1149] sm:$0x1]
    %v1152 = vperm.slane %v1150, 0
    %v1154 = vld [vmem:[#allocation2] sm:$0xff]
    %v1155 = vld [vmem:[#allocation2 + $0x8] sm:$0xff]
    %v1156 = vld [vmem:[#allocation2 + $0x10] sm:$0xff]
    %v1157 = vld [vmem:[#allocation2 + $0x18] sm:$0xff]
    %v1158 = vld [vmem:[#allocation2 + $0x20] sm:$0xff]
    %v1159 = vld [vmem:[#allocation2 + $0x28] sm:$0xff]
    %v1160 = vld [vmem:[#allocation2 + $0x30] sm:$0xff]
    %v1161 = vld [vmem:[#allocation2 + $0x38] sm:$0xff]
    %s1162 = scalar_lea.vmem [#allocation10], 96
    %v1163 = vld [vmem:[%s1162] sm:$0xff]
    %v1164 = vld [vmem:[%s1162 + $0x8] sm:$0xff]
    %v1165 = vld [vmem:[%s1162 + $0x10] sm:$0xff]
    %v1166 = vld [vmem:[%s1162 + $0x18] sm:$0xff]
    %s1167 = scalar_lea.vmem [#allocation13], 3
    %v1168 = vld [vmem:[%s1167] sm:$0x1]
    %v1170 = vperm.slane %v1168, 0
    %v1173 = vsel %vm148, %v1154, 0
    %v1176 = vsel %vm148, %v1155, 0
    %v1179 = vsel %vm148, %v1156, 0
    %v1182 = vsel %vm148, %v1157, 0
    %v1185 = vsel %vm148, %v1158, 0
    %v1188 = vsel %vm148, %v1159, 0
    %v1191 = vsel %vm148, %v1160, 0
    %v1194 = vsel %vm148, %v1161, 0
    %1196 = vmatpush.msra.mxu0 0.0
    %1197 = vmatpush.msra.mxu0 0.0
    %1198 = vmatpush.msra.mxu0 0.0
    %1199 = vmatpush.msra.mxu0 0.0
    %1200 = vmatpush.msra.mxu0 0.0
    %1201 = vmatpush.msra.mxu0 0.0
    %1202 = vmatpush.msra.mxu0 0.0
    %1203 = vmatpush.msra.mxu0 0.0
    %1204 = vmatpush.msra.mxu0 0.0
    %1205 = vmatpush.msra.mxu0 0.0
    %1206 = vmatpush.msra.mxu0 0.0
    %1207 = vmatpush.msra.mxu0 0.0
    %1208 = vmatpush.msra.mxu0 %v1166
    %1209 = vmatpush.msra.mxu0 %v1165
    %1210 = vmatpush.msra.mxu0 %v1164
    %1211 = vmatpush.msra.mxu0 %v1163
    %1212 = vmatmul.f32.gmra.mxu0 %v1173
    %v1213 = vpop.f32.mrf.mxu0
    %v1214 = vadd.f32 %v1170, %v1213
    %1215 = vmatmul.f32.gmra.mxu0 %v1176
    %v1216 = vpop.f32.mrf.mxu0
    %v1217 = vadd.f32 %v1170, %v1216
    %1218 = vmatmul.f32.gmra.mxu0 %v1179
    %v1219 = vpop.f32.mrf.mxu0
    %v1220 = vadd.f32 %v1170, %v1219
    %1221 = vmatmul.f32.gmra.mxu0 %v1182
    %v1222 = vpop.f32.mrf.mxu0
    %v1223 = vadd.f32 %v1170, %v1222
    %1224 = vmatmul.f32.gmra.mxu0 %v1185
    %v1225 = vpop.f32.mrf.mxu0
    %v1226 = vadd.f32 %v1170, %v1225
    %1227 = vmatmul.f32.gmra.mxu0 %v1188
    %v1228 = vpop.f32.mrf.mxu0
    %v1229 = vadd.f32 %v1170, %v1228
    %1230 = vmatmul.f32.gmra.mxu0 %v1191
    %v1231 = vpop.f32.mrf.mxu0
    %v1232 = vadd.f32 %v1170, %v1231
    %1233 = vmatmul.f32.gmra.mxu0 %v1194
    %v1234 = vpop.f32.mrf.mxu0
    %v1235 = vadd.f32 %v1170, %v1234
    %1236 = vdwg.mxu0
    %1237 = vst.msk [vmem:[#allocation3] sm:$0xff] %vm148, %v1214
    %1238 = vst.msk [vmem:[#allocation3 + $0x8] sm:$0xff] %vm148, %v1217
    %1239 = vst.msk [vmem:[#allocation3 + $0x10] sm:$0xff] %vm148, %v1220
    %1240 = vst.msk [vmem:[#allocation3 + $0x18] sm:$0xff] %vm148, %v1223
    %1241 = vst.msk [vmem:[#allocation3 + $0x20] sm:$0xff] %vm148, %v1226
    %1242 = vst.msk [vmem:[#allocation3 + $0x28] sm:$0xff] %vm148, %v1229
    %1243 = vst.msk [vmem:[#allocation3 + $0x30] sm:$0xff] %vm148, %v1232
    %1244 = vst.msk [vmem:[#allocation3 + $0x38] sm:$0xff] %vm148, %v1235
    %s1245 = scalar_lea.vmem [#allocation10], 128
    %v1246 = vld [vmem:[%s1245] sm:$0xff]
    %v1247 = vld [vmem:[%s1245 + $0x8] sm:$0xff]
    %v1248 = vld [vmem:[%s1245 + $0x10] sm:$0xff]
    %v1249 = vld [vmem:[%s1245 + $0x18] sm:$0xff]
    %s1250 = scalar_lea.vmem [#allocation13], 4
    %v1251 = vld [vmem:[%s1250] sm:$0x1]
    %v1253 = vperm.slane %v1251, 0
    %1255 = vmatpush.msra.mxu0 0.0
    %1256 = vmatpush.msra.mxu0 0.0
    %1257 = vmatpush.msra.mxu0 0.0
    %1258 = vmatpush.msra.mxu0 0.0
    %1259 = vmatpush.msra.mxu0 0.0
    %1260 = vmatpush.msra.mxu0 0.0
    %1261 = vmatpush.msra.mxu0 0.0
    %1262 = vmatpush.msra.mxu0 0.0
    %1263 = vmatpush.msra.mxu0 0.0
    %1264 = vmatpush.msra.mxu0 0.0
    %1265 = vmatpush.msra.mxu0 0.0
    %1266 = vmatpush.msra.mxu0 0.0
    %1267 = vmatpush.msra.mxu0 %v1249
    %1268 = vmatpush.msra.mxu0 %v1248
    %1269 = vmatpush.msra.mxu0 %v1247
    %1270 = vmatpush.msra.mxu0 %v1246
    %1271 = vmatmul.f32.gmra.mxu0 %v1173
    %v1272 = vpop.f32.mrf.mxu0
    %v1273 = vadd.f32 %v1253, %v1272
    %1274 = vmatmul.f32.gmra.mxu0 %v1176
    %v1275 = vpop.f32.mrf.mxu0
    %v1276 = vadd.f32 %v1253, %v1275
    %1277 = vmatmul.f32.gmra.mxu0 %v1179
    %v1278 = vpop.f32.mrf.mxu0
    %v1279 = vadd.f32 %v1253, %v1278
    %1280 = vmatmul.f32.gmra.mxu0 %v1182
    %v1281 = vpop.f32.mrf.mxu0
    %v1282 = vadd.f32 %v1253, %v1281
    %1283 = vmatmul.f32.gmra.mxu0 %v1185
    %v1284 = vpop.f32.mrf.mxu0
    %v1285 = vadd.f32 %v1253, %v1284
    %1286 = vmatmul.f32.gmra.mxu0 %v1188
    %v1287 = vpop.f32.mrf.mxu0
    %v1288 = vadd.f32 %v1253, %v1287
    %1289 = vmatmul.f32.gmra.mxu0 %v1191
    %v1290 = vpop.f32.mrf.mxu0
    %v1291 = vadd.f32 %v1253, %v1290
    %1292 = vmatmul.f32.gmra.mxu0 %v1194
    %v1293 = vpop.f32.mrf.mxu0
    %v1294 = vadd.f32 %v1253, %v1293
    %1295 = vdwg.mxu0
    %1296 = vst.msk [vmem:[#allocation4] sm:$0xff] %vm148, %v1273
    %1297 = vst.msk [vmem:[#allocation4 + $0x8] sm:$0xff] %vm148, %v1276
    %1298 = vst.msk [vmem:[#allocation4 + $0x10] sm:$0xff] %vm148, %v1279
    %1299 = vst.msk [vmem:[#allocation4 + $0x18] sm:$0xff] %vm148, %v1282
    %1300 = vst.msk [vmem:[#allocation4 + $0x20] sm:$0xff] %vm148, %v1285
    %1301 = vst.msk [vmem:[#allocation4 + $0x28] sm:$0xff] %vm148, %v1288
    %1302 = vst.msk [vmem:[#allocation4 + $0x30] sm:$0xff] %vm148, %v1291
    %1303 = vst.msk [vmem:[#allocation4 + $0x38] sm:$0xff] %vm148, %v1294
    %s1304 = scalar_lea.vmem [#allocation10], 160
    %v1305 = vld [vmem:[%s1304] sm:$0xff]
    %v1306 = vld [vmem:[%s1304 + $0x8] sm:$0xff]
    %v1307 = vld [vmem:[%s1304 + $0x10] sm:$0xff]
    %v1308 = vld [vmem:[%s1304 + $0x18] sm:$0xff]
    %s1309 = scalar_lea.vmem [#allocation13], 5
    %v1310 = vld [vmem:[%s1309] sm:$0x1]
    %v1312 = vperm.slane %v1310, 0
    %1314 = vmatpush.msra.mxu0 0.0
    %1315 = vmatpush.msra.mxu0 0.0
    %1316 = vmatpush.msra.mxu0 0.0
    %1317 = vmatpush.msra.mxu0 0.0
    %1318 = vmatpush.msra.mxu0 0.0
    %1319 = vmatpush.msra.mxu0 0.0
    %1320 = vmatpush.msra.mxu0 0.0
    %1321 = vmatpush.msra.mxu0 0.0
    %1322 = vmatpush.msra.mxu0 0.0
    %1323 = vmatpush.msra.mxu0 0.0
    %1324 = vmatpush.msra.mxu0 0.0
    %1325 = vmatpush.msra.mxu0 0.0
    %1326 = vmatpush.msra.mxu0 %v1308
    %1327 = vmatpush.msra.mxu0 %v1307
    %1328 = vmatpush.msra.mxu0 %v1306
    %1329 = vmatpush.msra.mxu0 %v1305
    %1330 = vmatmul.f32.gmra.mxu0 %v1173
    %v1331 = vpop.f32.mrf.mxu0
    %v1332 = vadd.f32 %v1312, %v1331
    %1333 = vmatmul.f32.gmra.mxu0 %v1176
    %v1334 = vpop.f32.mrf.mxu0
    %v1335 = vadd.f32 %v1312, %v1334
    %1336 = vmatmul.f32.gmra.mxu0 %v1179
    %v1337 = vpop.f32.mrf.mxu0
    %v1338 = vadd.f32 %v1312, %v1337
    %1339 = vmatmul.f32.gmra.mxu0 %v1182
    %v1340 = vpop.f32.mrf.mxu0
    %v1341 = vadd.f32 %v1312, %v1340
    %1342 = vmatmul.f32.gmra.mxu0 %v1185
    %v1343 = vpop.f32.mrf.mxu0
    %v1344 = vadd.f32 %v1312, %v1343
    %1345 = vmatmul.f32.gmra.mxu0 %v1188
    %v1346 = vpop.f32.mrf.mxu0
    %v1347 = vadd.f32 %v1312, %v1346
    %1348 = vmatmul.f32.gmra.mxu0 %v1191
    %v1349 = vpop.f32.mrf.mxu0
    %v1350 = vadd.f32 %v1312, %v1349
    %1351 = vmatmul.f32.gmra.mxu0 %v1194
    %v1352 = vpop.f32.mrf.mxu0
    %v1353 = vadd.f32 %v1312, %v1352
    %1354 = vdwg.mxu0
    %1355 = vst.msk [vmem:[#allocation5] sm:$0xff] %vm148, %v1332
    %1356 = vst.msk [vmem:[#allocation5 + $0x8] sm:$0xff] %vm148, %v1335
    %1357 = vst.msk [vmem:[#allocation5 + $0x10] sm:$0xff] %vm148, %v1338
    %1358 = vst.msk [vmem:[#allocation5 + $0x18] sm:$0xff] %vm148, %v1341
    %1359 = vst.msk [vmem:[#allocation5 + $0x20] sm:$0xff] %vm148, %v1344
    %1360 = vst.msk [vmem:[#allocation5 + $0x28] sm:$0xff] %vm148, %v1347
    %1361 = vst.msk [vmem:[#allocation5 + $0x30] sm:$0xff] %vm148, %v1350
    %1362 = vst.msk [vmem:[#allocation5 + $0x38] sm:$0xff] %vm148, %v1353
    %v1363 = vld [vmem:[#allocation3] sm:$0xff]
    %v1364 = vld [vmem:[#allocation4] sm:$0xff]
    %v1365 = vld [vmem:[#allocation5] sm:$0xff]
    %1366 = vmatpush.msra.mxu0 0.0
    %1367 = vmatpush.msra.mxu0 0.0
    %1368 = vmatpush.msra.mxu0 0.0
    %1369 = vmatpush.msra.mxu0 0.0
    %1370 = vmatpush.msra.mxu0 0.0
    %1371 = vmatpush.msra.mxu0 0.0
    %1372 = vmatpush.msra.mxu0 0.0
    %1373 = vmatpush.msra.mxu0 0.0
    %1374 = vmatpush.msra.mxu0 0.0
    %1375 = vmatpush.msra.mxu0 0.0
    %1376 = vmatpush.msra.mxu0 0.0
    %1377 = vmatpush.msra.mxu0 0.0
    %1378 = vmatpush.msra.mxu0 %v1128
    %1379 = vmatpush.msra.mxu0 %v1127
    %1380 = vmatpush.msra.mxu0 %v1126
    %1381 = vmatpush.msra.mxu0 %v1125
    %1382 = vmatmul.f32.gmra.mxu0 %v230
    %v1383 = vpop.f32.mrf.mxu0
    %v1384 = vadd.f32 %v1142, %v1383
    %1385 = vdwg.mxu0
    %1386 = vmatpush.msra.mxu0 0.0
    %1387 = vmatpush.msra.mxu0 0.0
    %1388 = vmatpush.msra.mxu0 0.0
    %1389 = vmatpush.msra.mxu0 0.0
    %1390 = vmatpush.msra.mxu0 0.0
    %1391 = vmatpush.msra.mxu0 0.0
    %1392 = vmatpush.msra.mxu0 0.0
    %1393 = vmatpush.msra.mxu0 0.0
    %1394 = vmatpush.msra.mxu0 0.0
    %1395 = vmatpush.msra.mxu0 0.0
    %1396 = vmatpush.msra.mxu0 0.0
    %1397 = vmatpush.msra.mxu0 0.0
    %1398 = vmatpush.msra.mxu0 %v1133
    %1399 = vmatpush.msra.mxu0 %v1132
    %1400 = vmatpush.msra.mxu0 %v1131
    %1401 = vmatpush.msra.mxu0 %v1130
    %1402 = vmatmul.f32.gmra.mxu0 %v230
    %v1403 = vpop.f32.mrf.mxu0
    %v1404 = vadd.f32 %v1147, %v1403
    %1405 = vdwg.mxu0
    %1406 = vmatpush.msra.mxu0 0.0
    %1407 = vmatpush.msra.mxu0 0.0
    %1408 = vmatpush.msra.mxu0 0.0
    %1409 = vmatpush.msra.mxu0 0.0
    %1410 = vmatpush.msra.mxu0 0.0
    %1411 = vmatpush.msra.mxu0 0.0
    %1412 = vmatpush.msra.mxu0 0.0
    %1413 = vmatpush.msra.mxu0 0.0
    %1414 = vmatpush.msra.mxu0 0.0
    %1415 = vmatpush.msra.mxu0 0.0
    %1416 = vmatpush.msra.mxu0 0.0
    %1417 = vmatpush.msra.mxu0 0.0
    %1418 = vmatpush.msra.mxu0 %v1138
    %1419 = vmatpush.msra.mxu0 %v1137
    %1420 = vmatpush.msra.mxu0 %v1136
    %1421 = vmatpush.msra.mxu0 %v1135
    %1422 = vmatmul.f32.gmra.mxu0 %v230
    %v1423 = vpop.f32.mrf.mxu0
    %v1424 = vadd.f32 %v1152, %v1423
    %1425 = vdwg.mxu0
    %v1426 = vadd.f32 %v1363, %v1384
    %v1427 = vxor.u32 %v1426, 2147483648
    %v1428 = vmul.f32 %v1427, 1.442695
    %v1429 = vpow.pop %v1428
    %v1430 = vadd.f32 %v1429, 1.0
    %v1431 = vrcp.pop %v1430
    %v1432 = vmul.f32 %v1430, %v1431
    %v1433 = vsub.f32 1.0, %v1432
    %v1434 = vmul.f32 %v1431, %v1433
    %v1435 = vadd.f32 %v1431, %v1434
    %vm1436 = vweird.f32 %v1430
    %vm1437 = vweird.f32 %v1431
    %vm1438 = vmor %vm1436, %vm1437
    %v1439 = vsel %vm1438, %v1431, %v1435
    %v1440 = vand.u32 2147483647, %v1430
    %vm1441 = vcmp.eq.f32.partialorder %v1440, 8.507059e+37
    %v1442 = vand.u32 %v1430, 2147483648
    %v1443 = vor.u32 1.1754944e-38, %v1442
    %v1444 = vsel %vm1441, %v1443, %v1439
    %v1445 = vmul.f32 1.0, %v1444
    %v1446 = vadd.f32 %v1364, %v1404
    %v1447 = vxor.u32 %v1446, 2147483648
    %v1448 = vmul.f32 %v1447, 1.442695
    %v1449 = vpow.pop %v1448
    %v1450 = vadd.f32 %v1449, 1.0
    %v1451 = vrcp.pop %v1450
    %v1452 = vmul.f32 %v1450, %v1451
    %v1453 = vsub.f32 1.0, %v1452
    %v1454 = vmul.f32 %v1451, %v1453
    %v1455 = vadd.f32 %v1451, %v1454
    %vm1456 = vweird.f32 %v1450
    %vm1457 = vweird.f32 %v1451
    %vm1458 = vmor %vm1456, %vm1457
    %v1459 = vsel %vm1458, %v1451, %v1455
    %v1460 = vand.u32 2147483647, %v1450
    %vm1461 = vcmp.eq.f32.partialorder %v1460, 8.507059e+37
    %v1462 = vand.u32 %v1450, 2147483648
    %v1463 = vor.u32 1.1754944e-38, %v1462
    %v1464 = vsel %vm1461, %v1463, %v1459
    %v1465 = vmul.f32 1.0, %v1464
    %v1466 = vmul.f32 %v1445, %v1424
    %v1467 = vadd.f32 %v1365, %v1466
    %v1468 = vtanh.pop %v1467
    %v1469 = vsub.f32 1.0, %v1465
    %v1470 = vmul.f32 %v1469, %v1468
    %v1471 = vmul.f32 %v1465, %v113
    %v1472 = vadd.f32 %v1470, %v1471
    %1473 = vst.msk [vmem:[%s6] sm:$0xff] %vm148, %v1472
    %s1474 = scalar_lea.vmem [#allocation3], 8
    %v1475 = vld [vmem:[%s1474] sm:$0xff]
    %s1476 = scalar_lea.vmem [#allocation4], 8
    %v1477 = vld [vmem:[%s1476] sm:$0xff]
    %s1478 = scalar_lea.vmem [#allocation5], 8
    %v1479 = vld [vmem:[%s1478] sm:$0xff]
    %v1481 = vsel %vm148, %v1472, 0
    %1483 = vmatpush.msra.mxu0 0.0
    %1484 = vmatpush.msra.mxu0 0.0
    %1485 = vmatpush.msra.mxu0 0.0
    %1486 = vmatpush.msra.mxu0 0.0
    %1487 = vmatpush.msra.mxu0 0.0
    %1488 = vmatpush.msra.mxu0 0.0
    %1489 = vmatpush.msra.mxu0 0.0
    %1490 = vmatpush.msra.mxu0 0.0
    %1491 = vmatpush.msra.mxu0 0.0
    %1492 = vmatpush.msra.mxu0 0.0
    %1493 = vmatpush.msra.mxu0 0.0
    %1494 = vmatpush.msra.mxu0 0.0
    %1495 = vmatpush.msra.mxu0 %v1128
    %1496 = vmatpush.msra.mxu0 %v1127
    %1497 = vmatpush.msra.mxu0 %v1126
    %1498 = vmatpush.msra.mxu0 %v1125
    %1499 = vmatmul.f32.gmra.mxu0 %v1481
    %v1500 = vpop.f32.mrf.mxu0
    %v1501 = vadd.f32 %v1142, %v1500
    %1502 = vdwg.mxu0
    %1503 = vmatpush.msra.mxu0 0.0
    %1504 = vmatpush.msra.mxu0 0.0
    %1505 = vmatpush.msra.mxu0 0.0
    %1506 = vmatpush.msra.mxu0 0.0
    %1507 = vmatpush.msra.mxu0 0.0
    %1508 = vmatpush.msra.mxu0 0.0
    %1509 = vmatpush.msra.mxu0 0.0
    %1510 = vmatpush.msra.mxu0 0.0
    %1511 = vmatpush.msra.mxu0 0.0
    %1512 = vmatpush.msra.mxu0 0.0
    %1513 = vmatpush.msra.mxu0 0.0
    %1514 = vmatpush.msra.mxu0 0.0
    %1515 = vmatpush.msra.mxu0 %v1133
    %1516 = vmatpush.msra.mxu0 %v1132
    %1517 = vmatpush.msra.mxu0 %v1131
    %1518 = vmatpush.msra.mxu0 %v1130
    %1519 = vmatmul.f32.gmra.mxu0 %v1481
    %v1520 = vpop.f32.mrf.mxu0
    %v1521 = vadd.f32 %v1147, %v1520
    %1522 = vdwg.mxu0
    %1523 = vmatpush.msra.mxu0 0.0
    %1524 = vmatpush.msra.mxu0 0.0
    %1525 = vmatpush.msra.mxu0 0.0
    %1526 = vmatpush.msra.mxu0 0.0
    %1527 = vmatpush.msra.mxu0 0.0
    %1528 = vmatpush.msra.mxu0 0.0
    %1529 = vmatpush.msra.mxu0 0.0
    %1530 = vmatpush.msra.mxu0 0.0
    %1531 = vmatpush.msra.mxu0 0.0
    %1532 = vmatpush.msra.mxu0 0.0
    %1533 = vmatpush.msra.mxu0 0.0
    %1534 = vmatpush.msra.mxu0 0.0
    %1535 = vmatpush.msra.mxu0 %v1138
    %1536 = vmatpush.msra.mxu0 %v1137
    %1537 = vmatpush.msra.mxu0 %v1136
    %1538 = vmatpush.msra.mxu0 %v1135
    %1539 = vmatmul.f32.gmra.mxu0 %v1481
    %v1540 = vpop.f32.mrf.mxu0
    %v1541 = vadd.f32 %v1152, %v1540
    %1542 = vdwg.mxu0
    %v1543 = vadd.f32 %v1475, %v1501
    %v1544 = vxor.u32 %v1543, 2147483648
    %v1545 = vmul.f32 %v1544, 1.442695
    %v1546 = vpow.pop %v1545
    %v1547 = vadd.f32 %v1546, 1.0
    %v1548 = vrcp.pop %v1547
    %v1549 = vmul.f32 %v1547, %v1548
    %v1550 = vsub.f32 1.0, %v1549
    %v1551 = vmul.f32 %v1548, %v1550
    %v1552 = vadd.f32 %v1548, %v1551
    %vm1553 = vweird.f32 %v1547
    %vm1554 = vweird.f32 %v1548
    %vm1555 = vmor %vm1553, %vm1554
    %v1556 = vsel %vm1555, %v1548, %v1552
    %v1557 = vand.u32 2147483647, %v1547
    %vm1558 = vcmp.eq.f32.partialorder %v1557, 8.507059e+37
    %v1559 = vand.u32 %v1547, 2147483648
    %v1560 = vor.u32 1.1754944e-38, %v1559
    %v1561 = vsel %vm1558, %v1560, %v1556
    %v1562 = vmul.f32 1.0, %v1561
    %v1563 = vadd.f32 %v1477, %v1521
    %v1564 = vxor.u32 %v1563, 2147483648
    %v1565 = vmul.f32 %v1564, 1.442695
    %v1566 = vpow.pop %v1565
    %v1567 = vadd.f32 %v1566, 1.0
    %v1568 = vrcp.pop %v1567
    %v1569 = vmul.f32 %v1567, %v1568
    %v1570 = vsub.f32 1.0, %v1569
    %v1571 = vmul.f32 %v1568, %v1570
    %v1572 = vadd.f32 %v1568, %v1571
    %vm1573 = vweird.f32 %v1567
    %vm1574 = vweird.f32 %v1568
    %vm1575 = vmor %vm1573, %vm1574
    %v1576 = vsel %vm1575, %v1568, %v1572
    %v1577 = vand.u32 2147483647, %v1567
    %vm1578 = vcmp.eq.f32.partialorder %v1577, 8.507059e+37
    %v1579 = vand.u32 %v1567, 2147483648
    %v1580 = vor.u32 1.1754944e-38, %v1579
    %v1581 = vsel %vm1578, %v1580, %v1576
    %v1582 = vmul.f32 1.0, %v1581
    %v1583 = vmul.f32 %v1562, %v1541
    %v1584 = vadd.f32 %v1479, %v1583
    %v1585 = vtanh.pop %v1584
    %v1586 = vsub.f32 1.0, %v1582
    %v1587 = vmul.f32 %v1586, %v1585
    %v1588 = vmul.f32 %v1582, %v1472
    %v1589 = vadd.f32 %v1587, %v1588
    %s1590 = scalar_lea.vmem %s6, 8
    %1591 = vst.msk [vmem:[%s1590] sm:$0xff] %vm148, %v1589
    %s1592 = scalar_lea.vmem [#allocation3], 16
    %v1593 = vld [vmem:[%s1592] sm:$0xff]
    %s1594 = scalar_lea.vmem [#allocation4], 16
    %v1595 = vld [vmem:[%s1594] sm:$0xff]
    %s1596 = scalar_lea.vmem [#allocation5], 16
    %v1597 = vld [vmem:[%s1596] sm:$0xff]
    %v1599 = vsel %vm148, %v1589, 0
    %1601 = vmatpush.msra.mxu0 0.0
    %1602 = vmatpush.msra.mxu0 0.0
    %1603 = vmatpush.msra.mxu0 0.0
    %1604 = vmatpush.msra.mxu0 0.0
    %1605 = vmatpush.msra.mxu0 0.0
    %1606 = vmatpush.msra.mxu0 0.0
    %1607 = vmatpush.msra.mxu0 0.0
    %1608 = vmatpush.msra.mxu0 0.0
    %1609 = vmatpush.msra.mxu0 0.0
    %1610 = vmatpush.msra.mxu0 0.0
    %1611 = vmatpush.msra.mxu0 0.0
    %1612 = vmatpush.msra.mxu0 0.0
    %1613 = vmatpush.msra.mxu0 %v1128
    %1614 = vmatpush.msra.mxu0 %v1127
    %1615 = vmatpush.msra.mxu0 %v1126
    %1616 = vmatpush.msra.mxu0 %v1125
    %1617 = vmatmul.f32.gmra.mxu0 %v1599
    %v1618 = vpop.f32.mrf.mxu0
    %v1619 = vadd.f32 %v1142, %v1618
    %1620 = vdwg.mxu0
    %1621 = vmatpush.msra.mxu0 0.0
    %1622 = vmatpush.msra.mxu0 0.0
    %1623 = vmatpush.msra.mxu0 0.0
    %1624 = vmatpush.msra.mxu0 0.0
    %1625 = vmatpush.msra.mxu0 0.0
    %1626 = vmatpush.msra.mxu0 0.0
    %1627 = vmatpush.msra.mxu0 0.0
    %1628 = vmatpush.msra.mxu0 0.0
    %1629 = vmatpush.msra.mxu0 0.0
    %1630 = vmatpush.msra.mxu0 0.0
    %1631 = vmatpush.msra.mxu0 0.0
    %1632 = vmatpush.msra.mxu0 0.0
    %1633 = vmatpush.msra.mxu0 %v1133
    %1634 = vmatpush.msra.mxu0 %v1132
    %1635 = vmatpush.msra.mxu0 %v1131
    %1636 = vmatpush.msra.mxu0 %v1130
    %1637 = vmatmul.f32.gmra.mxu0 %v1599
    %v1638 = vpop.f32.mrf.mxu0
    %v1639 = vadd.f32 %v1147, %v1638
    %1640 = vdwg.mxu0
    %1641 = vmatpush.msra.mxu0 0.0
    %1642 = vmatpush.msra.mxu0 0.0
    %1643 = vmatpush.msra.mxu0 0.0
    %1644 = vmatpush.msra.mxu0 0.0
    %1645 = vmatpush.msra.mxu0 0.0
    %1646 = vmatpush.msra.mxu0 0.0
    %1647 = vmatpush.msra.mxu0 0.0
    %1648 = vmatpush.msra.mxu0 0.0
    %1649 = vmatpush.msra.mxu0 0.0
    %1650 = vmatpush.msra.mxu0 0.0
    %1651 = vmatpush.msra.mxu0 0.0
    %1652 = vmatpush.msra.mxu0 0.0
    %1653 = vmatpush.msra.mxu0 %v1138
    %1654 = vmatpush.msra.mxu0 %v1137
    %1655 = vmatpush.msra.mxu0 %v1136
    %1656 = vmatpush.msra.mxu0 %v1135
    %1657 = vmatmul.f32.gmra.mxu0 %v1599
    %v1658 = vpop.f32.mrf.mxu0
    %v1659 = vadd.f32 %v1152, %v1658
    %1660 = vdwg.mxu0
    %v1661 = vadd.f32 %v1593, %v1619
    %v1662 = vxor.u32 %v1661, 2147483648
    %v1663 = vmul.f32 %v1662, 1.442695
    %v1664 = vpow.pop %v1663
    %v1665 = vadd.f32 %v1664, 1.0
    %v1666 = vrcp.pop %v1665
    %v1667 = vmul.f32 %v1665, %v1666
    %v1668 = vsub.f32 1.0, %v1667
    %v1669 = vmul.f32 %v1666, %v1668
    %v1670 = vadd.f32 %v1666, %v1669
    %vm1671 = vweird.f32 %v1665
    %vm1672 = vweird.f32 %v1666
    %vm1673 = vmor %vm1671, %vm1672
    %v1674 = vsel %vm1673, %v1666, %v1670
    %v1675 = vand.u32 2147483647, %v1665
    %vm1676 = vcmp.eq.f32.partialorder %v1675, 8.507059e+37
    %v1677 = vand.u32 %v1665, 2147483648
    %v1678 = vor.u32 1.1754944e-38, %v1677
    %v1679 = vsel %vm1676, %v1678, %v1674
    %v1680 = vmul.f32 1.0, %v1679
    %v1681 = vadd.f32 %v1595, %v1639
    %v1682 = vxor.u32 %v1681, 2147483648
    %v1683 = vmul.f32 %v1682, 1.442695
    %v1684 = vpow.pop %v1683
    %v1685 = vadd.f32 %v1684, 1.0
    %v1686 = vrcp.pop %v1685
    %v1687 = vmul.f32 %v1685, %v1686
    %v1688 = vsub.f32 1.0, %v1687
    %v1689 = vmul.f32 %v1686, %v1688
    %v1690 = vadd.f32 %v1686, %v1689
    %vm1691 = vweird.f32 %v1685
    %vm1692 = vweird.f32 %v1686
    %vm1693 = vmor %vm1691, %vm1692
    %v1694 = vsel %vm1693, %v1686, %v1690
    %v1695 = vand.u32 2147483647, %v1685
    %vm1696 = vcmp.eq.f32.partialorder %v1695, 8.507059e+37
    %v1697 = vand.u32 %v1685, 2147483648
    %v1698 = vor.u32 1.1754944e-38, %v1697
    %v1699 = vsel %vm1696, %v1698, %v1694
    %v1700 = vmul.f32 1.0, %v1699
    %v1701 = vmul.f32 %v1680, %v1659
    %v1702 = vadd.f32 %v1597, %v1701
    %v1703 = vtanh.pop %v1702
    %v1704 = vsub.f32 1.0, %v1700
    %v1705 = vmul.f32 %v1704, %v1703
    %v1706 = vmul.f32 %v1700, %v1589
    %v1707 = vadd.f32 %v1705, %v1706
    %s1708 = scalar_lea.vmem %s6, 16
    %1709 = vst.msk [vmem:[%s1708] sm:$0xff] %vm148, %v1707
    %s1710 = scalar_lea.vmem [#allocation3], 24
    %v1711 = vld [vmem:[%s1710] sm:$0xff]
    %s1712 = scalar_lea.vmem [#allocation4], 24
    %v1713 = vld [vmem:[%s1712] sm:$0xff]
    %s1714 = scalar_lea.vmem [#allocation5], 24
    %v1715 = vld [vmem:[%s1714] sm:$0xff]
    %v1717 = vsel %vm148, %v1707, 0
    %1719 = vmatpush.msra.mxu0 0.0
    %1720 = vmatpush.msra.mxu0 0.0
    %1721 = vmatpush.msra.mxu0 0.0
    %1722 = vmatpush.msra.mxu0 0.0
    %1723 = vmatpush.msra.mxu0 0.0
    %1724 = vmatpush.msra.mxu0 0.0
    %1725 = vmatpush.msra.mxu0 0.0
    %1726 = vmatpush.msra.mxu0 0.0
    %1727 = vmatpush.msra.mxu0 0.0
    %1728 = vmatpush.msra.mxu0 0.0
    %1729 = vmatpush.msra.mxu0 0.0
    %1730 = vmatpush.msra.mxu0 0.0
    %1731 = vmatpush.msra.mxu0 %v1128
    %1732 = vmatpush.msra.mxu0 %v1127
    %1733 = vmatpush.msra.mxu0 %v1126
    %1734 = vmatpush.msra.mxu0 %v1125
    %1735 = vmatmul.f32.gmra.mxu0 %v1717
    %v1736 = vpop.f32.mrf.mxu0
    %v1737 = vadd.f32 %v1142, %v1736
    %1738 = vdwg.mxu0
    %1739 = vmatpush.msra.mxu0 0.0
    %1740 = vmatpush.msra.mxu0 0.0
    %1741 = vmatpush.msra.mxu0 0.0
    %1742 = vmatpush.msra.mxu0 0.0
    %1743 = vmatpush.msra.mxu0 0.0
    %1744 = vmatpush.msra.mxu0 0.0
    %1745 = vmatpush.msra.mxu0 0.0
    %1746 = vmatpush.msra.mxu0 0.0
    %1747 = vmatpush.msra.mxu0 0.0
    %1748 = vmatpush.msra.mxu0 0.0
    %1749 = vmatpush.msra.mxu0 0.0
    %1750 = vmatpush.msra.mxu0 0.0
    %1751 = vmatpush.msra.mxu0 %v1133
    %1752 = vmatpush.msra.mxu0 %v1132
    %1753 = vmatpush.msra.mxu0 %v1131
    %1754 = vmatpush.msra.mxu0 %v1130
    %1755 = vmatmul.f32.gmra.mxu0 %v1717
    %v1756 = vpop.f32.mrf.mxu0
    %v1757 = vadd.f32 %v1147, %v1756
    %1758 = vdwg.mxu0
    %1759 = vmatpush.msra.mxu0 0.0
    %1760 = vmatpush.msra.mxu0 0.0
    %1761 = vmatpush.msra.mxu0 0.0
    %1762 = vmatpush.msra.mxu0 0.0
    %1763 = vmatpush.msra.mxu0 0.0
    %1764 = vmatpush.msra.mxu0 0.0
    %1765 = vmatpush.msra.mxu0 0.0
    %1766 = vmatpush.msra.mxu0 0.0
    %1767 = vmatpush.msra.mxu0 0.0
    %1768 = vmatpush.msra.mxu0 0.0
    %1769 = vmatpush.msra.mxu0 0.0
    %1770 = vmatpush.msra.mxu0 0.0
    %1771 = vmatpush.msra.mxu0 %v1138
    %1772 = vmatpush.msra.mxu0 %v1137
    %1773 = vmatpush.msra.mxu0 %v1136
    %1774 = vmatpush.msra.mxu0 %v1135
    %1775 = vmatmul.f32.gmra.mxu0 %v1717
    %v1776 = vpop.f32.mrf.mxu0
    %v1777 = vadd.f32 %v1152, %v1776
    %1778 = vdwg.mxu0
    %v1779 = vadd.f32 %v1711, %v1737
    %v1780 = vxor.u32 %v1779, 2147483648
    %v1781 = vmul.f32 %v1780, 1.442695
    %v1782 = vpow.pop %v1781
    %v1783 = vadd.f32 %v1782, 1.0
    %v1784 = vrcp.pop %v1783
    %v1785 = vmul.f32 %v1783, %v1784
    %v1786 = vsub.f32 1.0, %v1785
    %v1787 = vmul.f32 %v1784, %v1786
    %v1788 = vadd.f32 %v1784, %v1787
    %vm1789 = vweird.f32 %v1783
    %vm1790 = vweird.f32 %v1784
    %vm1791 = vmor %vm1789, %vm1790
    %v1792 = vsel %vm1791, %v1784, %v1788
    %v1793 = vand.u32 2147483647, %v1783
    %vm1794 = vcmp.eq.f32.partialorder %v1793, 8.507059e+37
    %v1795 = vand.u32 %v1783, 2147483648
    %v1796 = vor.u32 1.1754944e-38, %v1795
    %v1797 = vsel %vm1794, %v1796, %v1792
    %v1798 = vmul.f32 1.0, %v1797
    %v1799 = vadd.f32 %v1713, %v1757
    %v1800 = vxor.u32 %v1799, 2147483648
    %v1801 = vmul.f32 %v1800, 1.442695
    %v1802 = vpow.pop %v1801
    %v1803 = vadd.f32 %v1802, 1.0
    %v1804 = vrcp.pop %v1803
    %v1805 = vmul.f32 %v1803, %v1804
    %v1806 = vsub.f32 1.0, %v1805
    %v1807 = vmul.f32 %v1804, %v1806
    %v1808 = vadd.f32 %v1804, %v1807
    %vm1809 = vweird.f32 %v1803
    %vm1810 = vweird.f32 %v1804
    %vm1811 = vmor %vm1809, %vm1810
    %v1812 = vsel %vm1811, %v1804, %v1808
    %v1813 = vand.u32 2147483647, %v1803
    %vm1814 = vcmp.eq.f32.partialorder %v1813, 8.507059e+37
    %v1815 = vand.u32 %v1803, 2147483648
    %v1816 = vor.u32 1.1754944e-38, %v1815
    %v1817 = vsel %vm1814, %v1816, %v1812
    %v1818 = vmul.f32 1.0, %v1817
    %v1819 = vmul.f32 %v1798, %v1777
    %v1820 = vadd.f32 %v1715, %v1819
    %v1821 = vtanh.pop %v1820
    %v1822 = vsub.f32 1.0, %v1818
    %v1823 = vmul.f32 %v1822, %v1821
    %v1824 = vmul.f32 %v1818, %v1707
    %v1825 = vadd.f32 %v1823, %v1824
    %s1826 = scalar_lea.vmem %s6, 24
    %1827 = vst.msk [vmem:[%s1826] sm:$0xff] %vm148, %v1825
    %s1828 = scalar_lea.vmem [#allocation3], 32
    %v1829 = vld [vmem:[%s1828] sm:$0xff]
    %s1830 = scalar_lea.vmem [#allocation4], 32
    %v1831 = vld [vmem:[%s1830] sm:$0xff]
    %s1832 = scalar_lea.vmem [#allocation5], 32
    %v1833 = vld [vmem:[%s1832] sm:$0xff]
    %v1835 = vsel %vm148, %v1825, 0
    %1837 = vmatpush.msra.mxu0 0.0
    %1838 = vmatpush.msra.mxu0 0.0
    %1839 = vmatpush.msra.mxu0 0.0
    %1840 = vmatpush.msra.mxu0 0.0
    %1841 = vmatpush.msra.mxu0 0.0
    %1842 = vmatpush.msra.mxu0 0.0
    %1843 = vmatpush.msra.mxu0 0.0
    %1844 = vmatpush.msra.mxu0 0.0
    %1845 = vmatpush.msra.mxu0 0.0
    %1846 = vmatpush.msra.mxu0 0.0
    %1847 = vmatpush.msra.mxu0 0.0
    %1848 = vmatpush.msra.mxu0 0.0
    %1849 = vmatpush.msra.mxu0 %v1128
    %1850 = vmatpush.msra.mxu0 %v1127
    %1851 = vmatpush.msra.mxu0 %v1126
    %1852 = vmatpush.msra.mxu0 %v1125
    %1853 = vmatmul.f32.gmra.mxu0 %v1835
    %v1854 = vpop.f32.mrf.mxu0
    %v1855 = vadd.f32 %v1142, %v1854
    %1856 = vdwg.mxu0
    %1857 = vmatpush.msra.mxu0 0.0
    %1858 = vmatpush.msra.mxu0 0.0
    %1859 = vmatpush.msra.mxu0 0.0
    %1860 = vmatpush.msra.mxu0 0.0
    %1861 = vmatpush.msra.mxu0 0.0
    %1862 = vmatpush.msra.mxu0 0.0
    %1863 = vmatpush.msra.mxu0 0.0
    %1864 = vmatpush.msra.mxu0 0.0
    %1865 = vmatpush.msra.mxu0 0.0
    %1866 = vmatpush.msra.mxu0 0.0
    %1867 = vmatpush.msra.mxu0 0.0
    %1868 = vmatpush.msra.mxu0 0.0
    %1869 = vmatpush.msra.mxu0 %v1133
    %1870 = vmatpush.msra.mxu0 %v1132
    %1871 = vmatpush.msra.mxu0 %v1131
    %1872 = vmatpush.msra.mxu0 %v1130
    %1873 = vmatmul.f32.gmra.mxu0 %v1835
    %v1874 = vpop.f32.mrf.mxu0
    %v1875 = vadd.f32 %v1147, %v1874
    %1876 = vdwg.mxu0
    %1877 = vmatpush.msra.mxu0 0.0
    %1878 = vmatpush.msra.mxu0 0.0
    %1879 = vmatpush.msra.mxu0 0.0
    %1880 = vmatpush.msra.mxu0 0.0
    %1881 = vmatpush.msra.mxu0 0.0
    %1882 = vmatpush.msra.mxu0 0.0
    %1883 = vmatpush.msra.mxu0 0.0
    %1884 = vmatpush.msra.mxu0 0.0
    %1885 = vmatpush.msra.mxu0 0.0
    %1886 = vmatpush.msra.mxu0 0.0
    %1887 = vmatpush.msra.mxu0 0.0
    %1888 = vmatpush.msra.mxu0 0.0
    %1889 = vmatpush.msra.mxu0 %v1138
    %1890 = vmatpush.msra.mxu0 %v1137
    %1891 = vmatpush.msra.mxu0 %v1136
    %1892 = vmatpush.msra.mxu0 %v1135
    %1893 = vmatmul.f32.gmra.mxu0 %v1835
    %v1894 = vpop.f32.mrf.mxu0
    %v1895 = vadd.f32 %v1152, %v1894
    %1896 = vdwg.mxu0
    %v1897 = vadd.f32 %v1829, %v1855
    %v1898 = vxor.u32 %v1897, 2147483648
    %v1899 = vmul.f32 %v1898, 1.442695
    %v1900 = vpow.pop %v1899
    %v1901 = vadd.f32 %v1900, 1.0
    %v1902 = vrcp.pop %v1901
    %v1903 = vmul.f32 %v1901, %v1902
    %v1904 = vsub.f32 1.0, %v1903
    %v1905 = vmul.f32 %v1902, %v1904
    %v1906 = vadd.f32 %v1902, %v1905
    %vm1907 = vweird.f32 %v1901
    %vm1908 = vweird.f32 %v1902
    %vm1909 = vmor %vm1907, %vm1908
    %v1910 = vsel %vm1909, %v1902, %v1906
    %v1911 = vand.u32 2147483647, %v1901
    %vm1912 = vcmp.eq.f32.partialorder %v1911, 8.507059e+37
    %v1913 = vand.u32 %v1901, 2147483648
    %v1914 = vor.u32 1.1754944e-38, %v1913
    %v1915 = vsel %vm1912, %v1914, %v1910
    %v1916 = vmul.f32 1.0, %v1915
    %v1917 = vadd.f32 %v1831, %v1875
    %v1918 = vxor.u32 %v1917, 2147483648
    %v1919 = vmul.f32 %v1918, 1.442695
    %v1920 = vpow.pop %v1919
    %v1921 = vadd.f32 %v1920, 1.0
    %v1922 = vrcp.pop %v1921
    %v1923 = vmul.f32 %v1921, %v1922
    %v1924 = vsub.f32 1.0, %v1923
    %v1925 = vmul.f32 %v1922, %v1924
    %v1926 = vadd.f32 %v1922, %v1925
    %vm1927 = vweird.f32 %v1921
    %vm1928 = vweird.f32 %v1922
    %vm1929 = vmor %vm1927, %vm1928
    %v1930 = vsel %vm1929, %v1922, %v1926
    %v1931 = vand.u32 2147483647, %v1921
    %vm1932 = vcmp.eq.f32.partialorder %v1931, 8.507059e+37
    %v1933 = vand.u32 %v1921, 2147483648
    %v1934 = vor.u32 1.1754944e-38, %v1933
    %v1935 = vsel %vm1932, %v1934, %v1930
    %v1936 = vmul.f32 1.0, %v1935
    %v1937 = vmul.f32 %v1916, %v1895
    %v1938 = vadd.f32 %v1833, %v1937
    %v1939 = vtanh.pop %v1938
    %v1940 = vsub.f32 1.0, %v1936
    %v1941 = vmul.f32 %v1940, %v1939
    %v1942 = vmul.f32 %v1936, %v1825
    %v1943 = vadd.f32 %v1941, %v1942
    %s1944 = scalar_lea.vmem %s6, 32
    %1945 = vst.msk [vmem:[%s1944] sm:$0xff] %vm148, %v1943
    %s1946 = scalar_lea.vmem [#allocation3], 40
    %v1947 = vld [vmem:[%s1946] sm:$0xff]
    %s1948 = scalar_lea.vmem [#allocation4], 40
    %v1949 = vld [vmem:[%s1948] sm:$0xff]
    %s1950 = scalar_lea.vmem [#allocation5], 40
    %v1951 = vld [vmem:[%s1950] sm:$0xff]
    %v1953 = vsel %vm148, %v1943, 0
    %1955 = vmatpush.msra.mxu0 0.0
    %1956 = vmatpush.msra.mxu0 0.0
    %1957 = vmatpush.msra.mxu0 0.0
    %1958 = vmatpush.msra.mxu0 0.0
    %1959 = vmatpush.msra.mxu0 0.0
    %1960 = vmatpush.msra.mxu0 0.0
    %1961 = vmatpush.msra.mxu0 0.0
    %1962 = vmatpush.msra.mxu0 0.0
    %1963 = vmatpush.msra.mxu0 0.0
    %1964 = vmatpush.msra.mxu0 0.0
    %1965 = vmatpush.msra.mxu0 0.0
    %1966 = vmatpush.msra.mxu0 0.0
    %1967 = vmatpush.msra.mxu0 %v1128
    %1968 = vmatpush.msra.mxu0 %v1127
    %1969 = vmatpush.msra.mxu0 %v1126
    %1970 = vmatpush.msra.mxu0 %v1125
    %1971 = vmatmul.f32.gmra.mxu0 %v1953
    %v1972 = vpop.f32.mrf.mxu0
    %v1973 = vadd.f32 %v1142, %v1972
    %1974 = vdwg.mxu0
    %1975 = vmatpush.msra.mxu0 0.0
    %1976 = vmatpush.msra.mxu0 0.0
    %1977 = vmatpush.msra.mxu0 0.0
    %1978 = vmatpush.msra.mxu0 0.0
    %1979 = vmatpush.msra.mxu0 0.0
    %1980 = vmatpush.msra.mxu0 0.0
    %1981 = vmatpush.msra.mxu0 0.0
    %1982 = vmatpush.msra.mxu0 0.0
    %1983 = vmatpush.msra.mxu0 0.0
    %1984 = vmatpush.msra.mxu0 0.0
    %1985 = vmatpush.msra.mxu0 0.0
    %1986 = vmatpush.msra.mxu0 0.0
    %1987 = vmatpush.msra.mxu0 %v1133
    %1988 = vmatpush.msra.mxu0 %v1132
    %1989 = vmatpush.msra.mxu0 %v1131
    %1990 = vmatpush.msra.mxu0 %v1130
    %1991 = vmatmul.f32.gmra.mxu0 %v1953
    %v1992 = vpop.f32.mrf.mxu0
    %v1993 = vadd.f32 %v1147, %v1992
    %1994 = vdwg.mxu0
    %1995 = vmatpush.msra.mxu0 0.0
    %1996 = vmatpush.msra.mxu0 0.0
    %1997 = vmatpush.msra.mxu0 0.0
    %1998 = vmatpush.msra.mxu0 0.0
    %1999 = vmatpush.msra.mxu0 0.0
    %2000 = vmatpush.msra.mxu0 0.0
    %2001 = vmatpush.msra.mxu0 0.0
    %2002 = vmatpush.msra.mxu0 0.0
    %2003 = vmatpush.msra.mxu0 0.0
    %2004 = vmatpush.msra.mxu0 0.0
    %2005 = vmatpush.msra.mxu0 0.0
    %2006 = vmatpush.msra.mxu0 0.0
    %2007 = vmatpush.msra.mxu0 %v1138
    %2008 = vmatpush.msra.mxu0 %v1137
    %2009 = vmatpush.msra.mxu0 %v1136
    %2010 = vmatpush.msra.mxu0 %v1135
    %2011 = vmatmul.f32.gmra.mxu0 %v1953
    %v2012 = vpop.f32.mrf.mxu0
    %v2013 = vadd.f32 %v1152, %v2012
    %2014 = vdwg.mxu0
    %v2015 = vadd.f32 %v1947, %v1973
    %v2016 = vxor.u32 %v2015, 2147483648
    %v2017 = vmul.f32 %v2016, 1.442695
    %v2018 = vpow.pop %v2017
    %v2019 = vadd.f32 %v2018, 1.0
    %v2020 = vrcp.pop %v2019
    %v2021 = vmul.f32 %v2019, %v2020
    %v2022 = vsub.f32 1.0, %v2021
    %v2023 = vmul.f32 %v2020, %v2022
    %v2024 = vadd.f32 %v2020, %v2023
    %vm2025 = vweird.f32 %v2019
    %vm2026 = vweird.f32 %v2020
    %vm2027 = vmor %vm2025, %vm2026
    %v2028 = vsel %vm2027, %v2020, %v2024
    %v2029 = vand.u32 2147483647, %v2019
    %vm2030 = vcmp.eq.f32.partialorder %v2029, 8.507059e+37
    %v2031 = vand.u32 %v2019, 2147483648
    %v2032 = vor.u32 1.1754944e-38, %v2031
    %v2033 = vsel %vm2030, %v2032, %v2028
    %v2034 = vmul.f32 1.0, %v2033
    %v2035 = vadd.f32 %v1949, %v1993
    %v2036 = vxor.u32 %v2035, 2147483648
    %v2037 = vmul.f32 %v2036, 1.442695
    %v2038 = vpow.pop %v2037
    %v2039 = vadd.f32 %v2038, 1.0
    %v2040 = vrcp.pop %v2039
    %v2041 = vmul.f32 %v2039, %v2040
    %v2042 = vsub.f32 1.0, %v2041
    %v2043 = vmul.f32 %v2040, %v2042
    %v2044 = vadd.f32 %v2040, %v2043
    %vm2045 = vweird.f32 %v2039
    %vm2046 = vweird.f32 %v2040
    %vm2047 = vmor %vm2045, %vm2046
    %v2048 = vsel %vm2047, %v2040, %v2044
    %v2049 = vand.u32 2147483647, %v2039
    %vm2050 = vcmp.eq.f32.partialorder %v2049, 8.507059e+37
    %v2051 = vand.u32 %v2039, 2147483648
    %v2052 = vor.u32 1.1754944e-38, %v2051
    %v2053 = vsel %vm2050, %v2052, %v2048
    %v2054 = vmul.f32 1.0, %v2053
    %v2055 = vmul.f32 %v2034, %v2013
    %v2056 = vadd.f32 %v1951, %v2055
    %v2057 = vtanh.pop %v2056
    %v2058 = vsub.f32 1.0, %v2054
    %v2059 = vmul.f32 %v2058, %v2057
    %v2060 = vmul.f32 %v2054, %v1943
    %v2061 = vadd.f32 %v2059, %v2060
    %s2062 = scalar_lea.vmem %s6, 40
    %2063 = vst.msk [vmem:[%s2062] sm:$0xff] %vm148, %v2061
    %s2064 = scalar_lea.vmem [#allocation3], 48
    %v2065 = vld [vmem:[%s2064] sm:$0xff]
    %s2066 = scalar_lea.vmem [#allocation4], 48
    %v2067 = vld [vmem:[%s2066] sm:$0xff]
    %s2068 = scalar_lea.vmem [#allocation5], 48
    %v2069 = vld [vmem:[%s2068] sm:$0xff]
    %v2071 = vsel %vm148, %v2061, 0
    %2073 = vmatpush.msra.mxu0 0.0
    %2074 = vmatpush.msra.mxu0 0.0
    %2075 = vmatpush.msra.mxu0 0.0
    %2076 = vmatpush.msra.mxu0 0.0
    %2077 = vmatpush.msra.mxu0 0.0
    %2078 = vmatpush.msra.mxu0 0.0
    %2079 = vmatpush.msra.mxu0 0.0
    %2080 = vmatpush.msra.mxu0 0.0
    %2081 = vmatpush.msra.mxu0 0.0
    %2082 = vmatpush.msra.mxu0 0.0
    %2083 = vmatpush.msra.mxu0 0.0
    %2084 = vmatpush.msra.mxu0 0.0
    %2085 = vmatpush.msra.mxu0 %v1128
    %2086 = vmatpush.msra.mxu0 %v1127
    %2087 = vmatpush.msra.mxu0 %v1126
    %2088 = vmatpush.msra.mxu0 %v1125
    %2089 = vmatmul.f32.gmra.mxu0 %v2071
    %v2090 = vpop.f32.mrf.mxu0
    %v2091 = vadd.f32 %v1142, %v2090
    %2092 = vdwg.mxu0
    %2093 = vmatpush.msra.mxu0 0.0
    %2094 = vmatpush.msra.mxu0 0.0
    %2095 = vmatpush.msra.mxu0 0.0
    %2096 = vmatpush.msra.mxu0 0.0
    %2097 = vmatpush.msra.mxu0 0.0
    %2098 = vmatpush.msra.mxu0 0.0
    %2099 = vmatpush.msra.mxu0 0.0
    %2100 = vmatpush.msra.mxu0 0.0
    %2101 = vmatpush.msra.mxu0 0.0
    %2102 = vmatpush.msra.mxu0 0.0
    %2103 = vmatpush.msra.mxu0 0.0
    %2104 = vmatpush.msra.mxu0 0.0
    %2105 = vmatpush.msra.mxu0 %v1133
    %2106 = vmatpush.msra.mxu0 %v1132
    %2107 = vmatpush.msra.mxu0 %v1131
    %2108 = vmatpush.msra.mxu0 %v1130
    %2109 = vmatmul.f32.gmra.mxu0 %v2071
    %v2110 = vpop.f32.mrf.mxu0
    %v2111 = vadd.f32 %v1147, %v2110
    %2112 = vdwg.mxu0
    %2113 = vmatpush.msra.mxu0 0.0
    %2114 = vmatpush.msra.mxu0 0.0
    %2115 = vmatpush.msra.mxu0 0.0
    %2116 = vmatpush.msra.mxu0 0.0
    %2117 = vmatpush.msra.mxu0 0.0
    %2118 = vmatpush.msra.mxu0 0.0
    %2119 = vmatpush.msra.mxu0 0.0
    %2120 = vmatpush.msra.mxu0 0.0
    %2121 = vmatpush.msra.mxu0 0.0
    %2122 = vmatpush.msra.mxu0 0.0
    %2123 = vmatpush.msra.mxu0 0.0
    %2124 = vmatpush.msra.mxu0 0.0
    %2125 = vmatpush.msra.mxu0 %v1138
    %2126 = vmatpush.msra.mxu0 %v1137
    %2127 = vmatpush.msra.mxu0 %v1136
    %2128 = vmatpush.msra.mxu0 %v1135
    %2129 = vmatmul.f32.gmra.mxu0 %v2071
    %v2130 = vpop.f32.mrf.mxu0
    %v2131 = vadd.f32 %v1152, %v2130
    %2132 = vdwg.mxu0
    %v2133 = vadd.f32 %v2065, %v2091
    %v2134 = vxor.u32 %v2133, 2147483648
    %v2135 = vmul.f32 %v2134, 1.442695
    %v2136 = vpow.pop %v2135
    %v2137 = vadd.f32 %v2136, 1.0
    %v2138 = vrcp.pop %v2137
    %v2139 = vmul.f32 %v2137, %v2138
    %v2140 = vsub.f32 1.0, %v2139
    %v2141 = vmul.f32 %v2138, %v2140
    %v2142 = vadd.f32 %v2138, %v2141
    %vm2143 = vweird.f32 %v2137
    %vm2144 = vweird.f32 %v2138
    %vm2145 = vmor %vm2143, %vm2144
    %v2146 = vsel %vm2145, %v2138, %v2142
    %v2147 = vand.u32 2147483647, %v2137
    %vm2148 = vcmp.eq.f32.partialorder %v2147, 8.507059e+37
    %v2149 = vand.u32 %v2137, 2147483648
    %v2150 = vor.u32 1.1754944e-38, %v2149
    %v2151 = vsel %vm2148, %v2150, %v2146
    %v2152 = vmul.f32 1.0, %v2151
    %v2153 = vadd.f32 %v2067, %v2111
    %v2154 = vxor.u32 %v2153, 2147483648
    %v2155 = vmul.f32 %v2154, 1.442695
    %v2156 = vpow.pop %v2155
    %v2157 = vadd.f32 %v2156, 1.0
    %v2158 = vrcp.pop %v2157
    %v2159 = vmul.f32 %v2157, %v2158
    %v2160 = vsub.f32 1.0, %v2159
    %v2161 = vmul.f32 %v2158, %v2160
    %v2162 = vadd.f32 %v2158, %v2161
    %vm2163 = vweird.f32 %v2157
    %vm2164 = vweird.f32 %v2158
    %vm2165 = vmor %vm2163, %vm2164
    %v2166 = vsel %vm2165, %v2158, %v2162
    %v2167 = vand.u32 2147483647, %v2157
    %vm2168 = vcmp.eq.f32.partialorder %v2167, 8.507059e+37
    %v2169 = vand.u32 %v2157, 2147483648
    %v2170 = vor.u32 1.1754944e-38, %v2169
    %v2171 = vsel %vm2168, %v2170, %v2166
    %v2172 = vmul.f32 1.0, %v2171
    %v2173 = vmul.f32 %v2152, %v2131
    %v2174 = vadd.f32 %v2069, %v2173
    %v2175 = vtanh.pop %v2174
    %v2176 = vsub.f32 1.0, %v2172
    %v2177 = vmul.f32 %v2176, %v2175
    %v2178 = vmul.f32 %v2172, %v2061
    %v2179 = vadd.f32 %v2177, %v2178
    %s2180 = scalar_lea.vmem %s6, 48
    %2181 = vst.msk [vmem:[%s2180] sm:$0xff] %vm148, %v2179
    %s2182 = scalar_lea.vmem [#allocation3], 56
    %v2183 = vld [vmem:[%s2182] sm:$0xff]
    %s2184 = scalar_lea.vmem [#allocation4], 56
    %v2185 = vld [vmem:[%s2184] sm:$0xff]
    %s2186 = scalar_lea.vmem [#allocation5], 56
    %v2187 = vld [vmem:[%s2186] sm:$0xff]
    %v2189 = vsel %vm148, %v2179, 0
    %2191 = vmatpush.msra.mxu0 0.0
    %2192 = vmatpush.msra.mxu0 0.0
    %2193 = vmatpush.msra.mxu0 0.0
    %2194 = vmatpush.msra.mxu0 0.0
    %2195 = vmatpush.msra.mxu0 0.0
    %2196 = vmatpush.msra.mxu0 0.0
    %2197 = vmatpush.msra.mxu0 0.0
    %2198 = vmatpush.msra.mxu0 0.0
    %2199 = vmatpush.msra.mxu0 0.0
    %2200 = vmatpush.msra.mxu0 0.0
    %2201 = vmatpush.msra.mxu0 0.0
    %2202 = vmatpush.msra.mxu0 0.0
    %2203 = vmatpush.msra.mxu0 %v1128
    %2204 = vmatpush.msra.mxu0 %v1127
    %2205 = vmatpush.msra.mxu0 %v1126
    %2206 = vmatpush.msra.mxu0 %v1125
    %2207 = vmatmul.f32.gmra.mxu0 %v2189
    %v2208 = vpop.f32.mrf.mxu0
    %v2209 = vadd.f32 %v1142, %v2208
    %2210 = vdwg.mxu0
    %2211 = vmatpush.msra.mxu0 0.0
    %2212 = vmatpush.msra.mxu0 0.0
    %2213 = vmatpush.msra.mxu0 0.0
    %2214 = vmatpush.msra.mxu0 0.0
    %2215 = vmatpush.msra.mxu0 0.0
    %2216 = vmatpush.msra.mxu0 0.0
    %2217 = vmatpush.msra.mxu0 0.0
    %2218 = vmatpush.msra.mxu0 0.0
    %2219 = vmatpush.msra.mxu0 0.0
    %2220 = vmatpush.msra.mxu0 0.0
    %2221 = vmatpush.msra.mxu0 0.0
    %2222 = vmatpush.msra.mxu0 0.0
    %2223 = vmatpush.msra.mxu0 %v1133
    %2224 = vmatpush.msra.mxu0 %v1132
    %2225 = vmatpush.msra.mxu0 %v1131
    %2226 = vmatpush.msra.mxu0 %v1130
    %2227 = vmatmul.f32.gmra.mxu0 %v2189
    %v2228 = vpop.f32.mrf.mxu0
    %v2229 = vadd.f32 %v1147, %v2228
    %2230 = vdwg.mxu0
    %2231 = vmatpush.msra.mxu0 0.0
    %2232 = vmatpush.msra.mxu0 0.0
    %2233 = vmatpush.msra.mxu0 0.0
    %2234 = vmatpush.msra.mxu0 0.0
    %2235 = vmatpush.msra.mxu0 0.0
    %2236 = vmatpush.msra.mxu0 0.0
    %2237 = vmatpush.msra.mxu0 0.0
    %2238 = vmatpush.msra.mxu0 0.0
    %2239 = vmatpush.msra.mxu0 0.0
    %2240 = vmatpush.msra.mxu0 0.0
    %2241 = vmatpush.msra.mxu0 0.0
    %2242 = vmatpush.msra.mxu0 0.0
    %2243 = vmatpush.msra.mxu0 %v1138
    %2244 = vmatpush.msra.mxu0 %v1137
    %2245 = vmatpush.msra.mxu0 %v1136
    %2246 = vmatpush.msra.mxu0 %v1135
    %2247 = vmatmul.f32.gmra.mxu0 %v2189
    %v2248 = vpop.f32.mrf.mxu0
    %v2249 = vadd.f32 %v1152, %v2248
    %2250 = vdwg.mxu0
    %v2251 = vadd.f32 %v2183, %v2209
    %v2252 = vxor.u32 %v2251, 2147483648
    %v2253 = vmul.f32 %v2252, 1.442695
    %v2254 = vpow.pop %v2253
    %v2255 = vadd.f32 %v2254, 1.0
    %v2256 = vrcp.pop %v2255
    %v2257 = vmul.f32 %v2255, %v2256
    %v2258 = vsub.f32 1.0, %v2257
    %v2259 = vmul.f32 %v2256, %v2258
    %v2260 = vadd.f32 %v2256, %v2259
    %vm2261 = vweird.f32 %v2255
    %vm2262 = vweird.f32 %v2256
    %vm2263 = vmor %vm2261, %vm2262
    %v2264 = vsel %vm2263, %v2256, %v2260
    %v2265 = vand.u32 2147483647, %v2255
    %vm2266 = vcmp.eq.f32.partialorder %v2265, 8.507059e+37
    %v2267 = vand.u32 %v2255, 2147483648
    %v2268 = vor.u32 1.1754944e-38, %v2267
    %v2269 = vsel %vm2266, %v2268, %v2264
    %v2270 = vmul.f32 1.0, %v2269
    %v2271 = vadd.f32 %v2185, %v2229
    %v2272 = vxor.u32 %v2271, 2147483648
    %v2273 = vmul.f32 %v2272, 1.442695
    %v2274 = vpow.pop %v2273
    %v2275 = vadd.f32 %v2274, 1.0
    %v2276 = vrcp.pop %v2275
    %v2277 = vmul.f32 %v2275, %v2276
    %v2278 = vsub.f32 1.0, %v2277
    %v2279 = vmul.f32 %v2276, %v2278
    %v2280 = vadd.f32 %v2276, %v2279
    %vm2281 = vweird.f32 %v2275
    %vm2282 = vweird.f32 %v2276
    %vm2283 = vmor %vm2281, %vm2282
    %v2284 = vsel %vm2283, %v2276, %v2280
    %v2285 = vand.u32 2147483647, %v2275
    %vm2286 = vcmp.eq.f32.partialorder %v2285, 8.507059e+37
    %v2287 = vand.u32 %v2275, 2147483648
    %v2288 = vor.u32 1.1754944e-38, %v2287
    %v2289 = vsel %vm2286, %v2288, %v2284
    %v2290 = vmul.f32 1.0, %v2289
    %v2291 = vmul.f32 %v2270, %v2249
    %v2292 = vadd.f32 %v2187, %v2291
    %v2293 = vtanh.pop %v2292
    %v2294 = vsub.f32 1.0, %v2290
    %v2295 = vmul.f32 %v2294, %v2293
    %v2296 = vmul.f32 %v2290, %v2179
    %v2297 = vadd.f32 %v2295, %v2296
    %s2298 = scalar_lea.vmem %s6, 56
    %2299 = vst.msk [vmem:[%s2298] sm:$0xff] %vm148, %v2297
    // Predicated region
    $region50: #{tpu_custom_call.1} parent=1 // pred_check
      _
    $region51: #{tpu_custom_call.1} parent=1 // pred_check_branch
      %2301 = sbr.rel (0) target = $region53
    $region52: #{tpu_custom_call.1} parent=1 // pred_region
      _
    $region53: #{tpu_custom_call.1} parent=1 // pred_fallthru
      _
    // Predicated region
    $region54: #{tpu_custom_call.1} parent=1 // pred_check
      _
    $region55: #{tpu_custom_call.1} parent=1 // pred_check_branch
      %2303 = sbr.rel (0) target = $region57
    $region56: #{tpu_custom_call.1} parent=1 // pred_region
      _
    $region57: #{tpu_custom_call.1} parent=1 // pred_fallthru
      _
    %2304 = vsyncpa [#allocation7], 1
    %2305 = vsyncpa [#allocation9], 1
    %2306 = vsyncpa [#allocation12], 1
    %2307 = vsyncpa [#allocation15], 1

</llo_original>
